<compile_context>
chip_gen: v7x
topology: tpu7x:2x2x1
jax: 0.10.0
libtpu: 0.0.40
codegen_flags: <defaults>
</compile_context>

<pallas_src>
import functools

import jax
import jax.numpy as jnp
import numpy as np
from jax.experimental import pallas as pl
from jax.experimental.pallas import tpu as pltpu

K = 7            # spatial_kernel
P = K // 2       # conv padding
_LANE = 128
_N_ACC = 4       # partial accumulators in the tap loop
_PAD_SENTINEL = -1.0e6


def _cbam_kernel(x_ref, w1t_ref, w2t_ref, row_ref, col_ref, wc_ref, o_ref,
                 *, H, W, HW, padded):
    # x_ref : (Bt, C, HWp) VMEM, lane-dense      w1t_ref: (C, Cr) VMEM (= w1.T)
    # w2t_ref: (Cr, C) VMEM (= w2.T)             row/col: (1, HWp) VMEM exact f32 indices
    # wc_ref : (2*K*K,) SMEM conv weights [c, kh, kw]     o_ref: (Bt, C, HWp)
    Bt, C, HWp = x_ref.shape
    x = x_ref[...].astype(jnp.float32)                         # (Bt, C, HWp)

    # ---------------- channel attention (global max/avg pool + shared MLP) ----
    if padded:
        lane_ok = (col_ref[...] >= 0.0)[None]                  # (1, 1, HWp); pad lanes masked
        x_max_in = jnp.where(lane_ok, x, -jnp.inf)
    else:
        x_max_in = x
    max_hw = jnp.max(x_max_in, axis=-1)                        # (Bt, C)  lane reduce
    avg_hw = jnp.sum(x, axis=-1) * (1.0 / HW)                  # (Bt, C)  pad lanes are zero
    pooled = jnp.concatenate([max_hw, avg_hw], axis=0)         # (2Bt, C)

    w1t = w1t_ref[...].astype(jnp.float32)                     # (C, Cr)
    w2t = w2t_ref[...].astype(jnp.float32)                     # (Cr, C)
    h = jnp.maximum(jnp.dot(pooled, w1t,
                            preferred_element_type=jnp.float32), 0.0)     # (2Bt, Cr)
    mlp = jnp.dot(h, w2t, preferred_element_type=jnp.float32)             # (2Bt, C)
    ch_att = jax.nn.sigmoid(mlp[:Bt] + mlp[Bt:])               # (Bt, C)

    # ---------------- spatial attention maps -----------------------------------
    # channel-mean on the MXU: one (1, C) @ (C, HWp) mat-vec per image (off the VPU path).
    avg_rows = [jnp.dot(ch_att[b:b + 1, :], x[b], preferred_element_type=jnp.float32)
                for b in range(Bt)]
    avg_c = jnp.concatenate(avg_rows, axis=0) * (1.0 / C)       # (Bt, HWp)
    # channel-max: one elementwise pass; the product is not kept live afterwards.
    max_c = jnp.max(x * ch_att[:, :, None], axis=1)             # (Bt, HWp)

    # ---------------- 7x7 conv: combined lane rolls + (1,HWp) weighted masks ----
    row = row_ref[...]                                          # (1, HWp) exact integers
    col = col_ref[...]
    rmask = [((row >= float(-dh)) & (row <= float(H - 1 - dh))).astype(jnp.float32)
             for dh in range(-P, P + 1)]                        # index kh = dh + P
    cmask = [((col >= float(-dw)) & (col <= float(W - 1 - dw))).astype(jnp.float32)
             for dw in range(-P, P + 1)]                        # index kw = dw + P
    # Hoisted one-time SMEM scalar reads of the conv weights (max channel, avg channel).
    w_max = [wc_ref[t] for t in range(K * K)]
    w_avg = [wc_ref[K * K + t] for t in range(K * K)]

    accs = [jnp.zeros((Bt, HWp), jnp.float32) for _ in range(_N_ACC)]
    for kh in range(K):
        dh = kh - P
        for kw in range(K):
            dw = kw - P
            t = kh * K + kw
            shift = (-(dh * W + dw)) % HWp
            if shift == 0:
                rmax, ravg = max_c, avg_c
            else:
                rmax = pltpu.roll(max_c, shift=shift, axis=1)   # XLU
                ravg = pltpu.roll(avg_c, shift=shift, axis=1)
            wm = rmask[kh] * cmask[kw]                          # (1, HWp), small
            # Wrap-around reads are always zeroed by wm, so one combined roll is exact.
            accs[t % _N_ACC] = accs[t % _N_ACC] + (
                (w_max[t] * wm) * rmax + (w_avg[t] * wm) * ravg)

    sp_pre = accs[0]
    for a in accs[1:]:
        sp_pre = sp_pre + a
    sp_att = jax.nn.sigmoid(sp_pre)                             # (Bt, HWp)

    # Recompute x * ch_att at store time (keeps the big product's live range short).
    o_ref[...] = ((x * ch_att[:, :, None]) * sp_att[:, None, :]).astype(o_ref.dtype)


def _tpu_generation():
    try:
        kind = jax.devices()[0].device_kind.lower()
    except Exception:
        kind = ""
    if "v7" in kind:
        return "v7x"
    if "v6" in kind:
        return "v6e"
    if "v5" in kind:
        return "v5e"
    return "other"


def _vmem_capacity_bytes():
    try:
        return int(pltpu.get_tpu_info().vmem_capacity_bytes)
    except Exception:
        return None


def _per_image_vmem_bytes(C, HWp, itemsize):
    # Honest accounting: double-buffered in+out DMA blocks, ~3 f32 full-block temporaries
    # (x-as-f32, x*ch_att for the channel max, the pre-store product), plus per-row
    # maps / accumulators / masks.
    return (2 * 2 * C * HWp * itemsize
            + 3 * C * HWp * 4
            + 16 * HWp * 4)


def _pick_block_b(B, C, HWp, itemsize, gen, vmem_cap):
    per_image = _per_image_vmem_bytes(C, HWp, itemsize)
    small_vmem = (gen == "v7x") or (vmem_cap is not None and vmem_cap <= (64 << 20))
    budget = (40 << 20) if small_vmem else (64 << 20)
    cap = max(1, budget // per_image)
    divisors = [d for d in range(1, B + 1) if B % d == 0 and d <= cap] or [1]
    if small_vmem:
        # Dual-TC v7x: prefer an even number of grid steps so megacore sharding is balanced.
        even = [d for d in divisors if (B // d) % 2 == 0]
        if even:
            return max(even)
        multi = [d for d in divisors if B // d >= 2]
        return max(multi) if multi else max(divisors)
    # Single-TC v5e/v6e (128 MiB VMEM, HBM-bound): biggest block that fits.
    return max(divisors)


def cbam_pallas(x, w1, w2, wconv, *, block_b=None):
    B, C, H, W = x.shape
    HW = H * W
    HWp = ((HW + _LANE - 1) // _LANE) * _LANE        # lane-dense last dim
    padded = HWp != HW
    Cr = w1.shape[0]
    itemsize = x.dtype.itemsize

    # Lane-dense layout: H*W on the 128-wide lane axis; zero-pad to a multiple of 128.
    x3 = x.reshape(B, C, HW)
    if padded:
        x3 = jnp.pad(x3, ((0, 0), (0, 0), (0, HWp - HW)))

    w1t = jnp.asarray(w1, jnp.float32).T                        # (C, Cr)
    w2t = jnp.asarray(w2, jnp.float32).T                        # (Cr, C)
    wc_flat = jnp.asarray(wconv, jnp.float32).reshape(-1)       # (2*K*K,) [c, kh, kw]

    # Exact integer row/col indices per flattened lane (pad lanes get an OOB sentinel).
    rows = np.repeat(np.arange(H, dtype=np.float32), W)
    cols = np.tile(np.arange(W, dtype=np.float32), H)
    if padded:
        fill = np.full(HWp - HW, _PAD_SENTINEL, np.float32)
        rows = np.concatenate([rows, fill])
        cols = np.concatenate([cols, fill])
    row_idx = jnp.asarray(rows)[None, :]                        # (1, HWp)
    col_idx = jnp.asarray(cols)[None, :]

    gen = _tpu_generation()
    vmem_cap = _vmem_capacity_bytes()
    Bt = block_b if block_b is not None else _pick_block_b(B, C, HWp, itemsize, gen, vmem_cap)
    assert B % Bt == 0, "block_b must divide the batch size"
    grid = (B // Bt,)

    small_vmem = (gen == "v7x") or (vmem_cap is not None and vmem_cap <= (64 << 20))
    per_step = Bt * _per_image_vmem_bytes(C, HWp, itemsize)
    limit_cap = (48 << 20) if small_vmem else (100 << 20)
    vmem_limit = int(min(limit_cap, max(32 << 20, per_step + (4 << 20))))

    kernel = functools.partial(_cbam_kernel, H=H, W=W, HW=HW, padded=padded)

    out3 = pl.pallas_call(
        kernel,
        out_shape=jax.ShapeDtypeStruct((B, C, HWp), x.dtype),
        grid_spec=pltpu.PrefetchScalarGridSpec(
            num_scalar_prefetch=0,
            grid=grid,
            in_specs=[
                pl.BlockSpec((Bt, C, HWp), lambda b: (b, 0, 0)),
                pl.BlockSpec((C, Cr), lambda b: (0, 0)),
                pl.BlockSpec((Cr, C), lambda b: (0, 0)),
                pl.BlockSpec((1, HWp), lambda b: (0, 0)),
                pl.BlockSpec((1, HWp), lambda b: (0, 0)),
                pl.BlockSpec(memory_space=pltpu.MemorySpace.SMEM),
            ],
            out_specs=pl.BlockSpec((Bt, C, HWp), lambda b: (b, 0, 0)),
        ),
        compiler_params=pltpu.CompilerParams(
            dimension_semantics=("parallel",),
            vmem_limit_bytes=vmem_limit,
        ),
    )(x3, w1t, w2t, row_idx, col_idx, wc_flat)

    if padded:
        out3 = out3[:, :, :HW]
    return out3.reshape(B, C, H, W)


def cbam_reference(x, w1, w2, wconv):
    # Pure-JAX reference mirroring the PyTorch forward (NCHW), for validation.
    mx = jnp.max(x, axis=(2, 3))
    av = jnp.mean(x, axis=(2, 3))

    def mlp(p):
        h = jnp.maximum(p @ w1.T, 0.0)
        return h @ w2.T

    ch = jax.nn.sigmoid(mlp(mx) + mlp(av))[:, :, None, None]
    xc = x * ch
    mc = jnp.max(xc, axis=1, keepdims=True)
    ac = jnp.mean(xc, axis=1, keepdims=True)
    feat = jnp.concatenate([mc, ac], axis=1)                    # (B, 2, H, W)
    sp = jax.lax.conv_general_dilated(
        feat, wconv[None], window_strides=(1, 1), padding=((P, P), (P, P)),
        dimension_numbers=("NCHW", "OIHW", "NCHW"))
    return xc * jax.nn.sigmoid(sp)


if __name__ == "__main__":
    B, C, H, W = 2, 32, 16, 16
    reduction = 16
    Cr = C // reduction

    key = jax.random.PRNGKey(0)
    kx, k1, k2, k3 = jax.random.split(key, 4)
    x = jax.random.normal(kx, (B, C, H, W), dtype=jnp.float32)
    # Deterministic synthetic parameters (shapes from the module's __init__):
    w1 = jax.random.normal(k1, (Cr, C), dtype=jnp.float32) * 0.1        # Conv2d(C, C//r, 1, bias=False)
    w2 = jax.random.normal(k2, (C, Cr), dtype=jnp.float32) * 0.1        # Conv2d(C//r, C, 1, bias=False)
    wconv = jax.random.normal(k3, (2, K, K), dtype=jnp.float32) * 0.05  # Conv2d(2, 1, 7, pad=3, bias=False)

    out = jax.block_until_ready(cbam_pallas(x, w1, w2, wconv))
    ref = jax.block_until_ready(cbam_reference(x, w1, w2, wconv))

    assert out.shape == (B, C, H, W) and out.dtype == x.dtype
    np.testing.assert_allclose(np.asarray(out), np.asarray(ref), rtol=1e-4, atol=1e-4)
    print("KERNEL_OK")
</pallas_src>

<mosaic_0001>
module attributes {stable_mosaic.version = 11 : i64} {
  func.func @_cbam_kernel(%arg0: i32, %arg1: memref<2x32x256xf32, #tpu.memory_space<vmem>>, %arg2: memref<32x2xf32, #tpu.memory_space<vmem>>, %arg3: memref<2x32xf32, #tpu.memory_space<vmem>>, %arg4: memref<1x256xf32, #tpu.memory_space<vmem>>, %arg5: memref<1x256xf32, #tpu.memory_space<vmem>>, %arg6: memref<98xf32, #tpu.memory_space<smem>>, %arg7: memref<2x32x256xf32, #tpu.memory_space<vmem>>) attributes {dimension_semantics = [#tpu.dimension_semantics<parallel>], iteration_bounds = array<i64: 1>, scalar_prefetch = 0 : i64, scratch_operands = 0 : i64, tpu.core_type = #tpu.core_type<tc>, window_params = [{transform_indices = @transform_0, window_bounds = array<i64: 2, 32, 256>}, {pipeline_mode = #tpu.pipeline_mode<synchronous>, transform_indices = @transform_1, window_bounds = array<i64: 32, 2>}, {pipeline_mode = #tpu.pipeline_mode<synchronous>, transform_indices = @transform_2, window_bounds = array<i64: 2, 32>}, {pipeline_mode = #tpu.pipeline_mode<synchronous>, transform_indices = @transform_3, window_bounds = array<i64: 1, 256>}, {pipeline_mode = #tpu.pipeline_mode<synchronous>, transform_indices = @transform_4, window_bounds = array<i64: 1, 256>}, {transform_indices = @transform_5, window_bounds = array<i64: 98>}, {transform_indices = @transform_6, window_bounds = array<i64: 2, 32, 256>}]} {
    %c0 = arith.constant 0 : index
    %c0_0 = arith.constant 0 : index
    %c0_1 = arith.constant 0 : index
    %0 = vector.load %arg1[%c0, %c0_0, %c0_1] : memref<2x32x256xf32, #tpu.memory_space<vmem>>, vector<2x32x256xf32>
    %cst = arith.constant dense<0xFF800000> : vector<2x32xf32>
    %1 = vector.multi_reduction <maximumf>, %0, %cst [2] : vector<2x32x256xf32> to vector<2x32xf32>
    %cst_2 = arith.constant dense<0.000000e+00> : vector<2x32xf32>
    %2 = vector.multi_reduction <add>, %0, %cst_2 [2] : vector<2x32x256xf32> to vector<2x32xf32>
    %cst_3 = arith.constant 3.906250e-03 : f32
    %3 = vector.broadcast %cst_3 : f32 to vector<2x32xf32>
    %4 = arith.mulf %2, %3 : vector<2x32xf32>
    %5 = tpu.concatenate %1, %4 in 0 : vector<2x32xf32>, vector<2x32xf32> -> vector<4x32xf32>
    %c0_4 = arith.constant 0 : index
    %c0_5 = arith.constant 0 : index
    %6 = vector.load %arg2[%c0_4, %c0_5] : memref<32x2xf32, #tpu.memory_space<vmem>>, vector<32x2xf32>
    %c0_6 = arith.constant 0 : index
    %c0_7 = arith.constant 0 : index
    %7 = vector.load %arg3[%c0_6, %c0_7] : memref<2x32xf32, #tpu.memory_space<vmem>>, vector<2x32xf32>
    %cst_8 = arith.constant dense<0.000000e+00> : vector<4x2xf32>
    %8 = tpu.matmul %5, %6, %cst_8 {dimension_numbers = #tpu.dot_dimension_numbers<[1], [0], [0], [1], [0, 0, 1, 1], [], []>} : vector<4x32xf32>, vector<32x2xf32>, vector<4x2xf32> -> vector<4x2xf32>
    %cst_9 = arith.constant 0.000000e+00 : f32
    %9 = vector.broadcast %cst_9 : f32 to vector<4x2xf32>
    %10 = arith.maximumf %8, %9 : vector<4x2xf32>
    %cst_10 = arith.constant dense<0.000000e+00> : vector<4x32xf32>
    %11 = tpu.matmul %10, %7, %cst_10 {dimension_numbers = #tpu.dot_dimension_numbers<[1], [0], [0], [1], [0, 0, 1, 1], [], []>} : vector<4x2xf32>, vector<2x32xf32>, vector<4x32xf32> -> vector<4x32xf32>
    %12 = vector.extract_strided_slice %11 {offsets = [0, 0], sizes = [2, 32], strides = [1, 1]} : vector<4x32xf32> to vector<2x32xf32>
    %13 = vector.extract_strided_slice %11 {offsets = [2, 0], sizes = [2, 32], strides = [1, 1]} : vector<4x32xf32> to vector<2x32xf32>
    %14 = arith.addf %12, %13 : vector<2x32xf32>
    %15 = arith.negf %14 : vector<2x32xf32>
    %16 = math.exp %15 : vector<2x32xf32>
    %cst_11 = arith.constant 1.000000e+00 : f32
    %17 = vector.broadcast %cst_11 : f32 to vector<2x32xf32>
    %18 = arith.addf %17, %16 : vector<2x32xf32>
    %19 = arith.divf %17, %18 : vector<2x32xf32>
    %20 = vector.extract_strided_slice %19 {offsets = [0, 0], sizes = [1, 32], strides = [1, 1]} : vector<2x32xf32> to vector<1x32xf32>
    %21 = vector.extract_strided_slice %0 {offsets = [0, 0, 0], sizes = [1, 32, 256], strides = [1, 1, 1]} : vector<2x32x256xf32> to vector<1x32x256xf32>
    %22 = vector.shape_cast %21 : vector<1x32x256xf32> to vector<32x256xf32>
    %cst_12 = arith.constant dense<0.000000e+00> : vector<1x256xf32>
    %23 = tpu.matmul %20, %22, %cst_12 {dimension_numbers = #tpu.dot_dimension_numbers<[1], [0], [0], [1], [0, 0, 1, 1], [], []>} : vector<1x32xf32>, vector<32x256xf32>, vector<1x256xf32> -> vector<1x256xf32>
    %24 = vector.extract_strided_slice %19 {offsets = [1, 0], sizes = [1, 32], strides = [1, 1]} : vector<2x32xf32> to vector<1x32xf32>
    %25 = vector.extract_strided_slice %0 {offsets = [1, 0, 0], sizes = [1, 32, 256], strides = [1, 1, 1]} : vector<2x32x256xf32> to vector<1x32x256xf32>
    %26 = vector.shape_cast %25 : vector<1x32x256xf32> to vector<32x256xf32>
    %cst_13 = arith.constant dense<0.000000e+00> : vector<1x256xf32>
    %27 = tpu.matmul %24, %26, %cst_13 {dimension_numbers = #tpu.dot_dimension_numbers<[1], [0], [0], [1], [0, 0, 1, 1], [], []>} : vector<1x32xf32>, vector<32x256xf32>, vector<1x256xf32> -> vector<1x256xf32>
    %28 = tpu.concatenate %23, %27 in 0 : vector<1x256xf32>, vector<1x256xf32> -> vector<2x256xf32>
    %cst_14 = arith.constant 3.125000e-02 : f32
    %29 = vector.broadcast %cst_14 : f32 to vector<2x256xf32>
    %30 = arith.mulf %28, %29 : vector<2x256xf32>
    %31 = vector.shape_cast %19 : vector<2x32xf32> to vector<2x32x1xf32>
    %32 = vector.broadcast %31 : vector<2x32x1xf32> to vector<2x32x256xf32>
    %33 = arith.mulf %0, %32 : vector<2x32x256xf32>
    %cst_15 = arith.constant dense<0xFF800000> : vector<2x256xf32>
    %34 = vector.multi_reduction <maximumf>, %33, %cst_15 [1] : vector<2x32x256xf32> to vector<2x256xf32>
    %c0_16 = arith.constant 0 : index
    %c0_17 = arith.constant 0 : index
    %35 = vector.load %arg4[%c0_16, %c0_17] : memref<1x256xf32, #tpu.memory_space<vmem>>, vector<1x256xf32>
    %c0_18 = arith.constant 0 : index
    %c0_19 = arith.constant 0 : index
    %36 = vector.load %arg5[%c0_18, %c0_19] : memref<1x256xf32, #tpu.memory_space<vmem>>, vector<1x256xf32>
    %cst_20 = arith.constant 3.000000e+00 : f32
    %37 = vector.broadcast %cst_20 : f32 to vector<1x256xf32>
    %38 = arith.cmpf oge, %35, %37 : vector<1x256xf32>
    %cst_21 = arith.constant 1.800000e+01 : f32
    %39 = vector.broadcast %cst_21 : f32 to vector<1x256xf32>
    %40 = arith.cmpf ole, %35, %39 : vector<1x256xf32>
    %41 = arith.andi %38, %40 : vector<1x256xi1>
    %42 = arith.extui %41 : vector<1x256xi1> to vector<1x256xi32>
    %43 = arith.sitofp %42 : vector<1x256xi32> to vector<1x256xf32>
    %cst_22 = arith.constant 2.000000e+00 : f32
    %44 = vector.broadcast %cst_22 : f32 to vector<1x256xf32>
    %45 = arith.cmpf oge, %35, %44 : vector<1x256xf32>
    %cst_23 = arith.constant 1.700000e+01 : f32
    %46 = vector.broadcast %cst_23 : f32 to vector<1x256xf32>
    %47 = arith.cmpf ole, %35, %46 : vector<1x256xf32>
    %48 = arith.andi %45, %47 : vector<1x256xi1>
    %49 = arith.extui %48 : vector<1x256xi1> to vector<1x256xi32>
    %50 = arith.sitofp %49 : vector<1x256xi32> to vector<1x256xf32>
    %cst_24 = arith.constant 1.000000e+00 : f32
    %51 = vector.broadcast %cst_24 : f32 to vector<1x256xf32>
    %52 = arith.cmpf oge, %35, %51 : vector<1x256xf32>
    %cst_25 = arith.constant 1.600000e+01 : f32
    %53 = vector.broadcast %cst_25 : f32 to vector<1x256xf32>
    %54 = arith.cmpf ole, %35, %53 : vector<1x256xf32>
    %55 = arith.andi %52, %54 : vector<1x256xi1>
    %56 = arith.extui %55 : vector<1x256xi1> to vector<1x256xi32>
    %57 = arith.sitofp %56 : vector<1x256xi32> to vector<1x256xf32>
    %cst_26 = arith.constant 0.000000e+00 : f32
    %58 = vector.broadcast %cst_26 : f32 to vector<1x256xf32>
    %59 = arith.cmpf oge, %35, %58 : vector<1x256xf32>
    %cst_27 = arith.constant 1.500000e+01 : f32
    %60 = vector.broadcast %cst_27 : f32 to vector<1x256xf32>
    %61 = arith.cmpf ole, %35, %60 : vector<1x256xf32>
    %62 = arith.andi %59, %61 : vector<1x256xi1>
    %63 = arith.extui %62 : vector<1x256xi1> to vector<1x256xi32>
    %64 = arith.sitofp %63 : vector<1x256xi32> to vector<1x256xf32>
    %cst_28 = arith.constant -1.000000e+00 : f32
    %65 = vector.broadcast %cst_28 : f32 to vector<1x256xf32>
    %66 = arith.cmpf oge, %35, %65 : vector<1x256xf32>
    %cst_29 = arith.constant 1.400000e+01 : f32
    %67 = vector.broadcast %cst_29 : f32 to vector<1x256xf32>
    %68 = arith.cmpf ole, %35, %67 : vector<1x256xf32>
    %69 = arith.andi %66, %68 : vector<1x256xi1>
    %70 = arith.extui %69 : vector<1x256xi1> to vector<1x256xi32>
    %71 = arith.sitofp %70 : vector<1x256xi32> to vector<1x256xf32>
    %cst_30 = arith.constant -2.000000e+00 : f32
    %72 = vector.broadcast %cst_30 : f32 to vector<1x256xf32>
    %73 = arith.cmpf oge, %35, %72 : vector<1x256xf32>
    %cst_31 = arith.constant 1.300000e+01 : f32
    %74 = vector.broadcast %cst_31 : f32 to vector<1x256xf32>
    %75 = arith.cmpf ole, %35, %74 : vector<1x256xf32>
    %76 = arith.andi %73, %75 : vector<1x256xi1>
    %77 = arith.extui %76 : vector<1x256xi1> to vector<1x256xi32>
    %78 = arith.sitofp %77 : vector<1x256xi32> to vector<1x256xf32>
    %cst_32 = arith.constant -3.000000e+00 : f32
    %79 = vector.broadcast %cst_32 : f32 to vector<1x256xf32>
    %80 = arith.cmpf oge, %35, %79 : vector<1x256xf32>
    %cst_33 = arith.constant 1.200000e+01 : f32
    %81 = vector.broadcast %cst_33 : f32 to vector<1x256xf32>
    %82 = arith.cmpf ole, %35, %81 : vector<1x256xf32>
    %83 = arith.andi %80, %82 : vector<1x256xi1>
    %84 = arith.extui %83 : vector<1x256xi1> to vector<1x256xi32>
    %85 = arith.sitofp %84 : vector<1x256xi32> to vector<1x256xf32>
    %cst_34 = arith.constant 3.000000e+00 : f32
    %86 = vector.broadcast %cst_34 : f32 to vector<1x256xf32>
    %87 = arith.cmpf oge, %36, %86 : vector<1x256xf32>
    %cst_35 = arith.constant 1.800000e+01 : f32
    %88 = vector.broadcast %cst_35 : f32 to vector<1x256xf32>
    %89 = arith.cmpf ole, %36, %88 : vector<1x256xf32>
    %90 = arith.andi %87, %89 : vector<1x256xi1>
    %91 = arith.extui %90 : vector<1x256xi1> to vector<1x256xi32>
    %92 = arith.sitofp %91 : vector<1x256xi32> to vector<1x256xf32>
    %cst_36 = arith.constant 2.000000e+00 : f32
    %93 = vector.broadcast %cst_36 : f32 to vector<1x256xf32>
    %94 = arith.cmpf oge, %36, %93 : vector<1x256xf32>
    %cst_37 = arith.constant 1.700000e+01 : f32
    %95 = vector.broadcast %cst_37 : f32 to vector<1x256xf32>
    %96 = arith.cmpf ole, %36, %95 : vector<1x256xf32>
    %97 = arith.andi %94, %96 : vector<1x256xi1>
    %98 = arith.extui %97 : vector<1x256xi1> to vector<1x256xi32>
    %99 = arith.sitofp %98 : vector<1x256xi32> to vector<1x256xf32>
    %cst_38 = arith.constant 1.000000e+00 : f32
    %100 = vector.broadcast %cst_38 : f32 to vector<1x256xf32>
    %101 = arith.cmpf oge, %36, %100 : vector<1x256xf32>
    %cst_39 = arith.constant 1.600000e+01 : f32
    %102 = vector.broadcast %cst_39 : f32 to vector<1x256xf32>
    %103 = arith.cmpf ole, %36, %102 : vector<1x256xf32>
    %104 = arith.andi %101, %103 : vector<1x256xi1>
    %105 = arith.extui %104 : vector<1x256xi1> to vector<1x256xi32>
    %106 = arith.sitofp %105 : vector<1x256xi32> to vector<1x256xf32>
    %cst_40 = arith.constant 0.000000e+00 : f32
    %107 = vector.broadcast %cst_40 : f32 to vector<1x256xf32>
    %108 = arith.cmpf oge, %36, %107 : vector<1x256xf32>
    %cst_41 = arith.constant 1.500000e+01 : f32
    %109 = vector.broadcast %cst_41 : f32 to vector<1x256xf32>
    %110 = arith.cmpf ole, %36, %109 : vector<1x256xf32>
    %111 = arith.andi %108, %110 : vector<1x256xi1>
    %112 = arith.extui %111 : vector<1x256xi1> to vector<1x256xi32>
    %113 = arith.sitofp %112 : vector<1x256xi32> to vector<1x256xf32>
    %cst_42 = arith.constant -1.000000e+00 : f32
    %114 = vector.broadcast %cst_42 : f32 to vector<1x256xf32>
    %115 = arith.cmpf oge, %36, %114 : vector<1x256xf32>
    %cst_43 = arith.constant 1.400000e+01 : f32
    %116 = vector.broadcast %cst_43 : f32 to vector<1x256xf32>
    %117 = arith.cmpf ole, %36, %116 : vector<1x256xf32>
    %118 = arith.andi %115, %117 : vector<1x256xi1>
    %119 = arith.extui %118 : vector<1x256xi1> to vector<1x256xi32>
    %120 = arith.sitofp %119 : vector<1x256xi32> to vector<1x256xf32>
    %cst_44 = arith.constant -2.000000e+00 : f32
    %121 = vector.broadcast %cst_44 : f32 to vector<1x256xf32>
    %122 = arith.cmpf oge, %36, %121 : vector<1x256xf32>
    %cst_45 = arith.constant 1.300000e+01 : f32
    %123 = vector.broadcast %cst_45 : f32 to vector<1x256xf32>
    %124 = arith.cmpf ole, %36, %123 : vector<1x256xf32>
    %125 = arith.andi %122, %124 : vector<1x256xi1>
    %126 = arith.extui %125 : vector<1x256xi1> to vector<1x256xi32>
    %127 = arith.sitofp %126 : vector<1x256xi32> to vector<1x256xf32>
    %cst_46 = arith.constant -3.000000e+00 : f32
    %128 = vector.broadcast %cst_46 : f32 to vector<1x256xf32>
    %129 = arith.cmpf oge, %36, %128 : vector<1x256xf32>
    %cst_47 = arith.constant 1.200000e+01 : f32
    %130 = vector.broadcast %cst_47 : f32 to vector<1x256xf32>
    %131 = arith.cmpf ole, %36, %130 : vector<1x256xf32>
    %132 = arith.andi %129, %131 : vector<1x256xi1>
    %133 = arith.extui %132 : vector<1x256xi1> to vector<1x256xi32>
    %134 = arith.sitofp %133 : vector<1x256xi32> to vector<1x256xf32>
    %c0_48 = arith.constant 0 : index
    %135 = memref.load %arg6[%c0_48] : memref<98xf32, #tpu.memory_space<smem>>
    %c1 = arith.constant 1 : index
    %136 = memref.load %arg6[%c1] : memref<98xf32, #tpu.memory_space<smem>>
    %c2 = arith.constant 2 : index
    %137 = memref.load %arg6[%c2] : memref<98xf32, #tpu.memory_space<smem>>
    %c3 = arith.constant 3 : index
    %138 = memref.load %arg6[%c3] : memref<98xf32, #tpu.memory_space<smem>>
    %c4 = arith.constant 4 : index
    %139 = memref.load %arg6[%c4] : memref<98xf32, #tpu.memory_space<smem>>
    %c5 = arith.constant 5 : index
    %140 = memref.load %arg6[%c5] : memref<98xf32, #tpu.memory_space<smem>>
    %c6 = arith.constant 6 : index
    %141 = memref.load %arg6[%c6] : memref<98xf32, #tpu.memory_space<smem>>
    %c7 = arith.constant 7 : index
    %142 = memref.load %arg6[%c7] : memref<98xf32, #tpu.memory_space<smem>>
    %c8 = arith.constant 8 : index
    %143 = memref.load %arg6[%c8] : memref<98xf32, #tpu.memory_space<smem>>
    %c9 = arith.constant 9 : index
    %144 = memref.load %arg6[%c9] : memref<98xf32, #tpu.memory_space<smem>>
    %c10 = arith.constant 10 : index
    %145 = memref.load %arg6[%c10] : memref<98xf32, #tpu.memory_space<smem>>
    %c11 = arith.constant 11 : index
    %146 = memref.load %arg6[%c11] : memref<98xf32, #tpu.memory_space<smem>>
    %c12 = arith.constant 12 : index
    %147 = memref.load %arg6[%c12] : memref<98xf32, #tpu.memory_space<smem>>
    %c13 = arith.constant 13 : index
    %148 = memref.load %arg6[%c13] : memref<98xf32, #tpu.memory_space<smem>>
    %c14 = arith.constant 14 : index
    %149 = memref.load %arg6[%c14] : memref<98xf32, #tpu.memory_space<smem>>
    %c15 = arith.constant 15 : index
    %150 = memref.load %arg6[%c15] : memref<98xf32, #tpu.memory_space<smem>>
    %c16 = arith.constant 16 : index
    %151 = memref.load %arg6[%c16] : memref<98xf32, #tpu.memory_space<smem>>
    %c17 = arith.constant 17 : index
    %152 = memref.load %arg6[%c17] : memref<98xf32, #tpu.memory_space<smem>>
    %c18 = arith.constant 18 : index
    %153 = memref.load %arg6[%c18] : memref<98xf32, #tpu.memory_space<smem>>
    %c19 = arith.constant 19 : index
    %154 = memref.load %arg6[%c19] : memref<98xf32, #tpu.memory_space<smem>>
    %c20 = arith.constant 20 : index
    %155 = memref.load %arg6[%c20] : memref<98xf32, #tpu.memory_space<smem>>
    %c21 = arith.constant 21 : index
    %156 = memref.load %arg6[%c21] : memref<98xf32, #tpu.memory_space<smem>>
    %c22 = arith.constant 22 : index
    %157 = memref.load %arg6[%c22] : memref<98xf32, #tpu.memory_space<smem>>
    %c23 = arith.constant 23 : index
    %158 = memref.load %arg6[%c23] : memref<98xf32, #tpu.memory_space<smem>>
    %c24 = arith.constant 24 : index
    %159 = memref.load %arg6[%c24] : memref<98xf32, #tpu.memory_space<smem>>
    %c25 = arith.constant 25 : index
    %160 = memref.load %arg6[%c25] : memref<98xf32, #tpu.memory_space<smem>>
    %c26 = arith.constant 26 : index
    %161 = memref.load %arg6[%c26] : memref<98xf32, #tpu.memory_space<smem>>
    %c27 = arith.constant 27 : index
    %162 = memref.load %arg6[%c27] : memref<98xf32, #tpu.memory_space<smem>>
    %c28 = arith.constant 28 : index
    %163 = memref.load %arg6[%c28] : memref<98xf32, #tpu.memory_space<smem>>
    %c29 = arith.constant 29 : index
    %164 = memref.load %arg6[%c29] : memref<98xf32, #tpu.memory_space<smem>>
    %c30 = arith.constant 30 : index
    %165 = memref.load %arg6[%c30] : memref<98xf32, #tpu.memory_space<smem>>
    %c31 = arith.constant 31 : index
    %166 = memref.load %arg6[%c31] : memref<98xf32, #tpu.memory_space<smem>>
    %c32 = arith.constant 32 : index
    %167 = memref.load %arg6[%c32] : memref<98xf32, #tpu.memory_space<smem>>
    %c33 = arith.constant 33 : index
    %168 = memref.load %arg6[%c33] : memref<98xf32, #tpu.memory_space<smem>>
    %c34 = arith.constant 34 : index
    %169 = memref.load %arg6[%c34] : memref<98xf32, #tpu.memory_space<smem>>
    %c35 = arith.constant 35 : index
    %170 = memref.load %arg6[%c35] : memref<98xf32, #tpu.memory_space<smem>>
    %c36 = arith.constant 36 : index
    %171 = memref.load %arg6[%c36] : memref<98xf32, #tpu.memory_space<smem>>
    %c37 = arith.constant 37 : index
    %172 = memref.load %arg6[%c37] : memref<98xf32, #tpu.memory_space<smem>>
    %c38 = arith.constant 38 : index
    %173 = memref.load %arg6[%c38] : memref<98xf32, #tpu.memory_space<smem>>
    %c39 = arith.constant 39 : index
    %174 = memref.load %arg6[%c39] : memref<98xf32, #tpu.memory_space<smem>>
    %c40 = arith.constant 40 : index
    %175 = memref.load %arg6[%c40] : memref<98xf32, #tpu.memory_space<smem>>
    %c41 = arith.constant 41 : index
    %176 = memref.load %arg6[%c41] : memref<98xf32, #tpu.memory_space<smem>>
    %c42 = arith.constant 42 : index
    %177 = memref.load %arg6[%c42] : memref<98xf32, #tpu.memory_space<smem>>
    %c43 = arith.constant 43 : index
    %178 = memref.load %arg6[%c43] : memref<98xf32, #tpu.memory_space<smem>>
    %c44 = arith.constant 44 : index
    %179 = memref.load %arg6[%c44] : memref<98xf32, #tpu.memory_space<smem>>
    %c45 = arith.constant 45 : index
    %180 = memref.load %arg6[%c45] : memref<98xf32, #tpu.memory_space<smem>>
    %c46 = arith.constant 46 : index
    %181 = memref.load %arg6[%c46] : memref<98xf32, #tpu.memory_space<smem>>
    %c47 = arith.constant 47 : index
    %182 = memref.load %arg6[%c47] : memref<98xf32, #tpu.memory_space<smem>>
    %c48 = arith.constant 48 : index
    %183 = memref.load %arg6[%c48] : memref<98xf32, #tpu.memory_space<smem>>
    %c49 = arith.constant 49 : index
    %184 = memref.load %arg6[%c49] : memref<98xf32, #tpu.memory_space<smem>>
    %c50 = arith.constant 50 : index
    %185 = memref.load %arg6[%c50] : memref<98xf32, #tpu.memory_space<smem>>
    %c51 = arith.constant 51 : index
    %186 = memref.load %arg6[%c51] : memref<98xf32, #tpu.memory_space<smem>>
    %c52 = arith.constant 52 : index
    %187 = memref.load %arg6[%c52] : memref<98xf32, #tpu.memory_space<smem>>
    %c53 = arith.constant 53 : index
    %188 = memref.load %arg6[%c53] : memref<98xf32, #tpu.memory_space<smem>>
    %c54 = arith.constant 54 : index
    %189 = memref.load %arg6[%c54] : memref<98xf32, #tpu.memory_space<smem>>
    %c55 = arith.constant 55 : index
    %190 = memref.load %arg6[%c55] : memref<98xf32, #tpu.memory_space<smem>>
    %c56 = arith.constant 56 : index
    %191 = memref.load %arg6[%c56] : memref<98xf32, #tpu.memory_space<smem>>
    %c57 = arith.constant 57 : index
    %192 = memref.load %arg6[%c57] : memref<98xf32, #tpu.memory_space<smem>>
    %c58 = arith.constant 58 : index
    %193 = memref.load %arg6[%c58] : memref<98xf32, #tpu.memory_space<smem>>
    %c59 = arith.constant 59 : index
    %194 = memref.load %arg6[%c59] : memref<98xf32, #tpu.memory_space<smem>>
    %c60 = arith.constant 60 : index
    %195 = memref.load %arg6[%c60] : memref<98xf32, #tpu.memory_space<smem>>
    %c61 = arith.constant 61 : index
    %196 = memref.load %arg6[%c61] : memref<98xf32, #tpu.memory_space<smem>>
    %c62 = arith.constant 62 : index
    %197 = memref.load %arg6[%c62] : memref<98xf32, #tpu.memory_space<smem>>
    %c63 = arith.constant 63 : index
    %198 = memref.load %arg6[%c63] : memref<98xf32, #tpu.memory_space<smem>>
    %c64 = arith.constant 64 : index
    %199 = memref.load %arg6[%c64] : memref<98xf32, #tpu.memory_space<smem>>
    %c65 = arith.constant 65 : index
    %200 = memref.load %arg6[%c65] : memref<98xf32, #tpu.memory_space<smem>>
    %c66 = arith.constant 66 : index
    %201 = memref.load %arg6[%c66] : memref<98xf32, #tpu.memory_space<smem>>
    %c67 = arith.constant 67 : index
    %202 = memref.load %arg6[%c67] : memref<98xf32, #tpu.memory_space<smem>>
    %c68 = arith.constant 68 : index
    %203 = memref.load %arg6[%c68] : memref<98xf32, #tpu.memory_space<smem>>
    %c69 = arith.constant 69 : index
    %204 = memref.load %arg6[%c69] : memref<98xf32, #tpu.memory_space<smem>>
    %c70 = arith.constant 70 : index
    %205 = memref.load %arg6[%c70] : memref<98xf32, #tpu.memory_space<smem>>
    %c71 = arith.constant 71 : index
    %206 = memref.load %arg6[%c71] : memref<98xf32, #tpu.memory_space<smem>>
    %c72 = arith.constant 72 : index
    %207 = memref.load %arg6[%c72] : memref<98xf32, #tpu.memory_space<smem>>
    %c73 = arith.constant 73 : index
    %208 = memref.load %arg6[%c73] : memref<98xf32, #tpu.memory_space<smem>>
    %c74 = arith.constant 74 : index
    %209 = memref.load %arg6[%c74] : memref<98xf32, #tpu.memory_space<smem>>
    %c75 = arith.constant 75 : index
    %210 = memref.load %arg6[%c75] : memref<98xf32, #tpu.memory_space<smem>>
    %c76 = arith.constant 76 : index
    %211 = memref.load %arg6[%c76] : memref<98xf32, #tpu.memory_space<smem>>
    %c77 = arith.constant 77 : index
    %212 = memref.load %arg6[%c77] : memref<98xf32, #tpu.memory_space<smem>>
    %c78 = arith.constant 78 : index
    %213 = memref.load %arg6[%c78] : memref<98xf32, #tpu.memory_space<smem>>
    %c79 = arith.constant 79 : index
    %214 = memref.load %arg6[%c79] : memref<98xf32, #tpu.memory_space<smem>>
    %c80 = arith.constant 80 : index
    %215 = memref.load %arg6[%c80] : memref<98xf32, #tpu.memory_space<smem>>
    %c81 = arith.constant 81 : index
    %216 = memref.load %arg6[%c81] : memref<98xf32, #tpu.memory_space<smem>>
    %c82 = arith.constant 82 : index
    %217 = memref.load %arg6[%c82] : memref<98xf32, #tpu.memory_space<smem>>
    %c83 = arith.constant 83 : index
    %218 = memref.load %arg6[%c83] : memref<98xf32, #tpu.memory_space<smem>>
    %c84 = arith.constant 84 : index
    %219 = memref.load %arg6[%c84] : memref<98xf32, #tpu.memory_space<smem>>
    %c85 = arith.constant 85 : index
    %220 = memref.load %arg6[%c85] : memref<98xf32, #tpu.memory_space<smem>>
    %c86 = arith.constant 86 : index
    %221 = memref.load %arg6[%c86] : memref<98xf32, #tpu.memory_space<smem>>
    %c87 = arith.constant 87 : index
    %222 = memref.load %arg6[%c87] : memref<98xf32, #tpu.memory_space<smem>>
    %c88 = arith.constant 88 : index
    %223 = memref.load %arg6[%c88] : memref<98xf32, #tpu.memory_space<smem>>
    %c89 = arith.constant 89 : index
    %224 = memref.load %arg6[%c89] : memref<98xf32, #tpu.memory_space<smem>>
    %c90 = arith.constant 90 : index
    %225 = memref.load %arg6[%c90] : memref<98xf32, #tpu.memory_space<smem>>
    %c91 = arith.constant 91 : index
    %226 = memref.load %arg6[%c91] : memref<98xf32, #tpu.memory_space<smem>>
    %c92 = arith.constant 92 : index
    %227 = memref.load %arg6[%c92] : memref<98xf32, #tpu.memory_space<smem>>
    %c93 = arith.constant 93 : index
    %228 = memref.load %arg6[%c93] : memref<98xf32, #tpu.memory_space<smem>>
    %c94 = arith.constant 94 : index
    %229 = memref.load %arg6[%c94] : memref<98xf32, #tpu.memory_space<smem>>
    %c95 = arith.constant 95 : index
    %230 = memref.load %arg6[%c95] : memref<98xf32, #tpu.memory_space<smem>>
    %c96 = arith.constant 96 : index
    %231 = memref.load %arg6[%c96] : memref<98xf32, #tpu.memory_space<smem>>
    %c97 = arith.constant 97 : index
    %232 = memref.load %arg6[%c97] : memref<98xf32, #tpu.memory_space<smem>>
    %cst_49 = arith.constant 0.000000e+00 : f32
    %233 = vector.broadcast %cst_49 : f32 to vector<2x256xf32>
    %cst_50 = arith.constant 0.000000e+00 : f32
    %234 = vector.broadcast %cst_50 : f32 to vector<2x256xf32>
    %cst_51 = arith.constant 0.000000e+00 : f32
    %235 = vector.broadcast %cst_51 : f32 to vector<2x256xf32>
    %cst_52 = arith.constant 0.000000e+00 : f32
    %236 = vector.broadcast %cst_52 : f32 to vector<2x256xf32>
    %c51_i32 = arith.constant 51 : i32
    %237 = tpu.dynamic_rotate %34 by %c51_i32 dim 1 : vector<2x256xf32>, i32 -> vector<2x256xf32>
    %c51_i32_53 = arith.constant 51 : i32
    %238 = tpu.dynamic_rotate %30 by %c51_i32_53 dim 1 : vector<2x256xf32>, i32 -> vector<2x256xf32>
    %239 = arith.mulf %43, %92 : vector<1x256xf32>
    %240 = vector.broadcast %135 : f32 to vector<1x256xf32>
    %241 = arith.mulf %240, %239 : vector<1x256xf32>
    %242 = vector.broadcast %241 : vector<1x256xf32> to vector<2x256xf32>
    %243 = arith.mulf %242, %237 : vector<2x256xf32>
    %244 = vector.broadcast %184 : f32 to vector<1x256xf32>
    %245 = arith.mulf %244, %239 : vector<1x256xf32>
    %246 = vector.broadcast %245 : vector<1x256xf32> to vector<2x256xf32>
    %247 = arith.mulf %246, %238 : vector<2x256xf32>
    %248 = arith.addf %243, %247 : vector<2x256xf32>
    %249 = arith.addf %233, %248 : vector<2x256xf32>
    %c50_i32 = arith.constant 50 : i32
    %250 = tpu.dynamic_rotate %34 by %c50_i32 dim 1 : vector<2x256xf32>, i32 -> vector<2x256xf32>
    %c50_i32_54 = arith.constant 50 : i32
    %251 = tpu.dynamic_rotate %30 by %c50_i32_54 dim 1 : vector<2x256xf32>, i32 -> vector<2x256xf32>
    %252 = arith.mulf %43, %99 : vector<1x256xf32>
    %253 = vector.broadcast %136 : f32 to vector<1x256xf32>
    %254 = arith.mulf %253, %252 : vector<1x256xf32>
    %255 = vector.broadcast %254 : vector<1x256xf32> to vector<2x256xf32>
    %256 = arith.mulf %255, %250 : vector<2x256xf32>
    %257 = vector.broadcast %185 : f32 to vector<1x256xf32>
    %258 = arith.mulf %257, %252 : vector<1x256xf32>
    %259 = vector.broadcast %258 : vector<1x256xf32> to vector<2x256xf32>
    %260 = arith.mulf %259, %251 : vector<2x256xf32>
    %261 = arith.addf %256, %260 : vector<2x256xf32>
    %262 = arith.addf %234, %261 : vector<2x256xf32>
    %c49_i32 = arith.constant 49 : i32
    %263 = tpu.dynamic_rotate %34 by %c49_i32 dim 1 : vector<2x256xf32>, i32 -> vector<2x256xf32>
    %c49_i32_55 = arith.constant 49 : i32
    %264 = tpu.dynamic_rotate %30 by %c49_i32_55 dim 1 : vector<2x256xf32>, i32 -> vector<2x256xf32>
    %265 = arith.mulf %43, %106 : vector<1x256xf32>
    %266 = vector.broadcast %137 : f32 to vector<1x256xf32>
    %267 = arith.mulf %266, %265 : vector<1x256xf32>
    %268 = vector.broadcast %267 : vector<1x256xf32> to vector<2x256xf32>
    %269 = arith.mulf %268, %263 : vector<2x256xf32>
    %270 = vector.broadcast %186 : f32 to vector<1x256xf32>
    %271 = arith.mulf %270, %265 : vector<1x256xf32>
    %272 = vector.broadcast %271 : vector<1x256xf32> to vector<2x256xf32>
    %273 = arith.mulf %272, %264 : vector<2x256xf32>
    %274 = arith.addf %269, %273 : vector<2x256xf32>
    %275 = arith.addf %235, %274 : vector<2x256xf32>
    %c48_i32 = arith.constant 48 : i32
    %276 = tpu.dynamic_rotate %34 by %c48_i32 dim 1 : vector<2x256xf32>, i32 -> vector<2x256xf32>
    %c48_i32_56 = arith.constant 48 : i32
    %277 = tpu.dynamic_rotate %30 by %c48_i32_56 dim 1 : vector<2x256xf32>, i32 -> vector<2x256xf32>
    %278 = arith.mulf %43, %113 : vector<1x256xf32>
    %279 = vector.broadcast %138 : f32 to vector<1x256xf32>
    %280 = arith.mulf %279, %278 : vector<1x256xf32>
    %281 = vector.broadcast %280 : vector<1x256xf32> to vector<2x256xf32>
    %282 = arith.mulf %281, %276 : vector<2x256xf32>
    %283 = vector.broadcast %187 : f32 to vector<1x256xf32>
    %284 = arith.mulf %283, %278 : vector<1x256xf32>
    %285 = vector.broadcast %284 : vector<1x256xf32> to vector<2x256xf32>
    %286 = arith.mulf %285, %277 : vector<2x256xf32>
    %287 = arith.addf %282, %286 : vector<2x256xf32>
    %288 = arith.addf %236, %287 : vector<2x256xf32>
    %c47_i32 = arith.constant 47 : i32
    %289 = tpu.dynamic_rotate %34 by %c47_i32 dim 1 : vector<2x256xf32>, i32 -> vector<2x256xf32>
    %c47_i32_57 = arith.constant 47 : i32
    %290 = tpu.dynamic_rotate %30 by %c47_i32_57 dim 1 : vector<2x256xf32>, i32 -> vector<2x256xf32>
    %291 = arith.mulf %43, %120 : vector<1x256xf32>
    %292 = vector.broadcast %139 : f32 to vector<1x256xf32>
    %293 = arith.mulf %292, %291 : vector<1x256xf32>
    %294 = vector.broadcast %293 : vector<1x256xf32> to vector<2x256xf32>
    %295 = arith.mulf %294, %289 : vector<2x256xf32>
    %296 = vector.broadcast %188 : f32 to vector<1x256xf32>
    %297 = arith.mulf %296, %291 : vector<1x256xf32>
    %298 = vector.broadcast %297 : vector<1x256xf32> to vector<2x256xf32>
    %299 = arith.mulf %298, %290 : vector<2x256xf32>
    %300 = arith.addf %295, %299 : vector<2x256xf32>
    %301 = arith.addf %249, %300 : vector<2x256xf32>
    %c46_i32 = arith.constant 46 : i32
    %302 = tpu.dynamic_rotate %34 by %c46_i32 dim 1 : vector<2x256xf32>, i32 -> vector<2x256xf32>
    %c46_i32_58 = arith.constant 46 : i32
    %303 = tpu.dynamic_rotate %30 by %c46_i32_58 dim 1 : vector<2x256xf32>, i32 -> vector<2x256xf32>
    %304 = arith.mulf %43, %127 : vector<1x256xf32>
    %305 = vector.broadcast %140 : f32 to vector<1x256xf32>
    %306 = arith.mulf %305, %304 : vector<1x256xf32>
    %307 = vector.broadcast %306 : vector<1x256xf32> to vector<2x256xf32>
    %308 = arith.mulf %307, %302 : vector<2x256xf32>
    %309 = vector.broadcast %189 : f32 to vector<1x256xf32>
    %310 = arith.mulf %309, %304 : vector<1x256xf32>
    %311 = vector.broadcast %310 : vector<1x256xf32> to vector<2x256xf32>
    %312 = arith.mulf %311, %303 : vector<2x256xf32>
    %313 = arith.addf %308, %312 : vector<2x256xf32>
    %314 = arith.addf %262, %313 : vector<2x256xf32>
    %c45_i32 = arith.constant 45 : i32
    %315 = tpu.dynamic_rotate %34 by %c45_i32 dim 1 : vector<2x256xf32>, i32 -> vector<2x256xf32>
    %c45_i32_59 = arith.constant 45 : i32
    %316 = tpu.dynamic_rotate %30 by %c45_i32_59 dim 1 : vector<2x256xf32>, i32 -> vector<2x256xf32>
    %317 = arith.mulf %43, %134 : vector<1x256xf32>
    %318 = vector.broadcast %141 : f32 to vector<1x256xf32>
    %319 = arith.mulf %318, %317 : vector<1x256xf32>
    %320 = vector.broadcast %319 : vector<1x256xf32> to vector<2x256xf32>
    %321 = arith.mulf %320, %315 : vector<2x256xf32>
    %322 = vector.broadcast %190 : f32 to vector<1x256xf32>
    %323 = arith.mulf %322, %317 : vector<1x256xf32>
    %324 = vector.broadcast %323 : vector<1x256xf32> to vector<2x256xf32>
    %325 = arith.mulf %324, %316 : vector<2x256xf32>
    %326 = arith.addf %321, %325 : vector<2x256xf32>
    %327 = arith.addf %275, %326 : vector<2x256xf32>
    %c35_i32 = arith.constant 35 : i32
    %328 = tpu.dynamic_rotate %34 by %c35_i32 dim 1 : vector<2x256xf32>, i32 -> vector<2x256xf32>
    %c35_i32_60 = arith.constant 35 : i32
    %329 = tpu.dynamic_rotate %30 by %c35_i32_60 dim 1 : vector<2x256xf32>, i32 -> vector<2x256xf32>
    %330 = arith.mulf %50, %92 : vector<1x256xf32>
    %331 = vector.broadcast %142 : f32 to vector<1x256xf32>
    %332 = arith.mulf %331, %330 : vector<1x256xf32>
    %333 = vector.broadcast %332 : vector<1x256xf32> to vector<2x256xf32>
    %334 = arith.mulf %333, %328 : vector<2x256xf32>
    %335 = vector.broadcast %191 : f32 to vector<1x256xf32>
    %336 = arith.mulf %335, %330 : vector<1x256xf32>
    %337 = vector.broadcast %336 : vector<1x256xf32> to vector<2x256xf32>
    %338 = arith.mulf %337, %329 : vector<2x256xf32>
    %339 = arith.addf %334, %338 : vector<2x256xf32>
    %340 = arith.addf %288, %339 : vector<2x256xf32>
    %c34_i32 = arith.constant 34 : i32
    %341 = tpu.dynamic_rotate %34 by %c34_i32 dim 1 : vector<2x256xf32>, i32 -> vector<2x256xf32>
    %c34_i32_61 = arith.constant 34 : i32
    %342 = tpu.dynamic_rotate %30 by %c34_i32_61 dim 1 : vector<2x256xf32>, i32 -> vector<2x256xf32>
    %343 = arith.mulf %50, %99 : vector<1x256xf32>
    %344 = vector.broadcast %143 : f32 to vector<1x256xf32>
    %345 = arith.mulf %344, %343 : vector<1x256xf32>
    %346 = vector.broadcast %345 : vector<1x256xf32> to vector<2x256xf32>
    %347 = arith.mulf %346, %341 : vector<2x256xf32>
    %348 = vector.broadcast %192 : f32 to vector<1x256xf32>
    %349 = arith.mulf %348, %343 : vector<1x256xf32>
    %350 = vector.broadcast %349 : vector<1x256xf32> to vector<2x256xf32>
    %351 = arith.mulf %350, %342 : vector<2x256xf32>
    %352 = arith.addf %347, %351 : vector<2x256xf32>
    %353 = arith.addf %301, %352 : vector<2x256xf32>
    %c33_i32 = arith.constant 33 : i32
    %354 = tpu.dynamic_rotate %34 by %c33_i32 dim 1 : vector<2x256xf32>, i32 -> vector<2x256xf32>
    %c33_i32_62 = arith.constant 33 : i32
    %355 = tpu.dynamic_rotate %30 by %c33_i32_62 dim 1 : vector<2x256xf32>, i32 -> vector<2x256xf32>
    %356 = arith.mulf %50, %106 : vector<1x256xf32>
    %357 = vector.broadcast %144 : f32 to vector<1x256xf32>
    %358 = arith.mulf %357, %356 : vector<1x256xf32>
    %359 = vector.broadcast %358 : vector<1x256xf32> to vector<2x256xf32>
    %360 = arith.mulf %359, %354 : vector<2x256xf32>
    %361 = vector.broadcast %193 : f32 to vector<1x256xf32>
    %362 = arith.mulf %361, %356 : vector<1x256xf32>
    %363 = vector.broadcast %362 : vector<1x256xf32> to vector<2x256xf32>
    %364 = arith.mulf %363, %355 : vector<2x256xf32>
    %365 = arith.addf %360, %364 : vector<2x256xf32>
    %366 = arith.addf %314, %365 : vector<2x256xf32>
    %c32_i32 = arith.constant 32 : i32
    %367 = tpu.dynamic_rotate %34 by %c32_i32 dim 1 : vector<2x256xf32>, i32 -> vector<2x256xf32>
    %c32_i32_63 = arith.constant 32 : i32
    %368 = tpu.dynamic_rotate %30 by %c32_i32_63 dim 1 : vector<2x256xf32>, i32 -> vector<2x256xf32>
    %369 = arith.mulf %50, %113 : vector<1x256xf32>
    %370 = vector.broadcast %145 : f32 to vector<1x256xf32>
    %371 = arith.mulf %370, %369 : vector<1x256xf32>
    %372 = vector.broadcast %371 : vector<1x256xf32> to vector<2x256xf32>
    %373 = arith.mulf %372, %367 : vector<2x256xf32>
    %374 = vector.broadcast %194 : f32 to vector<1x256xf32>
    %375 = arith.mulf %374, %369 : vector<1x256xf32>
    %376 = vector.broadcast %375 : vector<1x256xf32> to vector<2x256xf32>
    %377 = arith.mulf %376, %368 : vector<2x256xf32>
    %378 = arith.addf %373, %377 : vector<2x256xf32>
    %379 = arith.addf %327, %378 : vector<2x256xf32>
    %c31_i32 = arith.constant 31 : i32
    %380 = tpu.dynamic_rotate %34 by %c31_i32 dim 1 : vector<2x256xf32>, i32 -> vector<2x256xf32>
    %c31_i32_64 = arith.constant 31 : i32
    %381 = tpu.dynamic_rotate %30 by %c31_i32_64 dim 1 : vector<2x256xf32>, i32 -> vector<2x256xf32>
    %382 = arith.mulf %50, %120 : vector<1x256xf32>
    %383 = vector.broadcast %146 : f32 to vector<1x256xf32>
    %384 = arith.mulf %383, %382 : vector<1x256xf32>
    %385 = vector.broadcast %384 : vector<1x256xf32> to vector<2x256xf32>
    %386 = arith.mulf %385, %380 : vector<2x256xf32>
    %387 = vector.broadcast %195 : f32 to vector<1x256xf32>
    %388 = arith.mulf %387, %382 : vector<1x256xf32>
    %389 = vector.broadcast %388 : vector<1x256xf32> to vector<2x256xf32>
    %390 = arith.mulf %389, %381 : vector<2x256xf32>
    %391 = arith.addf %386, %390 : vector<2x256xf32>
    %392 = arith.addf %340, %391 : vector<2x256xf32>
    %c30_i32 = arith.constant 30 : i32
    %393 = tpu.dynamic_rotate %34 by %c30_i32 dim 1 : vector<2x256xf32>, i32 -> vector<2x256xf32>
    %c30_i32_65 = arith.constant 30 : i32
    %394 = tpu.dynamic_rotate %30 by %c30_i32_65 dim 1 : vector<2x256xf32>, i32 -> vector<2x256xf32>
    %395 = arith.mulf %50, %127 : vector<1x256xf32>
    %396 = vector.broadcast %147 : f32 to vector<1x256xf32>
    %397 = arith.mulf %396, %395 : vector<1x256xf32>
    %398 = vector.broadcast %397 : vector<1x256xf32> to vector<2x256xf32>
    %399 = arith.mulf %398, %393 : vector<2x256xf32>
    %400 = vector.broadcast %196 : f32 to vector<1x256xf32>
    %401 = arith.mulf %400, %395 : vector<1x256xf32>
    %402 = vector.broadcast %401 : vector<1x256xf32> to vector<2x256xf32>
    %403 = arith.mulf %402, %394 : vector<2x256xf32>
    %404 = arith.addf %399, %403 : vector<2x256xf32>
    %405 = arith.addf %353, %404 : vector<2x256xf32>
    %c29_i32 = arith.constant 29 : i32
    %406 = tpu.dynamic_rotate %34 by %c29_i32 dim 1 : vector<2x256xf32>, i32 -> vector<2x256xf32>
    %c29_i32_66 = arith.constant 29 : i32
    %407 = tpu.dynamic_rotate %30 by %c29_i32_66 dim 1 : vector<2x256xf32>, i32 -> vector<2x256xf32>
    %408 = arith.mulf %50, %134 : vector<1x256xf32>
    %409 = vector.broadcast %148 : f32 to vector<1x256xf32>
    %410 = arith.mulf %409, %408 : vector<1x256xf32>
    %411 = vector.broadcast %410 : vector<1x256xf32> to vector<2x256xf32>
    %412 = arith.mulf %411, %406 : vector<2x256xf32>
    %413 = vector.broadcast %197 : f32 to vector<1x256xf32>
    %414 = arith.mulf %413, %408 : vector<1x256xf32>
    %415 = vector.broadcast %414 : vector<1x256xf32> to vector<2x256xf32>
    %416 = arith.mulf %415, %407 : vector<2x256xf32>
    %417 = arith.addf %412, %416 : vector<2x256xf32>
    %418 = arith.addf %366, %417 : vector<2x256xf32>
    %c19_i32 = arith.constant 19 : i32
    %419 = tpu.dynamic_rotate %34 by %c19_i32 dim 1 : vector<2x256xf32>, i32 -> vector<2x256xf32>
    %c19_i32_67 = arith.constant 19 : i32
    %420 = tpu.dynamic_rotate %30 by %c19_i32_67 dim 1 : vector<2x256xf32>, i32 -> vector<2x256xf32>
    %421 = arith.mulf %57, %92 : vector<1x256xf32>
    %422 = vector.broadcast %149 : f32 to vector<1x256xf32>
    %423 = arith.mulf %422, %421 : vector<1x256xf32>
    %424 = vector.broadcast %423 : vector<1x256xf32> to vector<2x256xf32>
    %425 = arith.mulf %424, %419 : vector<2x256xf32>
    %426 = vector.broadcast %198 : f32 to vector<1x256xf32>
    %427 = arith.mulf %426, %421 : vector<1x256xf32>
    %428 = vector.broadcast %427 : vector<1x256xf32> to vector<2x256xf32>
    %429 = arith.mulf %428, %420 : vector<2x256xf32>
    %430 = arith.addf %425, %429 : vector<2x256xf32>
    %431 = arith.addf %379, %430 : vector<2x256xf32>
    %c18_i32 = arith.constant 18 : i32
    %432 = tpu.dynamic_rotate %34 by %c18_i32 dim 1 : vector<2x256xf32>, i32 -> vector<2x256xf32>
    %c18_i32_68 = arith.constant 18 : i32
    %433 = tpu.dynamic_rotate %30 by %c18_i32_68 dim 1 : vector<2x256xf32>, i32 -> vector<2x256xf32>
    %434 = arith.mulf %57, %99 : vector<1x256xf32>
    %435 = vector.broadcast %150 : f32 to vector<1x256xf32>
    %436 = arith.mulf %435, %434 : vector<1x256xf32>
    %437 = vector.broadcast %436 : vector<1x256xf32> to vector<2x256xf32>
    %438 = arith.mulf %437, %432 : vector<2x256xf32>
    %439 = vector.broadcast %199 : f32 to vector<1x256xf32>
    %440 = arith.mulf %439, %434 : vector<1x256xf32>
    %441 = vector.broadcast %440 : vector<1x256xf32> to vector<2x256xf32>
    %442 = arith.mulf %441, %433 : vector<2x256xf32>
    %443 = arith.addf %438, %442 : vector<2x256xf32>
    %444 = arith.addf %392, %443 : vector<2x256xf32>
    %c17_i32 = arith.constant 17 : i32
    %445 = tpu.dynamic_rotate %34 by %c17_i32 dim 1 : vector<2x256xf32>, i32 -> vector<2x256xf32>
    %c17_i32_69 = arith.constant 17 : i32
    %446 = tpu.dynamic_rotate %30 by %c17_i32_69 dim 1 : vector<2x256xf32>, i32 -> vector<2x256xf32>
    %447 = arith.mulf %57, %106 : vector<1x256xf32>
    %448 = vector.broadcast %151 : f32 to vector<1x256xf32>
    %449 = arith.mulf %448, %447 : vector<1x256xf32>
    %450 = vector.broadcast %449 : vector<1x256xf32> to vector<2x256xf32>
    %451 = arith.mulf %450, %445 : vector<2x256xf32>
    %452 = vector.broadcast %200 : f32 to vector<1x256xf32>
    %453 = arith.mulf %452, %447 : vector<1x256xf32>
    %454 = vector.broadcast %453 : vector<1x256xf32> to vector<2x256xf32>
    %455 = arith.mulf %454, %446 : vector<2x256xf32>
    %456 = arith.addf %451, %455 : vector<2x256xf32>
    %457 = arith.addf %405, %456 : vector<2x256xf32>
    %c16_i32 = arith.constant 16 : i32
    %458 = tpu.dynamic_rotate %34 by %c16_i32 dim 1 : vector<2x256xf32>, i32 -> vector<2x256xf32>
    %c16_i32_70 = arith.constant 16 : i32
    %459 = tpu.dynamic_rotate %30 by %c16_i32_70 dim 1 : vector<2x256xf32>, i32 -> vector<2x256xf32>
    %460 = arith.mulf %57, %113 : vector<1x256xf32>
    %461 = vector.broadcast %152 : f32 to vector<1x256xf32>
    %462 = arith.mulf %461, %460 : vector<1x256xf32>
    %463 = vector.broadcast %462 : vector<1x256xf32> to vector<2x256xf32>
    %464 = arith.mulf %463, %458 : vector<2x256xf32>
    %465 = vector.broadcast %201 : f32 to vector<1x256xf32>
    %466 = arith.mulf %465, %460 : vector<1x256xf32>
    %467 = vector.broadcast %466 : vector<1x256xf32> to vector<2x256xf32>
    %468 = arith.mulf %467, %459 : vector<2x256xf32>
    %469 = arith.addf %464, %468 : vector<2x256xf32>
    %470 = arith.addf %418, %469 : vector<2x256xf32>
    %c15_i32 = arith.constant 15 : i32
    %471 = tpu.dynamic_rotate %34 by %c15_i32 dim 1 : vector<2x256xf32>, i32 -> vector<2x256xf32>
    %c15_i32_71 = arith.constant 15 : i32
    %472 = tpu.dynamic_rotate %30 by %c15_i32_71 dim 1 : vector<2x256xf32>, i32 -> vector<2x256xf32>
    %473 = arith.mulf %57, %120 : vector<1x256xf32>
    %474 = vector.broadcast %153 : f32 to vector<1x256xf32>
    %475 = arith.mulf %474, %473 : vector<1x256xf32>
    %476 = vector.broadcast %475 : vector<1x256xf32> to vector<2x256xf32>
    %477 = arith.mulf %476, %471 : vector<2x256xf32>
    %478 = vector.broadcast %202 : f32 to vector<1x256xf32>
    %479 = arith.mulf %478, %473 : vector<1x256xf32>
    %480 = vector.broadcast %479 : vector<1x256xf32> to vector<2x256xf32>
    %481 = arith.mulf %480, %472 : vector<2x256xf32>
    %482 = arith.addf %477, %481 : vector<2x256xf32>
    %483 = arith.addf %431, %482 : vector<2x256xf32>
    %c14_i32 = arith.constant 14 : i32
    %484 = tpu.dynamic_rotate %34 by %c14_i32 dim 1 : vector<2x256xf32>, i32 -> vector<2x256xf32>
    %c14_i32_72 = arith.constant 14 : i32
    %485 = tpu.dynamic_rotate %30 by %c14_i32_72 dim 1 : vector<2x256xf32>, i32 -> vector<2x256xf32>
    %486 = arith.mulf %57, %127 : vector<1x256xf32>
    %487 = vector.broadcast %154 : f32 to vector<1x256xf32>
    %488 = arith.mulf %487, %486 : vector<1x256xf32>
    %489 = vector.broadcast %488 : vector<1x256xf32> to vector<2x256xf32>
    %490 = arith.mulf %489, %484 : vector<2x256xf32>
    %491 = vector.broadcast %203 : f32 to vector<1x256xf32>
    %492 = arith.mulf %491, %486 : vector<1x256xf32>
    %493 = vector.broadcast %492 : vector<1x256xf32> to vector<2x256xf32>
    %494 = arith.mulf %493, %485 : vector<2x256xf32>
    %495 = arith.addf %490, %494 : vector<2x256xf32>
    %496 = arith.addf %444, %495 : vector<2x256xf32>
    %c13_i32 = arith.constant 13 : i32
    %497 = tpu.dynamic_rotate %34 by %c13_i32 dim 1 : vector<2x256xf32>, i32 -> vector<2x256xf32>
    %c13_i32_73 = arith.constant 13 : i32
    %498 = tpu.dynamic_rotate %30 by %c13_i32_73 dim 1 : vector<2x256xf32>, i32 -> vector<2x256xf32>
    %499 = arith.mulf %57, %134 : vector<1x256xf32>
    %500 = vector.broadcast %155 : f32 to vector<1x256xf32>
    %501 = arith.mulf %500, %499 : vector<1x256xf32>
    %502 = vector.broadcast %501 : vector<1x256xf32> to vector<2x256xf32>
    %503 = arith.mulf %502, %497 : vector<2x256xf32>
    %504 = vector.broadcast %204 : f32 to vector<1x256xf32>
    %505 = arith.mulf %504, %499 : vector<1x256xf32>
    %506 = vector.broadcast %505 : vector<1x256xf32> to vector<2x256xf32>
    %507 = arith.mulf %506, %498 : vector<2x256xf32>
    %508 = arith.addf %503, %507 : vector<2x256xf32>
    %509 = arith.addf %457, %508 : vector<2x256xf32>
    %c3_i32 = arith.constant 3 : i32
    %510 = tpu.dynamic_rotate %34 by %c3_i32 dim 1 : vector<2x256xf32>, i32 -> vector<2x256xf32>
    %c3_i32_74 = arith.constant 3 : i32
    %511 = tpu.dynamic_rotate %30 by %c3_i32_74 dim 1 : vector<2x256xf32>, i32 -> vector<2x256xf32>
    %512 = arith.mulf %64, %92 : vector<1x256xf32>
    %513 = vector.broadcast %156 : f32 to vector<1x256xf32>
    %514 = arith.mulf %513, %512 : vector<1x256xf32>
    %515 = vector.broadcast %514 : vector<1x256xf32> to vector<2x256xf32>
    %516 = arith.mulf %515, %510 : vector<2x256xf32>
    %517 = vector.broadcast %205 : f32 to vector<1x256xf32>
    %518 = arith.mulf %517, %512 : vector<1x256xf32>
    %519 = vector.broadcast %518 : vector<1x256xf32> to vector<2x256xf32>
    %520 = arith.mulf %519, %511 : vector<2x256xf32>
    %521 = arith.addf %516, %520 : vector<2x256xf32>
    %522 = arith.addf %470, %521 : vector<2x256xf32>
    %c2_i32 = arith.constant 2 : i32
    %523 = tpu.dynamic_rotate %34 by %c2_i32 dim 1 : vector<2x256xf32>, i32 -> vector<2x256xf32>
    %c2_i32_75 = arith.constant 2 : i32
    %524 = tpu.dynamic_rotate %30 by %c2_i32_75 dim 1 : vector<2x256xf32>, i32 -> vector<2x256xf32>
    %525 = arith.mulf %64, %99 : vector<1x256xf32>
    %526 = vector.broadcast %157 : f32 to vector<1x256xf32>
    %527 = arith.mulf %526, %525 : vector<1x256xf32>
    %528 = vector.broadcast %527 : vector<1x256xf32> to vector<2x256xf32>
    %529 = arith.mulf %528, %523 : vector<2x256xf32>
    %530 = vector.broadcast %206 : f32 to vector<1x256xf32>
    %531 = arith.mulf %530, %525 : vector<1x256xf32>
    %532 = vector.broadcast %531 : vector<1x256xf32> to vector<2x256xf32>
    %533 = arith.mulf %532, %524 : vector<2x256xf32>
    %534 = arith.addf %529, %533 : vector<2x256xf32>
    %535 = arith.addf %483, %534 : vector<2x256xf32>
    %c1_i32 = arith.constant 1 : i32
    %536 = tpu.dynamic_rotate %34 by %c1_i32 dim 1 : vector<2x256xf32>, i32 -> vector<2x256xf32>
    %c1_i32_76 = arith.constant 1 : i32
    %537 = tpu.dynamic_rotate %30 by %c1_i32_76 dim 1 : vector<2x256xf32>, i32 -> vector<2x256xf32>
    %538 = arith.mulf %64, %106 : vector<1x256xf32>
    %539 = vector.broadcast %158 : f32 to vector<1x256xf32>
    %540 = arith.mulf %539, %538 : vector<1x256xf32>
    %541 = vector.broadcast %540 : vector<1x256xf32> to vector<2x256xf32>
    %542 = arith.mulf %541, %536 : vector<2x256xf32>
    %543 = vector.broadcast %207 : f32 to vector<1x256xf32>
    %544 = arith.mulf %543, %538 : vector<1x256xf32>
    %545 = vector.broadcast %544 : vector<1x256xf32> to vector<2x256xf32>
    %546 = arith.mulf %545, %537 : vector<2x256xf32>
    %547 = arith.addf %542, %546 : vector<2x256xf32>
    %548 = arith.addf %496, %547 : vector<2x256xf32>
    %549 = arith.mulf %64, %113 : vector<1x256xf32>
    %550 = vector.broadcast %159 : f32 to vector<1x256xf32>
    %551 = arith.mulf %550, %549 : vector<1x256xf32>
    %552 = vector.broadcast %551 : vector<1x256xf32> to vector<2x256xf32>
    %553 = arith.mulf %552, %34 : vector<2x256xf32>
    %554 = vector.broadcast %208 : f32 to vector<1x256xf32>
    %555 = arith.mulf %554, %549 : vector<1x256xf32>
    %556 = vector.broadcast %555 : vector<1x256xf32> to vector<2x256xf32>
    %557 = arith.mulf %556, %30 : vector<2x256xf32>
    %558 = arith.addf %553, %557 : vector<2x256xf32>
    %559 = arith.addf %509, %558 : vector<2x256xf32>
    %c255_i32 = arith.constant 255 : i32
    %560 = tpu.dynamic_rotate %34 by %c255_i32 dim 1 : vector<2x256xf32>, i32 -> vector<2x256xf32>
    %c255_i32_77 = arith.constant 255 : i32
    %561 = tpu.dynamic_rotate %30 by %c255_i32_77 dim 1 : vector<2x256xf32>, i32 -> vector<2x256xf32>
    %562 = arith.mulf %64, %120 : vector<1x256xf32>
    %563 = vector.broadcast %160 : f32 to vector<1x256xf32>
    %564 = arith.mulf %563, %562 : vector<1x256xf32>
    %565 = vector.broadcast %564 : vector<1x256xf32> to vector<2x256xf32>
    %566 = arith.mulf %565, %560 : vector<2x256xf32>
    %567 = vector.broadcast %209 : f32 to vector<1x256xf32>
    %568 = arith.mulf %567, %562 : vector<1x256xf32>
    %569 = vector.broadcast %568 : vector<1x256xf32> to vector<2x256xf32>
    %570 = arith.mulf %569, %561 : vector<2x256xf32>
    %571 = arith.addf %566, %570 : vector<2x256xf32>
    %572 = arith.addf %522, %571 : vector<2x256xf32>
    %c254_i32 = arith.constant 254 : i32
    %573 = tpu.dynamic_rotate %34 by %c254_i32 dim 1 : vector<2x256xf32>, i32 -> vector<2x256xf32>
    %c254_i32_78 = arith.constant 254 : i32
    %574 = tpu.dynamic_rotate %30 by %c254_i32_78 dim 1 : vector<2x256xf32>, i32 -> vector<2x256xf32>
    %575 = arith.mulf %64, %127 : vector<1x256xf32>
    %576 = vector.broadcast %161 : f32 to vector<1x256xf32>
    %577 = arith.mulf %576, %575 : vector<1x256xf32>
    %578 = vector.broadcast %577 : vector<1x256xf32> to vector<2x256xf32>
    %579 = arith.mulf %578, %573 : vector<2x256xf32>
    %580 = vector.broadcast %210 : f32 to vector<1x256xf32>
    %581 = arith.mulf %580, %575 : vector<1x256xf32>
    %582 = vector.broadcast %581 : vector<1x256xf32> to vector<2x256xf32>
    %583 = arith.mulf %582, %574 : vector<2x256xf32>
    %584 = arith.addf %579, %583 : vector<2x256xf32>
    %585 = arith.addf %535, %584 : vector<2x256xf32>
    %c253_i32 = arith.constant 253 : i32
    %586 = tpu.dynamic_rotate %34 by %c253_i32 dim 1 : vector<2x256xf32>, i32 -> vector<2x256xf32>
    %c253_i32_79 = arith.constant 253 : i32
    %587 = tpu.dynamic_rotate %30 by %c253_i32_79 dim 1 : vector<2x256xf32>, i32 -> vector<2x256xf32>
    %588 = arith.mulf %64, %134 : vector<1x256xf32>
    %589 = vector.broadcast %162 : f32 to vector<1x256xf32>
    %590 = arith.mulf %589, %588 : vector<1x256xf32>
    %591 = vector.broadcast %590 : vector<1x256xf32> to vector<2x256xf32>
    %592 = arith.mulf %591, %586 : vector<2x256xf32>
    %593 = vector.broadcast %211 : f32 to vector<1x256xf32>
    %594 = arith.mulf %593, %588 : vector<1x256xf32>
    %595 = vector.broadcast %594 : vector<1x256xf32> to vector<2x256xf32>
    %596 = arith.mulf %595, %587 : vector<2x256xf32>
    %597 = arith.addf %592, %596 : vector<2x256xf32>
    %598 = arith.addf %548, %597 : vector<2x256xf32>
    %c243_i32 = arith.constant 243 : i32
    %599 = tpu.dynamic_rotate %34 by %c243_i32 dim 1 : vector<2x256xf32>, i32 -> vector<2x256xf32>
    %c243_i32_80 = arith.constant 243 : i32
    %600 = tpu.dynamic_rotate %30 by %c243_i32_80 dim 1 : vector<2x256xf32>, i32 -> vector<2x256xf32>
    %601 = arith.mulf %71, %92 : vector<1x256xf32>
    %602 = vector.broadcast %163 : f32 to vector<1x256xf32>
    %603 = arith.mulf %602, %601 : vector<1x256xf32>
    %604 = vector.broadcast %603 : vector<1x256xf32> to vector<2x256xf32>
    %605 = arith.mulf %604, %599 : vector<2x256xf32>
    %606 = vector.broadcast %212 : f32 to vector<1x256xf32>
    %607 = arith.mulf %606, %601 : vector<1x256xf32>
    %608 = vector.broadcast %607 : vector<1x256xf32> to vector<2x256xf32>
    %609 = arith.mulf %608, %600 : vector<2x256xf32>
    %610 = arith.addf %605, %609 : vector<2x256xf32>
    %611 = arith.addf %559, %610 : vector<2x256xf32>
    %c242_i32 = arith.constant 242 : i32
    %612 = tpu.dynamic_rotate %34 by %c242_i32 dim 1 : vector<2x256xf32>, i32 -> vector<2x256xf32>
    %c242_i32_81 = arith.constant 242 : i32
    %613 = tpu.dynamic_rotate %30 by %c242_i32_81 dim 1 : vector<2x256xf32>, i32 -> vector<2x256xf32>
    %614 = arith.mulf %71, %99 : vector<1x256xf32>
    %615 = vector.broadcast %164 : f32 to vector<1x256xf32>
    %616 = arith.mulf %615, %614 : vector<1x256xf32>
    %617 = vector.broadcast %616 : vector<1x256xf32> to vector<2x256xf32>
    %618 = arith.mulf %617, %612 : vector<2x256xf32>
    %619 = vector.broadcast %213 : f32 to vector<1x256xf32>
    %620 = arith.mulf %619, %614 : vector<1x256xf32>
    %621 = vector.broadcast %620 : vector<1x256xf32> to vector<2x256xf32>
    %622 = arith.mulf %621, %613 : vector<2x256xf32>
    %623 = arith.addf %618, %622 : vector<2x256xf32>
    %624 = arith.addf %572, %623 : vector<2x256xf32>
    %c241_i32 = arith.constant 241 : i32
    %625 = tpu.dynamic_rotate %34 by %c241_i32 dim 1 : vector<2x256xf32>, i32 -> vector<2x256xf32>
    %c241_i32_82 = arith.constant 241 : i32
    %626 = tpu.dynamic_rotate %30 by %c241_i32_82 dim 1 : vector<2x256xf32>, i32 -> vector<2x256xf32>
    %627 = arith.mulf %71, %106 : vector<1x256xf32>
    %628 = vector.broadcast %165 : f32 to vector<1x256xf32>
    %629 = arith.mulf %628, %627 : vector<1x256xf32>
    %630 = vector.broadcast %629 : vector<1x256xf32> to vector<2x256xf32>
    %631 = arith.mulf %630, %625 : vector<2x256xf32>
    %632 = vector.broadcast %214 : f32 to vector<1x256xf32>
    %633 = arith.mulf %632, %627 : vector<1x256xf32>
    %634 = vector.broadcast %633 : vector<1x256xf32> to vector<2x256xf32>
    %635 = arith.mulf %634, %626 : vector<2x256xf32>
    %636 = arith.addf %631, %635 : vector<2x256xf32>
    %637 = arith.addf %585, %636 : vector<2x256xf32>
    %c240_i32 = arith.constant 240 : i32
    %638 = tpu.dynamic_rotate %34 by %c240_i32 dim 1 : vector<2x256xf32>, i32 -> vector<2x256xf32>
    %c240_i32_83 = arith.constant 240 : i32
    %639 = tpu.dynamic_rotate %30 by %c240_i32_83 dim 1 : vector<2x256xf32>, i32 -> vector<2x256xf32>
    %640 = arith.mulf %71, %113 : vector<1x256xf32>
    %641 = vector.broadcast %166 : f32 to vector<1x256xf32>
    %642 = arith.mulf %641, %640 : vector<1x256xf32>
    %643 = vector.broadcast %642 : vector<1x256xf32> to vector<2x256xf32>
    %644 = arith.mulf %643, %638 : vector<2x256xf32>
    %645 = vector.broadcast %215 : f32 to vector<1x256xf32>
    %646 = arith.mulf %645, %640 : vector<1x256xf32>
    %647 = vector.broadcast %646 : vector<1x256xf32> to vector<2x256xf32>
    %648 = arith.mulf %647, %639 : vector<2x256xf32>
    %649 = arith.addf %644, %648 : vector<2x256xf32>
    %650 = arith.addf %598, %649 : vector<2x256xf32>
    %c239_i32 = arith.constant 239 : i32
    %651 = tpu.dynamic_rotate %34 by %c239_i32 dim 1 : vector<2x256xf32>, i32 -> vector<2x256xf32>
    %c239_i32_84 = arith.constant 239 : i32
    %652 = tpu.dynamic_rotate %30 by %c239_i32_84 dim 1 : vector<2x256xf32>, i32 -> vector<2x256xf32>
    %653 = arith.mulf %71, %120 : vector<1x256xf32>
    %654 = vector.broadcast %167 : f32 to vector<1x256xf32>
    %655 = arith.mulf %654, %653 : vector<1x256xf32>
    %656 = vector.broadcast %655 : vector<1x256xf32> to vector<2x256xf32>
    %657 = arith.mulf %656, %651 : vector<2x256xf32>
    %658 = vector.broadcast %216 : f32 to vector<1x256xf32>
    %659 = arith.mulf %658, %653 : vector<1x256xf32>
    %660 = vector.broadcast %659 : vector<1x256xf32> to vector<2x256xf32>
    %661 = arith.mulf %660, %652 : vector<2x256xf32>
    %662 = arith.addf %657, %661 : vector<2x256xf32>
    %663 = arith.addf %611, %662 : vector<2x256xf32>
    %c238_i32 = arith.constant 238 : i32
    %664 = tpu.dynamic_rotate %34 by %c238_i32 dim 1 : vector<2x256xf32>, i32 -> vector<2x256xf32>
    %c238_i32_85 = arith.constant 238 : i32
    %665 = tpu.dynamic_rotate %30 by %c238_i32_85 dim 1 : vector<2x256xf32>, i32 -> vector<2x256xf32>
    %666 = arith.mulf %71, %127 : vector<1x256xf32>
    %667 = vector.broadcast %168 : f32 to vector<1x256xf32>
    %668 = arith.mulf %667, %666 : vector<1x256xf32>
    %669 = vector.broadcast %668 : vector<1x256xf32> to vector<2x256xf32>
    %670 = arith.mulf %669, %664 : vector<2x256xf32>
    %671 = vector.broadcast %217 : f32 to vector<1x256xf32>
    %672 = arith.mulf %671, %666 : vector<1x256xf32>
    %673 = vector.broadcast %672 : vector<1x256xf32> to vector<2x256xf32>
    %674 = arith.mulf %673, %665 : vector<2x256xf32>
    %675 = arith.addf %670, %674 : vector<2x256xf32>
    %676 = arith.addf %624, %675 : vector<2x256xf32>
    %c237_i32 = arith.constant 237 : i32
    %677 = tpu.dynamic_rotate %34 by %c237_i32 dim 1 : vector<2x256xf32>, i32 -> vector<2x256xf32>
    %c237_i32_86 = arith.constant 237 : i32
    %678 = tpu.dynamic_rotate %30 by %c237_i32_86 dim 1 : vector<2x256xf32>, i32 -> vector<2x256xf32>
    %679 = arith.mulf %71, %134 : vector<1x256xf32>
    %680 = vector.broadcast %169 : f32 to vector<1x256xf32>
    %681 = arith.mulf %680, %679 : vector<1x256xf32>
    %682 = vector.broadcast %681 : vector<1x256xf32> to vector<2x256xf32>
    %683 = arith.mulf %682, %677 : vector<2x256xf32>
    %684 = vector.broadcast %218 : f32 to vector<1x256xf32>
    %685 = arith.mulf %684, %679 : vector<1x256xf32>
    %686 = vector.broadcast %685 : vector<1x256xf32> to vector<2x256xf32>
    %687 = arith.mulf %686, %678 : vector<2x256xf32>
    %688 = arith.addf %683, %687 : vector<2x256xf32>
    %689 = arith.addf %637, %688 : vector<2x256xf32>
    %c227_i32 = arith.constant 227 : i32
    %690 = tpu.dynamic_rotate %34 by %c227_i32 dim 1 : vector<2x256xf32>, i32 -> vector<2x256xf32>
    %c227_i32_87 = arith.constant 227 : i32
    %691 = tpu.dynamic_rotate %30 by %c227_i32_87 dim 1 : vector<2x256xf32>, i32 -> vector<2x256xf32>
    %692 = arith.mulf %78, %92 : vector<1x256xf32>
    %693 = vector.broadcast %170 : f32 to vector<1x256xf32>
    %694 = arith.mulf %693, %692 : vector<1x256xf32>
    %695 = vector.broadcast %694 : vector<1x256xf32> to vector<2x256xf32>
    %696 = arith.mulf %695, %690 : vector<2x256xf32>
    %697 = vector.broadcast %219 : f32 to vector<1x256xf32>
    %698 = arith.mulf %697, %692 : vector<1x256xf32>
    %699 = vector.broadcast %698 : vector<1x256xf32> to vector<2x256xf32>
    %700 = arith.mulf %699, %691 : vector<2x256xf32>
    %701 = arith.addf %696, %700 : vector<2x256xf32>
    %702 = arith.addf %650, %701 : vector<2x256xf32>
    %c226_i32 = arith.constant 226 : i32
    %703 = tpu.dynamic_rotate %34 by %c226_i32 dim 1 : vector<2x256xf32>, i32 -> vector<2x256xf32>
    %c226_i32_88 = arith.constant 226 : i32
    %704 = tpu.dynamic_rotate %30 by %c226_i32_88 dim 1 : vector<2x256xf32>, i32 -> vector<2x256xf32>
    %705 = arith.mulf %78, %99 : vector<1x256xf32>
    %706 = vector.broadcast %171 : f32 to vector<1x256xf32>
    %707 = arith.mulf %706, %705 : vector<1x256xf32>
    %708 = vector.broadcast %707 : vector<1x256xf32> to vector<2x256xf32>
    %709 = arith.mulf %708, %703 : vector<2x256xf32>
    %710 = vector.broadcast %220 : f32 to vector<1x256xf32>
    %711 = arith.mulf %710, %705 : vector<1x256xf32>
    %712 = vector.broadcast %711 : vector<1x256xf32> to vector<2x256xf32>
    %713 = arith.mulf %712, %704 : vector<2x256xf32>
    %714 = arith.addf %709, %713 : vector<2x256xf32>
    %715 = arith.addf %663, %714 : vector<2x256xf32>
    %c225_i32 = arith.constant 225 : i32
    %716 = tpu.dynamic_rotate %34 by %c225_i32 dim 1 : vector<2x256xf32>, i32 -> vector<2x256xf32>
    %c225_i32_89 = arith.constant 225 : i32
    %717 = tpu.dynamic_rotate %30 by %c225_i32_89 dim 1 : vector<2x256xf32>, i32 -> vector<2x256xf32>
    %718 = arith.mulf %78, %106 : vector<1x256xf32>
    %719 = vector.broadcast %172 : f32 to vector<1x256xf32>
    %720 = arith.mulf %719, %718 : vector<1x256xf32>
    %721 = vector.broadcast %720 : vector<1x256xf32> to vector<2x256xf32>
    %722 = arith.mulf %721, %716 : vector<2x256xf32>
    %723 = vector.broadcast %221 : f32 to vector<1x256xf32>
    %724 = arith.mulf %723, %718 : vector<1x256xf32>
    %725 = vector.broadcast %724 : vector<1x256xf32> to vector<2x256xf32>
    %726 = arith.mulf %725, %717 : vector<2x256xf32>
    %727 = arith.addf %722, %726 : vector<2x256xf32>
    %728 = arith.addf %676, %727 : vector<2x256xf32>
    %c224_i32 = arith.constant 224 : i32
    %729 = tpu.dynamic_rotate %34 by %c224_i32 dim 1 : vector<2x256xf32>, i32 -> vector<2x256xf32>
    %c224_i32_90 = arith.constant 224 : i32
    %730 = tpu.dynamic_rotate %30 by %c224_i32_90 dim 1 : vector<2x256xf32>, i32 -> vector<2x256xf32>
    %731 = arith.mulf %78, %113 : vector<1x256xf32>
    %732 = vector.broadcast %173 : f32 to vector<1x256xf32>
    %733 = arith.mulf %732, %731 : vector<1x256xf32>
    %734 = vector.broadcast %733 : vector<1x256xf32> to vector<2x256xf32>
    %735 = arith.mulf %734, %729 : vector<2x256xf32>
    %736 = vector.broadcast %222 : f32 to vector<1x256xf32>
    %737 = arith.mulf %736, %731 : vector<1x256xf32>
    %738 = vector.broadcast %737 : vector<1x256xf32> to vector<2x256xf32>
    %739 = arith.mulf %738, %730 : vector<2x256xf32>
    %740 = arith.addf %735, %739 : vector<2x256xf32>
    %741 = arith.addf %689, %740 : vector<2x256xf32>
    %c223_i32 = arith.constant 223 : i32
    %742 = tpu.dynamic_rotate %34 by %c223_i32 dim 1 : vector<2x256xf32>, i32 -> vector<2x256xf32>
    %c223_i32_91 = arith.constant 223 : i32
    %743 = tpu.dynamic_rotate %30 by %c223_i32_91 dim 1 : vector<2x256xf32>, i32 -> vector<2x256xf32>
    %744 = arith.mulf %78, %120 : vector<1x256xf32>
    %745 = vector.broadcast %174 : f32 to vector<1x256xf32>
    %746 = arith.mulf %745, %744 : vector<1x256xf32>
    %747 = vector.broadcast %746 : vector<1x256xf32> to vector<2x256xf32>
    %748 = arith.mulf %747, %742 : vector<2x256xf32>
    %749 = vector.broadcast %223 : f32 to vector<1x256xf32>
    %750 = arith.mulf %749, %744 : vector<1x256xf32>
    %751 = vector.broadcast %750 : vector<1x256xf32> to vector<2x256xf32>
    %752 = arith.mulf %751, %743 : vector<2x256xf32>
    %753 = arith.addf %748, %752 : vector<2x256xf32>
    %754 = arith.addf %702, %753 : vector<2x256xf32>
    %c222_i32 = arith.constant 222 : i32
    %755 = tpu.dynamic_rotate %34 by %c222_i32 dim 1 : vector<2x256xf32>, i32 -> vector<2x256xf32>
    %c222_i32_92 = arith.constant 222 : i32
    %756 = tpu.dynamic_rotate %30 by %c222_i32_92 dim 1 : vector<2x256xf32>, i32 -> vector<2x256xf32>
    %757 = arith.mulf %78, %127 : vector<1x256xf32>
    %758 = vector.broadcast %175 : f32 to vector<1x256xf32>
    %759 = arith.mulf %758, %757 : vector<1x256xf32>
    %760 = vector.broadcast %759 : vector<1x256xf32> to vector<2x256xf32>
    %761 = arith.mulf %760, %755 : vector<2x256xf32>
    %762 = vector.broadcast %224 : f32 to vector<1x256xf32>
    %763 = arith.mulf %762, %757 : vector<1x256xf32>
    %764 = vector.broadcast %763 : vector<1x256xf32> to vector<2x256xf32>
    %765 = arith.mulf %764, %756 : vector<2x256xf32>
    %766 = arith.addf %761, %765 : vector<2x256xf32>
    %767 = arith.addf %715, %766 : vector<2x256xf32>
    %c221_i32 = arith.constant 221 : i32
    %768 = tpu.dynamic_rotate %34 by %c221_i32 dim 1 : vector<2x256xf32>, i32 -> vector<2x256xf32>
    %c221_i32_93 = arith.constant 221 : i32
    %769 = tpu.dynamic_rotate %30 by %c221_i32_93 dim 1 : vector<2x256xf32>, i32 -> vector<2x256xf32>
    %770 = arith.mulf %78, %134 : vector<1x256xf32>
    %771 = vector.broadcast %176 : f32 to vector<1x256xf32>
    %772 = arith.mulf %771, %770 : vector<1x256xf32>
    %773 = vector.broadcast %772 : vector<1x256xf32> to vector<2x256xf32>
    %774 = arith.mulf %773, %768 : vector<2x256xf32>
    %775 = vector.broadcast %225 : f32 to vector<1x256xf32>
    %776 = arith.mulf %775, %770 : vector<1x256xf32>
    %777 = vector.broadcast %776 : vector<1x256xf32> to vector<2x256xf32>
    %778 = arith.mulf %777, %769 : vector<2x256xf32>
    %779 = arith.addf %774, %778 : vector<2x256xf32>
    %780 = arith.addf %728, %779 : vector<2x256xf32>
    %c211_i32 = arith.constant 211 : i32
    %781 = tpu.dynamic_rotate %34 by %c211_i32 dim 1 : vector<2x256xf32>, i32 -> vector<2x256xf32>
    %c211_i32_94 = arith.constant 211 : i32
    %782 = tpu.dynamic_rotate %30 by %c211_i32_94 dim 1 : vector<2x256xf32>, i32 -> vector<2x256xf32>
    %783 = arith.mulf %85, %92 : vector<1x256xf32>
    %784 = vector.broadcast %177 : f32 to vector<1x256xf32>
    %785 = arith.mulf %784, %783 : vector<1x256xf32>
    %786 = vector.broadcast %785 : vector<1x256xf32> to vector<2x256xf32>
    %787 = arith.mulf %786, %781 : vector<2x256xf32>
    %788 = vector.broadcast %226 : f32 to vector<1x256xf32>
    %789 = arith.mulf %788, %783 : vector<1x256xf32>
    %790 = vector.broadcast %789 : vector<1x256xf32> to vector<2x256xf32>
    %791 = arith.mulf %790, %782 : vector<2x256xf32>
    %792 = arith.addf %787, %791 : vector<2x256xf32>
    %793 = arith.addf %741, %792 : vector<2x256xf32>
    %c210_i32 = arith.constant 210 : i32
    %794 = tpu.dynamic_rotate %34 by %c210_i32 dim 1 : vector<2x256xf32>, i32 -> vector<2x256xf32>
    %c210_i32_95 = arith.constant 210 : i32
    %795 = tpu.dynamic_rotate %30 by %c210_i32_95 dim 1 : vector<2x256xf32>, i32 -> vector<2x256xf32>
    %796 = arith.mulf %85, %99 : vector<1x256xf32>
    %797 = vector.broadcast %178 : f32 to vector<1x256xf32>
    %798 = arith.mulf %797, %796 : vector<1x256xf32>
    %799 = vector.broadcast %798 : vector<1x256xf32> to vector<2x256xf32>
    %800 = arith.mulf %799, %794 : vector<2x256xf32>
    %801 = vector.broadcast %227 : f32 to vector<1x256xf32>
    %802 = arith.mulf %801, %796 : vector<1x256xf32>
    %803 = vector.broadcast %802 : vector<1x256xf32> to vector<2x256xf32>
    %804 = arith.mulf %803, %795 : vector<2x256xf32>
    %805 = arith.addf %800, %804 : vector<2x256xf32>
    %806 = arith.addf %754, %805 : vector<2x256xf32>
    %c209_i32 = arith.constant 209 : i32
    %807 = tpu.dynamic_rotate %34 by %c209_i32 dim 1 : vector<2x256xf32>, i32 -> vector<2x256xf32>
    %c209_i32_96 = arith.constant 209 : i32
    %808 = tpu.dynamic_rotate %30 by %c209_i32_96 dim 1 : vector<2x256xf32>, i32 -> vector<2x256xf32>
    %809 = arith.mulf %85, %106 : vector<1x256xf32>
    %810 = vector.broadcast %179 : f32 to vector<1x256xf32>
    %811 = arith.mulf %810, %809 : vector<1x256xf32>
    %812 = vector.broadcast %811 : vector<1x256xf32> to vector<2x256xf32>
    %813 = arith.mulf %812, %807 : vector<2x256xf32>
    %814 = vector.broadcast %228 : f32 to vector<1x256xf32>
    %815 = arith.mulf %814, %809 : vector<1x256xf32>
    %816 = vector.broadcast %815 : vector<1x256xf32> to vector<2x256xf32>
    %817 = arith.mulf %816, %808 : vector<2x256xf32>
    %818 = arith.addf %813, %817 : vector<2x256xf32>
    %819 = arith.addf %767, %818 : vector<2x256xf32>
    %c208_i32 = arith.constant 208 : i32
    %820 = tpu.dynamic_rotate %34 by %c208_i32 dim 1 : vector<2x256xf32>, i32 -> vector<2x256xf32>
    %c208_i32_97 = arith.constant 208 : i32
    %821 = tpu.dynamic_rotate %30 by %c208_i32_97 dim 1 : vector<2x256xf32>, i32 -> vector<2x256xf32>
    %822 = arith.mulf %85, %113 : vector<1x256xf32>
    %823 = vector.broadcast %180 : f32 to vector<1x256xf32>
    %824 = arith.mulf %823, %822 : vector<1x256xf32>
    %825 = vector.broadcast %824 : vector<1x256xf32> to vector<2x256xf32>
    %826 = arith.mulf %825, %820 : vector<2x256xf32>
    %827 = vector.broadcast %229 : f32 to vector<1x256xf32>
    %828 = arith.mulf %827, %822 : vector<1x256xf32>
    %829 = vector.broadcast %828 : vector<1x256xf32> to vector<2x256xf32>
    %830 = arith.mulf %829, %821 : vector<2x256xf32>
    %831 = arith.addf %826, %830 : vector<2x256xf32>
    %832 = arith.addf %780, %831 : vector<2x256xf32>
    %c207_i32 = arith.constant 207 : i32
    %833 = tpu.dynamic_rotate %34 by %c207_i32 dim 1 : vector<2x256xf32>, i32 -> vector<2x256xf32>
    %c207_i32_98 = arith.constant 207 : i32
    %834 = tpu.dynamic_rotate %30 by %c207_i32_98 dim 1 : vector<2x256xf32>, i32 -> vector<2x256xf32>
    %835 = arith.mulf %85, %120 : vector<1x256xf32>
    %836 = vector.broadcast %181 : f32 to vector<1x256xf32>
    %837 = arith.mulf %836, %835 : vector<1x256xf32>
    %838 = vector.broadcast %837 : vector<1x256xf32> to vector<2x256xf32>
    %839 = arith.mulf %838, %833 : vector<2x256xf32>
    %840 = vector.broadcast %230 : f32 to vector<1x256xf32>
    %841 = arith.mulf %840, %835 : vector<1x256xf32>
    %842 = vector.broadcast %841 : vector<1x256xf32> to vector<2x256xf32>
    %843 = arith.mulf %842, %834 : vector<2x256xf32>
    %844 = arith.addf %839, %843 : vector<2x256xf32>
    %845 = arith.addf %793, %844 : vector<2x256xf32>
    %c206_i32 = arith.constant 206 : i32
    %846 = tpu.dynamic_rotate %34 by %c206_i32 dim 1 : vector<2x256xf32>, i32 -> vector<2x256xf32>
    %c206_i32_99 = arith.constant 206 : i32
    %847 = tpu.dynamic_rotate %30 by %c206_i32_99 dim 1 : vector<2x256xf32>, i32 -> vector<2x256xf32>
    %848 = arith.mulf %85, %127 : vector<1x256xf32>
    %849 = vector.broadcast %182 : f32 to vector<1x256xf32>
    %850 = arith.mulf %849, %848 : vector<1x256xf32>
    %851 = vector.broadcast %850 : vector<1x256xf32> to vector<2x256xf32>
    %852 = arith.mulf %851, %846 : vector<2x256xf32>
    %853 = vector.broadcast %231 : f32 to vector<1x256xf32>
    %854 = arith.mulf %853, %848 : vector<1x256xf32>
    %855 = vector.broadcast %854 : vector<1x256xf32> to vector<2x256xf32>
    %856 = arith.mulf %855, %847 : vector<2x256xf32>
    %857 = arith.addf %852, %856 : vector<2x256xf32>
    %858 = arith.addf %806, %857 : vector<2x256xf32>
    %c205_i32 = arith.constant 205 : i32
    %859 = tpu.dynamic_rotate %34 by %c205_i32 dim 1 : vector<2x256xf32>, i32 -> vector<2x256xf32>
    %c205_i32_100 = arith.constant 205 : i32
    %860 = tpu.dynamic_rotate %30 by %c205_i32_100 dim 1 : vector<2x256xf32>, i32 -> vector<2x256xf32>
    %861 = arith.mulf %85, %134 : vector<1x256xf32>
    %862 = vector.broadcast %183 : f32 to vector<1x256xf32>
    %863 = arith.mulf %862, %861 : vector<1x256xf32>
    %864 = vector.broadcast %863 : vector<1x256xf32> to vector<2x256xf32>
    %865 = arith.mulf %864, %859 : vector<2x256xf32>
    %866 = vector.broadcast %232 : f32 to vector<1x256xf32>
    %867 = arith.mulf %866, %861 : vector<1x256xf32>
    %868 = vector.broadcast %867 : vector<1x256xf32> to vector<2x256xf32>
    %869 = arith.mulf %868, %860 : vector<2x256xf32>
    %870 = arith.addf %865, %869 : vector<2x256xf32>
    %871 = arith.addf %819, %870 : vector<2x256xf32>
    %872 = arith.addf %871, %832 : vector<2x256xf32>
    %873 = arith.addf %872, %845 : vector<2x256xf32>
    %874 = arith.addf %873, %858 : vector<2x256xf32>
    %875 = arith.negf %874 : vector<2x256xf32>
    %876 = math.exp %875 : vector<2x256xf32>
    %cst_101 = arith.constant 1.000000e+00 : f32
    %877 = vector.broadcast %cst_101 : f32 to vector<2x256xf32>
    %878 = arith.addf %877, %876 : vector<2x256xf32>
    %879 = arith.divf %877, %878 : vector<2x256xf32>
    %880 = vector.shape_cast %19 : vector<2x32xf32> to vector<2x32x1xf32>
    %881 = vector.broadcast %880 : vector<2x32x1xf32> to vector<2x32x256xf32>
    %882 = arith.mulf %0, %881 : vector<2x32x256xf32>
    %883 = vector.shape_cast %879 : vector<2x256xf32> to vector<2x1x256xf32>
    %884 = vector.broadcast %883 : vector<2x1x256xf32> to vector<2x32x256xf32>
    %885 = arith.mulf %882, %884 : vector<2x32x256xf32>
    %c0_102 = arith.constant 0 : index
    %c0_103 = arith.constant 0 : index
    %c0_104 = arith.constant 0 : index
    %886 = vector.load %arg7[%c0_102, %c0_103, %c0_104] : memref<2x32x256xf32, #tpu.memory_space<vmem>>, vector<2x32x256xf32>
    tpu.vector_store %arg7[%c0_102, %c0_103, %c0_104], %885 {strides = array<i32>} : memref<2x32x256xf32, #tpu.memory_space<vmem>>, vector<2x32x256xf32>,
    return
  }
  func.func @transform_0(%arg0: i32) -> (i32, i32, i32) {
    %c0_i32 = arith.constant 0 : i32
    %c0_i32_0 = arith.constant 0 : i32
    %c0_i32_1 = arith.constant 0 : i32
    return %arg0, %c0_i32, %c0_i32_0 : i32, i32, i32
  }
  func.func @transform_1(%arg0: i32) -> (i32, i32) {
    %c0_i32 = arith.constant 0 : i32
    %c0_i32_0 = arith.constant 0 : i32
    %c0_i32_1 = arith.constant 0 : i32
    return %c0_i32, %c0_i32_0 : i32, i32
  }
  func.func @transform_2(%arg0: i32) -> (i32, i32) {
    %c0_i32 = arith.constant 0 : i32
    %c0_i32_0 = arith.constant 0 : i32
    %c0_i32_1 = arith.constant 0 : i32
    return %c0_i32, %c0_i32_0 : i32, i32
  }
  func.func @transform_3(%arg0: i32) -> (i32, i32) {
    %c0_i32 = arith.constant 0 : i32
    %c0_i32_0 = arith.constant 0 : i32
    %c0_i32_1 = arith.constant 0 : i32
    return %c0_i32, %c0_i32_0 : i32, i32
  }
  func.func @transform_4(%arg0: i32) -> (i32, i32) {
    %c0_i32 = arith.constant 0 : i32
    %c0_i32_0 = arith.constant 0 : i32
    %c0_i32_1 = arith.constant 0 : i32
    return %c0_i32, %c0_i32_0 : i32, i32
  }
  func.func @transform_5(%arg0: i32) -> i32 {
    %c0_i32 = arith.constant 0 : i32
    %c0_i32_0 = arith.constant 0 : i32
    return %c0_i32 : i32
  }
  func.func @transform_6(%arg0: i32) -> (i32, i32, i32) {
    %c0_i32 = arith.constant 0 : i32
    %c0_i32_0 = arith.constant 0 : i32
    %c0_i32_1 = arith.constant 0 : i32
    return %arg0, %c0_i32, %c0_i32_0 : i32, i32, i32
  }
}

</mosaic_0001>

<llo_original>
// kernel: tpu_custom_call.1
$region0: #{tpu_custom_call.1}
  #allocation0 [shape = 'u32[]', space=smem, size = 0x4, offset = 0x4, fixed_abs, tag = 'smem constant byte address 0x4 - core index']
  #allocation1 [shape = 'u32[144,128]{1,0:T(1,128)}', space=vmem, size = 0x12000, scoped, tag = 'internal scratch']
  %s0 = inlined_call_operand.hbm [shape: f32[2,32,256], index: 0, kind: input, shape index: {}]
  %s1 = inlined_call_operand.vmem [shape: f32[32,2], index: 1, kind: input, shape index: {}]
  %s2 = inlined_call_operand.vmem [shape: f32[2,32], index: 2, kind: input, shape index: {}]
  %s3 = inlined_call_operand.vmem [shape: f32[1,256], index: 3, kind: input, shape index: {}]
  %s4 = inlined_call_operand.vmem [shape: f32[1,256], index: 4, kind: input, shape index: {}]
  %s5 = inlined_call_operand.vmem [shape: f32[98], index: 5, kind: input, shape index: {}]
  %s6 = inlined_call_operand.hbm [shape: f32[2,32,256], index: 6, kind: output, shape index: {}]
  %s7 = sld [smem:[#allocation0]]
  $region42: #{tpu_custom_call.1} parent=0
    _
  %s9 = ssub.s32 1, %s7
  %s10 = scalar_select 0, %s9, %s7
  $region1: #{tpu_custom_call.1} parent=0
    #allocation2 [shape = 'u8[65536]{0}', space=vmem, size = 0x10000, scoped, tag = 'input window, operand 0, single buffered']
    #allocation3 [shape = 's32[1]{0}', space=sflag, size = 0x4, scoped, tag = 'scoped memory for tpu_custom_call.1']
    #allocation4 [shape = 's32[1]{0}', space=sflag, size = 0x4, scoped, tag = 'scoped memory for tpu_custom_call.1']
    #allocation5 [shape = 's32[1]{0}', space=sflag, size = 0x4, scoped, tag = 'scoped memory for tpu_custom_call.1']
    #allocation6 [shape = 'u8[512]{0}', space=smem, size = 0x200, scoped, tag = 'input window, operand 5, single buffered']
    #allocation7 [shape = 'u8[65536]{0}', space=vmem, size = 0x10000, scoped, tag = 'output window, operand 0, single buffered']
    %11 = vsyncpa [#allocation3], 0
    %12 = vsyncpa [#allocation5], 0
    %13 = vsyncpa [#allocation4], 0
    // Predicated region
    $region2: #{tpu_custom_call.1} parent=1 // pred_check
      _
    $region3: #{tpu_custom_call.1} parent=1 // pred_check_branch
      %15 = sbr.rel (0) target = $region5
    $region4: #{tpu_custom_call.1} parent=1 // pred_region
      %s17 = ssub.s32 2048, 2048
      %18 = vsyncadd [#allocation3], %s17
      %s19 = sshll.u32 [#allocation2], 4
      %s20 = int_to_ptr.vmem [resolvable:$true] %s19
      %25 = dma.hbm_to_vmem [thread:$0]  %s0, 2048, %s20, [#allocation3], 256, 256, 16
    $region5: #{tpu_custom_call.1} parent=1 // pred_fallthru
      _
    // Predicated region
    $region6: #{tpu_custom_call.1} parent=1 // pred_check
      _
    $region7: #{tpu_custom_call.1} parent=1 // pred_check_branch
      %27 = sbr.rel (0) target = $region9
    $region8: #{tpu_custom_call.1} parent=1 // pred_region
      _
    $region9: #{tpu_custom_call.1} parent=1 // pred_fallthru
      _
    // Predicated region
    $region10: #{tpu_custom_call.1} parent=1 // pred_check
      _
    $region11: #{tpu_custom_call.1} parent=1 // pred_check_branch
      %29 = sbr.rel (0) target = $region13
    $region12: #{tpu_custom_call.1} parent=1 // pred_region
      _
    $region13: #{tpu_custom_call.1} parent=1 // pred_fallthru
      _
    // Predicated region
    $region14: #{tpu_custom_call.1} parent=1 // pred_check
      _
    $region15: #{tpu_custom_call.1} parent=1 // pred_check_branch
      %31 = sbr.rel (0) target = $region17
    $region16: #{tpu_custom_call.1} parent=1 // pred_region
      _
    $region17: #{tpu_custom_call.1} parent=1 // pred_fallthru
      _
    // Predicated region
    $region18: #{tpu_custom_call.1} parent=1 // pred_check
      _
    $region19: #{tpu_custom_call.1} parent=1 // pred_check_branch
      %33 = sbr.rel (0) target = $region21
    $region20: #{tpu_custom_call.1} parent=1 // pred_region
      _
    $region21: #{tpu_custom_call.1} parent=1 // pred_fallthru
      _
    // Predicated region
    $region22: #{tpu_custom_call.1} parent=1 // pred_check
      _
    $region23: #{tpu_custom_call.1} parent=1 // pred_check_branch
      %35 = sbr.rel (0) target = $region25
    $region24: #{tpu_custom_call.1} parent=1 // pred_region
      %s37 = ssub.s32 16, 16
      %38 = vsyncadd [#allocation5], %s37
      %s40 = sshll.u32 %s5, 4
      %s41 = int_to_ptr.vmem [resolvable:$true] %s40
      %43 = dma.vmem_to_smem %s41, 16, [#allocation6], [#allocation5]
    $region25: #{tpu_custom_call.1} parent=1 // pred_fallthru
      _
    // Predicated region
    $region26: #{tpu_custom_call.1} parent=1 // pred_check
      _
    $region27: #{tpu_custom_call.1} parent=1 // pred_check_branch
      %45 = sbr.rel (0) target = $region29
    $region28: #{tpu_custom_call.1} parent=1 // pred_region
      %46 = dma.done [#allocation3], 2048
    $region29: #{tpu_custom_call.1} parent=1 // pred_fallthru
      _
    // Predicated region
    $region30: #{tpu_custom_call.1} parent=1 // pred_check
      _
    $region31: #{tpu_custom_call.1} parent=1 // pred_check_branch
      %48 = sbr.rel (0) target = $region33
    $region32: #{tpu_custom_call.1} parent=1 // pred_region
      %49 = dma.done [#allocation5], 16
    $region33: #{tpu_custom_call.1} parent=1 // pred_fallthru
      _
    %50 = sfence
    %v51 = vld [vmem:[#allocation2] sm:$0xff]
    %v52 = vld [vmem:[#allocation2 + $0x8] sm:$0xff]
    %v53 = vld [vmem:[#allocation2 + $0x10] sm:$0xff]
    %v54 = vld [vmem:[#allocation2 + $0x18] sm:$0xff]
    %v55 = vld [vmem:[#allocation2 + $0x20] sm:$0xff]
    %v56 = vld [vmem:[#allocation2 + $0x28] sm:$0xff]
    %v57 = vld [vmem:[#allocation2 + $0x30] sm:$0xff]
    %v58 = vld [vmem:[#allocation2 + $0x38] sm:$0xff]
    %v59 = vld [vmem:[#allocation2 + $0x40] sm:$0xff]
    %v60 = vld [vmem:[#allocation2 + $0x48] sm:$0xff]
    %v61 = vld [vmem:[#allocation2 + $0x50] sm:$0xff]
    %v62 = vld [vmem:[#allocation2 + $0x58] sm:$0xff]
    %v63 = vld [vmem:[#allocation2 + $0x60] sm:$0xff]
    %v64 = vld [vmem:[#allocation2 + $0x68] sm:$0xff]
    %v65 = vld [vmem:[#allocation2 + $0x70] sm:$0xff]
    %v66 = vld [vmem:[#allocation2 + $0x78] sm:$0xff]
    %v67 = vmax.f32 %v51, %v52
    %68 = vmax.xlane.f32.xlu0 %v67
    %v69 = vpop.xlane.xlu0 %68
    %v70 = vmax.f32 %v53, %v54
    %71 = vmax.xlane.f32.xlu0 %v70
    %v72 = vpop.xlane.xlu0 %71
    %v73 = vmax.f32 %v55, %v56
    %74 = vmax.xlane.f32.xlu0 %v73
    %v75 = vpop.xlane.xlu0 %74
    %v76 = vmax.f32 %v57, %v58
    %77 = vmax.xlane.f32.xlu0 %v76
    %v78 = vpop.xlane.xlu0 %77
    %v79 = vmax.f32 %v59, %v60
    %80 = vmax.xlane.f32.xlu0 %v79
    %v81 = vpop.xlane.xlu0 %80
    %v82 = vmax.f32 %v61, %v62
    %83 = vmax.xlane.f32.xlu0 %v82
    %v84 = vpop.xlane.xlu0 %83
    %v85 = vmax.f32 %v63, %v64
    %86 = vmax.xlane.f32.xlu0 %v85
    %v87 = vpop.xlane.xlu0 %86
    %v88 = vmax.f32 %v65, %v66
    %89 = vmax.xlane.f32.xlu0 %v88
    %v90 = vpop.xlane.xlu0 %89
    %v91 = vadd.f32 %v51, %v52
    %92 = vadd.xlane.f32.xlu0 %v91
    %v93 = vpop.xlane.xlu0 %92
    %v94 = vadd.f32 %v53, %v54
    %95 = vadd.xlane.f32.xlu0 %v94
    %v96 = vpop.xlane.xlu0 %95
    %v97 = vadd.f32 %v55, %v56
    %98 = vadd.xlane.f32.xlu0 %v97
    %v99 = vpop.xlane.xlu0 %98
    %v100 = vadd.f32 %v57, %v58
    %101 = vadd.xlane.f32.xlu0 %v100
    %v102 = vpop.xlane.xlu0 %101
    %v103 = vadd.f32 %v59, %v60
    %104 = vadd.xlane.f32.xlu0 %v103
    %v105 = vpop.xlane.xlu0 %104
    %v106 = vadd.f32 %v61, %v62
    %107 = vadd.xlane.f32.xlu0 %v106
    %v108 = vpop.xlane.xlu0 %107
    %v109 = vadd.f32 %v63, %v64
    %110 = vadd.xlane.f32.xlu0 %v109
    %v111 = vpop.xlane.xlu0 %110
    %v112 = vadd.f32 %v65, %v66
    %113 = vadd.xlane.f32.xlu0 %v112
    %v114 = vpop.xlane.xlu0 %113
    %v115 = vmul.f32 %v93, 0.00390625
    %v116 = vmul.f32 %v96, 0.00390625
    %v117 = vmul.f32 %v99, 0.00390625
    %v118 = vmul.f32 %v102, 0.00390625
    %v119 = vmul.f32 %v105, 0.00390625
    %v120 = vmul.f32 %v108, 0.00390625
    %v121 = vmul.f32 %v111, 0.00390625
    %v122 = vmul.f32 %v114, 0.00390625
    %v131 = vlaneseq
    %v132 = vand.u32 %v131, 127
    %v133 = vlaneseq
    %v134 = vshrl.u32 %v133, 7
    %v135 = vsub.s32 %v132, %v134
    %v136 = vrot.slane %v69, %v135
    %v137 = vadd.s32 %v132, 4294967288
    %v138 = vlaneseq
    %v139 = vshrl.u32 %v138, 7
    %v140 = vsub.s32 %v137, %v139
    %v141 = vrot.slane %v72, %v140
    %vm142 = vcmask 130112
    %v143 = vsel %vm142, %v141, %v136
    %v144 = vadd.s32 %v132, 4294967280
    %v145 = vlaneseq
    %v146 = vshrl.u32 %v145, 7
    %v147 = vsub.s32 %v144, %v146
    %v148 = vrot.slane %v75, %v147
    %vm149 = vcmask 195712
    %v150 = vsel %vm149, %v148, %v143
    %v151 = vadd.s32 %v132, 4294967272
    %v152 = vlaneseq
    %v153 = vshrl.u32 %v152, 7
    %v154 = vsub.s32 %v151, %v153
    %v155 = vrot.slane %v78, %v154
    %vm156 = vcmask 261312
    %v157 = vsel %vm156, %v155, %v150
    %v158 = vlaneseq
    %v159 = vshrl.u32 %v158, 7
    %v160 = vsub.s32 %v132, %v159
    %v161 = vrot.slane %v81, %v160
    %v162 = vlaneseq
    %v163 = vshrl.u32 %v162, 7
    %v164 = vsub.s32 %v137, %v163
    %v165 = vrot.slane %v84, %v164
    %v166 = vsel %vm142, %v165, %v161
    %v167 = vlaneseq
    %v168 = vshrl.u32 %v167, 7
    %v169 = vsub.s32 %v144, %v168
    %v170 = vrot.slane %v87, %v169
    %v171 = vsel %vm149, %v170, %v166
    %v172 = vlaneseq
    %v173 = vshrl.u32 %v172, 7
    %v174 = vsub.s32 %v151, %v173
    %v175 = vrot.slane %v90, %v174
    %v176 = vsel %vm156, %v175, %v171
    %vm177 = vcmask 1041409
    %v178 = vsel %vm177, %v176, %v157
    %v188 = vlaneseq
    %v189 = vshrl.u32 %v188, 7
    %v190 = vsub.s32 %v132, %v189
    %v191 = vrot.slane %v115, %v190
    %v192 = vlaneseq
    %v193 = vshrl.u32 %v192, 7
    %v194 = vsub.s32 %v137, %v193
    %v195 = vrot.slane %v116, %v194
    %v196 = vsel %vm142, %v195, %v191
    %v197 = vlaneseq
    %v198 = vshrl.u32 %v197, 7
    %v199 = vsub.s32 %v144, %v198
    %v200 = vrot.slane %v117, %v199
    %v201 = vsel %vm149, %v200, %v196
    %v202 = vlaneseq
    %v203 = vshrl.u32 %v202, 7
    %v204 = vsub.s32 %v151, %v203
    %v205 = vrot.slane %v118, %v204
    %v206 = vsel %vm156, %v205, %v201
    %v207 = vlaneseq
    %v208 = vshrl.u32 %v207, 7
    %v209 = vsub.s32 %v132, %v208
    %v210 = vrot.slane %v119, %v209
    %v211 = vlaneseq
    %v212 = vshrl.u32 %v211, 7
    %v213 = vsub.s32 %v137, %v212
    %v214 = vrot.slane %v120, %v213
    %v215 = vsel %vm142, %v214, %v210
    %v216 = vlaneseq
    %v217 = vshrl.u32 %v216, 7
    %v218 = vsub.s32 %v144, %v217
    %v219 = vrot.slane %v121, %v218
    %v220 = vsel %vm149, %v219, %v215
    %v221 = vlaneseq
    %v222 = vshrl.u32 %v221, 7
    %v223 = vsub.s32 %v151, %v222
    %v224 = vrot.slane %v122, %v223
    %v225 = vsel %vm156, %v224, %v220
    %vm226 = vcmask 1043459
    %v227 = vsel %vm226, %v225, %v206
    %vm229 = vcmask 1041408
    %v230 = vsel %vm229, %v178, %v227
    %v231 = vld [vmem:[%s1] sm:$0xff]
    %v232 = vld [vmem:[%s1 + $0x8] sm:$0xff]
    %v233 = vld [vmem:[%s1 + $0x10] sm:$0xff]
    %v234 = vld [vmem:[%s1 + $0x18] sm:$0xff]
    %v235 = vld [vmem:[%s2] sm:$0x3]
    %vm236 = vcmask 261120
    %v238 = vsel %vm236, %v230, 0
    %240 = vmatprep.subr.mxu0 0.0
    %241 = vmatpush1.msra.mxu0 %v231
    %242 = vmatprep.subr.mxu0 0.0
    %243 = vmatpush1.msra.mxu0 %v232
    %244 = vmatprep.subr.mxu0 0.0
    %245 = vmatpush1.msra.mxu0 %v233
    %246 = vmatprep.subr.mxu0 0.0
    %247 = vmatpush1.msra.mxu0 %v234
    %248 = vmatprep.subr.mxu0 0.0
    %249 = vmatpush1.msra.mxu0 0.0
    %250 = vmatprep.subr.mxu0 0.0
    %251 = vmatpush1.msra.mxu0 0.0
    %252 = vmatprep.subr.mxu0 0.0
    %253 = vmatpush1.msra.mxu0 0.0
    %254 = vmatprep.subr.mxu0 0.0
    %255 = vmatpush1.msra.mxu0 0.0
    %256 = vmatprep.subr.mxu0 0.0
    %257 = vmatpush1.msra.mxu0 0.0
    %258 = vmatprep.subr.mxu0 0.0
    %259 = vmatpush1.msra.mxu0 0.0
    %260 = vmatprep.subr.mxu0 0.0
    %261 = vmatpush1.msra.mxu0 0.0
    %262 = vmatprep.subr.mxu0 0.0
    %263 = vmatpush1.msra.mxu0 0.0
    %264 = vmatprep.subr.mxu0 0.0
    %265 = vmatpush1.msra.mxu0 0.0
    %266 = vmatprep.subr.mxu0 0.0
    %267 = vmatpush1.msra.mxu0 0.0
    %268 = vmatprep.subr.mxu0 0.0
    %269 = vmatpush1.msra.mxu0 0.0
    %270 = vmatprep.subr.mxu0 0.0
    %271 = vmatpush1.msra.mxu0 0.0
    %272 = vmatprep.subr.mxu0 0.0
    %273 = vmatpush1.msra.mxu0 0.0
    %274 = vmatprep.subr.mxu0 0.0
    %275 = vmatpush1.msra.mxu0 0.0
    %276 = vmatprep.subr.mxu0 0.0
    %277 = vmatpush1.msra.mxu0 0.0
    %278 = vmatprep.subr.mxu0 0.0
    %279 = vmatpush1.msra.mxu0 0.0
    %280 = vmatprep.subr.mxu0 0.0
    %281 = vmatpush1.msra.mxu0 0.0
    %282 = vmatprep.subr.mxu0 0.0
    %283 = vmatpush1.msra.mxu0 0.0
    %284 = vmatprep.subr.mxu0 0.0
    %285 = vmatpush1.msra.mxu0 0.0
    %286 = vmatprep.subr.mxu0 0.0
    %287 = vmatpush1.msra.mxu0 0.0
    %288 = vmatprep.subr.mxu0 0.0
    %289 = vmatpush1.msra.mxu0 0.0
    %290 = vmatprep.subr.mxu0 0.0
    %291 = vmatpush1.msra.mxu0 0.0
    %292 = vmatprep.subr.mxu0 0.0
    %293 = vmatpush1.msra.mxu0 0.0
    %294 = vmatprep.subr.mxu0 0.0
    %295 = vmatpush1.msra.mxu0 0.0
    %296 = vmatprep.subr.mxu0 0.0
    %297 = vmatpush1.msra.mxu0 0.0
    %298 = vmatprep.subr.mxu0 0.0
    %299 = vmatpush1.msra.mxu0 0.0
    %300 = vmatprep.subr.mxu0 0.0
    %301 = vmatpush1.msra.mxu0 0.0
    %302 = vmatprep.subr.mxu0 0.0
    %303 = vmatpush1.msra.mxu0 0.0
    %304 = vmatprep.mubr.f32.mxu0 0.0
    %305 = vmatmul.mubr.f32.gmra.mrb[0].mxu0 %v238
    %v306 = vpop.f32.mrb[0].mxu0
    %v307 = vadd.f32 0.0, %v306
    %v308 = vpop.f32.mrb[0].mxu0
    %309 = vdwg.mxu0
    %v310 = vmax.f32 %v307, 0.0
    %vm311 = vcmask 15360
    %v313 = vsel %vm311, %v310, 0
    %v316 = vsel %vm229, %v235, 0
    %318 = vmatprep.subr.mxu0 0.0
    %319 = vmatpush1.msra.mxu0 %v316
    %320 = vmatprep.subr.mxu0 0.0
    %321 = vmatpush1.msra.mxu0 0.0
    %322 = vmatprep.subr.mxu0 0.0
    %323 = vmatpush1.msra.mxu0 0.0
    %324 = vmatprep.subr.mxu0 0.0
    %325 = vmatpush1.msra.mxu0 0.0
    %326 = vmatprep.subr.mxu0 0.0
    %327 = vmatpush1.msra.mxu0 0.0
    %328 = vmatprep.subr.mxu0 0.0
    %329 = vmatpush1.msra.mxu0 0.0
    %330 = vmatprep.subr.mxu0 0.0
    %331 = vmatpush1.msra.mxu0 0.0
    %332 = vmatprep.subr.mxu0 0.0
    %333 = vmatpush1.msra.mxu0 0.0
    %334 = vmatprep.subr.mxu0 0.0
    %335 = vmatpush1.msra.mxu0 0.0
    %336 = vmatprep.subr.mxu0 0.0
    %337 = vmatpush1.msra.mxu0 0.0
    %338 = vmatprep.subr.mxu0 0.0
    %339 = vmatpush1.msra.mxu0 0.0
    %340 = vmatprep.subr.mxu0 0.0
    %341 = vmatpush1.msra.mxu0 0.0
    %342 = vmatprep.subr.mxu0 0.0
    %343 = vmatpush1.msra.mxu0 0.0
    %344 = vmatprep.subr.mxu0 0.0
    %345 = vmatpush1.msra.mxu0 0.0
    %346 = vmatprep.subr.mxu0 0.0
    %347 = vmatpush1.msra.mxu0 0.0
    %348 = vmatprep.subr.mxu0 0.0
    %349 = vmatpush1.msra.mxu0 0.0
    %350 = vmatprep.subr.mxu0 0.0
    %351 = vmatpush1.msra.mxu0 0.0
    %352 = vmatprep.subr.mxu0 0.0
    %353 = vmatpush1.msra.mxu0 0.0
    %354 = vmatprep.subr.mxu0 0.0
    %355 = vmatpush1.msra.mxu0 0.0
    %356 = vmatprep.subr.mxu0 0.0
    %357 = vmatpush1.msra.mxu0 0.0
    %358 = vmatprep.subr.mxu0 0.0
    %359 = vmatpush1.msra.mxu0 0.0
    %360 = vmatprep.subr.mxu0 0.0
    %361 = vmatpush1.msra.mxu0 0.0
    %362 = vmatprep.subr.mxu0 0.0
    %363 = vmatpush1.msra.mxu0 0.0
    %364 = vmatprep.subr.mxu0 0.0
    %365 = vmatpush1.msra.mxu0 0.0
    %366 = vmatprep.subr.mxu0 0.0
    %367 = vmatpush1.msra.mxu0 0.0
    %368 = vmatprep.subr.mxu0 0.0
    %369 = vmatpush1.msra.mxu0 0.0
    %370 = vmatprep.subr.mxu0 0.0
    %371 = vmatpush1.msra.mxu0 0.0
    %372 = vmatprep.subr.mxu0 0.0
    %373 = vmatpush1.msra.mxu0 0.0
    %374 = vmatprep.subr.mxu0 0.0
    %375 = vmatpush1.msra.mxu0 0.0
    %376 = vmatprep.subr.mxu0 0.0
    %377 = vmatpush1.msra.mxu0 0.0
    %378 = vmatprep.subr.mxu0 0.0
    %379 = vmatpush1.msra.mxu0 0.0
    %380 = vmatprep.subr.mxu0 0.0
    %381 = vmatpush1.msra.mxu0 0.0
    %382 = vmatprep.mubr.f32.mxu0 0.0
    %383 = vmatmul.mubr.f32.gmra.mrb[0].mxu0 %v313
    %v384 = vpop.f32.mrb[0].mxu0
    %v385 = vadd.f32 0.0, %v384
    %v386 = vpop.f32.mrb[0].mxu0
    %387 = vdwg.mxu0
    %v389 = vrot.slane %v385, 2
    %v391 = vadd.f32 %v385, %v389
    %v392 = vxor.u32 %v391, 2147483648
    %v393 = vmul.f32 %v392, 1.442695
    %v394 = vpow.pop %v393
    %v395 = vadd.f32 %v394, 1.0
    %v396 = vrcp.pop %v395
    %v397 = vmul.f32 1.0, %v396
    %v399 = vsel %vm236, %v397, 0
    %401 = vmatprep.subr.mxu0 %v52
    %402 = vmatpush1.msra.mxu0 %v51
    %403 = vmatprep.subr.mxu0 %v54
    %404 = vmatpush1.msra.mxu0 %v53
    %405 = vmatprep.subr.mxu0 %v56
    %406 = vmatpush1.msra.mxu0 %v55
    %407 = vmatprep.subr.mxu0 %v58
    %408 = vmatpush1.msra.mxu0 %v57
    %409 = vmatprep.subr.mxu0 0.0
    %410 = vmatpush1.msra.mxu0 0.0
    %411 = vmatprep.subr.mxu0 0.0
    %412 = vmatpush1.msra.mxu0 0.0
    %413 = vmatprep.subr.mxu0 0.0
    %414 = vmatpush1.msra.mxu0 0.0
    %415 = vmatprep.subr.mxu0 0.0
    %416 = vmatpush1.msra.mxu0 0.0
    %417 = vmatprep.subr.mxu0 0.0
    %418 = vmatpush1.msra.mxu0 0.0
    %419 = vmatprep.subr.mxu0 0.0
    %420 = vmatpush1.msra.mxu0 0.0
    %421 = vmatprep.subr.mxu0 0.0
    %422 = vmatpush1.msra.mxu0 0.0
    %423 = vmatprep.subr.mxu0 0.0
    %424 = vmatpush1.msra.mxu0 0.0
    %425 = vmatprep.subr.mxu0 0.0
    %426 = vmatpush1.msra.mxu0 0.0
    %427 = vmatprep.subr.mxu0 0.0
    %428 = vmatpush1.msra.mxu0 0.0
    %429 = vmatprep.subr.mxu0 0.0
    %430 = vmatpush1.msra.mxu0 0.0
    %431 = vmatprep.subr.mxu0 0.0
    %432 = vmatpush1.msra.mxu0 0.0
    %433 = vmatprep.subr.mxu0 0.0
    %434 = vmatpush1.msra.mxu0 0.0
    %435 = vmatprep.subr.mxu0 0.0
    %436 = vmatpush1.msra.mxu0 0.0
    %437 = vmatprep.subr.mxu0 0.0
    %438 = vmatpush1.msra.mxu0 0.0
    %439 = vmatprep.subr.mxu0 0.0
    %440 = vmatpush1.msra.mxu0 0.0
    %441 = vmatprep.subr.mxu0 0.0
    %442 = vmatpush1.msra.mxu0 0.0
    %443 = vmatprep.subr.mxu0 0.0
    %444 = vmatpush1.msra.mxu0 0.0
    %445 = vmatprep.subr.mxu0 0.0
    %446 = vmatpush1.msra.mxu0 0.0
    %447 = vmatprep.subr.mxu0 0.0
    %448 = vmatpush1.msra.mxu0 0.0
    %449 = vmatprep.subr.mxu0 0.0
    %450 = vmatpush1.msra.mxu0 0.0
    %451 = vmatprep.subr.mxu0 0.0
    %452 = vmatpush1.msra.mxu0 0.0
    %453 = vmatprep.subr.mxu0 0.0
    %454 = vmatpush1.msra.mxu0 0.0
    %455 = vmatprep.subr.mxu0 0.0
    %456 = vmatpush1.msra.mxu0 0.0
    %457 = vmatprep.subr.mxu0 0.0
    %458 = vmatpush1.msra.mxu0 0.0
    %459 = vmatprep.subr.mxu0 0.0
    %460 = vmatpush1.msra.mxu0 0.0
    %461 = vmatprep.subr.mxu0 0.0
    %462 = vmatpush1.msra.mxu0 0.0
    %463 = vmatprep.subr.mxu0 0.0
    %464 = vmatpush1.msra.mxu0 0.0
    %465 = vmatprep.mubr.f32.mxu0 0.0
    %466 = vmatmul.mubr.f32.gmra.mrb[0].mxu0 %v399
    %v467 = vpop.f32.mrb[0].mxu0
    %v468 = vadd.f32 0.0, %v467
    %v469 = vpop.f32.mrb[0].mxu0
    %v470 = vadd.f32 0.0, %v469
    %471 = vdwg.mxu0
    %v472 = vrot.slane %v397, 1
    %v473 = vsel %vm236, %v472, 0
    %475 = vmatprep.subr.mxu0 %v60
    %476 = vmatpush1.msra.mxu0 %v59
    %477 = vmatprep.subr.mxu0 %v62
    %478 = vmatpush1.msra.mxu0 %v61
    %479 = vmatprep.subr.mxu0 %v64
    %480 = vmatpush1.msra.mxu0 %v63
    %481 = vmatprep.subr.mxu0 %v66
    %482 = vmatpush1.msra.mxu0 %v65
    %483 = vmatprep.subr.mxu0 0.0
    %484 = vmatpush1.msra.mxu0 0.0
    %485 = vmatprep.subr.mxu0 0.0
    %486 = vmatpush1.msra.mxu0 0.0
    %487 = vmatprep.subr.mxu0 0.0
    %488 = vmatpush1.msra.mxu0 0.0
    %489 = vmatprep.subr.mxu0 0.0
    %490 = vmatpush1.msra.mxu0 0.0
    %491 = vmatprep.subr.mxu0 0.0
    %492 = vmatpush1.msra.mxu0 0.0
    %493 = vmatprep.subr.mxu0 0.0
    %494 = vmatpush1.msra.mxu0 0.0
    %495 = vmatprep.subr.mxu0 0.0
    %496 = vmatpush1.msra.mxu0 0.0
    %497 = vmatprep.subr.mxu0 0.0
    %498 = vmatpush1.msra.mxu0 0.0
    %499 = vmatprep.subr.mxu0 0.0
    %500 = vmatpush1.msra.mxu0 0.0
    %501 = vmatprep.subr.mxu0 0.0
    %502 = vmatpush1.msra.mxu0 0.0
    %503 = vmatprep.subr.mxu0 0.0
    %504 = vmatpush1.msra.mxu0 0.0
    %505 = vmatprep.subr.mxu0 0.0
    %506 = vmatpush1.msra.mxu0 0.0
    %507 = vmatprep.subr.mxu0 0.0
    %508 = vmatpush1.msra.mxu0 0.0
    %509 = vmatprep.subr.mxu0 0.0
    %510 = vmatpush1.msra.mxu0 0.0
    %511 = vmatprep.subr.mxu0 0.0
    %512 = vmatpush1.msra.mxu0 0.0
    %513 = vmatprep.subr.mxu0 0.0
    %514 = vmatpush1.msra.mxu0 0.0
    %515 = vmatprep.subr.mxu0 0.0
    %516 = vmatpush1.msra.mxu0 0.0
    %517 = vmatprep.subr.mxu0 0.0
    %518 = vmatpush1.msra.mxu0 0.0
    %519 = vmatprep.subr.mxu0 0.0
    %520 = vmatpush1.msra.mxu0 0.0
    %521 = vmatprep.subr.mxu0 0.0
    %522 = vmatpush1.msra.mxu0 0.0
    %523 = vmatprep.subr.mxu0 0.0
    %524 = vmatpush1.msra.mxu0 0.0
    %525 = vmatprep.subr.mxu0 0.0
    %526 = vmatpush1.msra.mxu0 0.0
    %527 = vmatprep.subr.mxu0 0.0
    %528 = vmatpush1.msra.mxu0 0.0
    %529 = vmatprep.subr.mxu0 0.0
    %530 = vmatpush1.msra.mxu0 0.0
    %531 = vmatprep.subr.mxu0 0.0
    %532 = vmatpush1.msra.mxu0 0.0
    %533 = vmatprep.subr.mxu0 0.0
    %534 = vmatpush1.msra.mxu0 0.0
    %535 = vmatprep.subr.mxu0 0.0
    %536 = vmatpush1.msra.mxu0 0.0
    %537 = vmatprep.subr.mxu0 0.0
    %538 = vmatpush1.msra.mxu0 0.0
    %539 = vmatprep.mubr.f32.mxu0 0.0
    %540 = vmatmul.mubr.f32.gmra.mrb[0].mxu0 %v473
    %v541 = vpop.f32.mrb[0].mxu0
    %v542 = vadd.f32 0.0, %v541
    %v543 = vpop.f32.mrb[0].mxu0
    %v544 = vadd.f32 0.0, %v543
    %545 = vdwg.mxu0
    %v548 = vrot.slane %v542, 7
    %v549 = vrot.slane %v544, 7
    %vm552 = vcmask 1040384
    %v553 = vsel %vm552, %v468, %v548
    %v554 = vsel %vm552, %v470, %v549
    %v555 = vmul.f32 %v553, 0.03125
    %v556 = vmul.f32 %v554, 0.03125
    %v557 = vlaneseq
    %v558 = vshrl.u32 %v557, 7
    %v559 = vsub.s32 0, %v558
    %v560 = vrot.slane %v397, %v559
    %562 = vbcast.lane.b32.xlu0 %v560, 256
    %v563 = vpop.permute.xlu0 %562
    %s565 = sor.u32 256, 8
    %566 = vbcast.lane.b32.xlu0 %v560, %s565
    %v567 = vpop.permute.xlu0 %566
    %s569 = sor.u32 256, 16
    %570 = vbcast.lane.b32.xlu0 %v560, %s569
    %v571 = vpop.permute.xlu0 %570
    %s573 = sor.u32 256, 24
    %574 = vbcast.lane.b32.xlu0 %v560, %s573
    %v575 = vpop.permute.xlu0 %574
    %v576 = vlaneseq
    %v577 = vshrl.u32 %v576, 7
    %v578 = vsub.s32 1, %v577
    %v579 = vrot.slane %v397, %v578
    %581 = vbcast.lane.b32.xlu0 %v579, 256
    %v582 = vpop.permute.xlu0 %581
    %s584 = sor.u32 256, 8
    %585 = vbcast.lane.b32.xlu0 %v579, %s584
    %v586 = vpop.permute.xlu0 %585
    %s588 = sor.u32 256, 16
    %589 = vbcast.lane.b32.xlu0 %v579, %s588
    %v590 = vpop.permute.xlu0 %589
    %s592 = sor.u32 256, 24
    %593 = vbcast.lane.b32.xlu0 %v579, %s592
    %v594 = vpop.permute.xlu0 %593
    %v595 = vmul.f32 %v51, %v563
    %v596 = vmul.f32 %v52, %v563
    %v597 = vmul.f32 %v53, %v567
    %v598 = vmul.f32 %v54, %v567
    %v599 = vmul.f32 %v55, %v571
    %v600 = vmul.f32 %v56, %v571
    %v601 = vmul.f32 %v57, %v575
    %v602 = vmul.f32 %v58, %v575
    %v603 = vmul.f32 %v59, %v582
    %v604 = vmul.f32 %v60, %v582
    %v605 = vmul.f32 %v61, %v586
    %v606 = vmul.f32 %v62, %v586
    %v607 = vmul.f32 %v63, %v590
    %v608 = vmul.f32 %v64, %v590
    %v609 = vmul.f32 %v65, %v594
    %v610 = vmul.f32 %v66, %v594
    %v611 = vmax.f32 %v595, %v597
    %v612 = vmax.f32 %v611, %v599
    %v613 = vmax.f32 %v612, %v601
    %v614 = vrot.slane %v613, 4
    %v615 = vmax.f32 %v613, %v614
    %v616 = vrot.slane %v615, 2
    %v617 = vmax.f32 %v615, %v616
    %v618 = vrot.slane %v617, 1
    %v619 = vmax.f32 %v617, %v618
    %v620 = vmax.f32 %v596, %v598
    %v621 = vmax.f32 %v620, %v600
    %v622 = vmax.f32 %v621, %v602
    %v623 = vrot.slane %v622, 4
    %v624 = vmax.f32 %v622, %v623
    %v625 = vrot.slane %v624, 2
    %v626 = vmax.f32 %v624, %v625
    %v627 = vrot.slane %v626, 1
    %v628 = vmax.f32 %v626, %v627
    %v629 = vmax.f32 %v603, %v605
    %v630 = vmax.f32 %v629, %v607
    %v631 = vmax.f32 %v630, %v609
    %v632 = vrot.slane %v631, 4
    %v633 = vmax.f32 %v631, %v632
    %v634 = vrot.slane %v633, 2
    %v635 = vmax.f32 %v633, %v634
    %v636 = vrot.slane %v635, 1
    %v637 = vmax.f32 %v635, %v636
    %v638 = vmax.f32 %v604, %v606
    %v639 = vmax.f32 %v638, %v608
    %v640 = vmax.f32 %v639, %v610
    %v641 = vrot.slane %v640, 4
    %v642 = vmax.f32 %v640, %v641
    %v643 = vrot.slane %v642, 2
    %v644 = vmax.f32 %v642, %v643
    %v645 = vrot.slane %v644, 1
    %v646 = vmax.f32 %v644, %v645
    %v647 = vld [vmem:[%s3] sm:$0x3]
    %v648 = vld [vmem:[%s4] sm:$0x3]
    %vm649 = vcmp.ge.f32.partialorder %v647, 3.0
    %vm650 = vcmp.le.f32.partialorder %v647, 18.0
    %vm651 = vmand %vm649, %vm650
    %v652 = vsel %vm651, 1, 0
    %v653 = vcvt.s32.f32 %v652
    %vm654 = vcmp.ge.f32.partialorder %v647, 2.0
    %vm655 = vcmp.le.f32.partialorder %v647, 17.0
    %vm656 = vmand %vm654, %vm655
    %v657 = vsel %vm656, 1, 0
    %v658 = vcvt.s32.f32 %v657
    %vm659 = vcmp.ge.f32.partialorder %v647, 1.0
    %vm660 = vcmp.le.f32.partialorder %v647, 16.0
    %vm661 = vmand %vm659, %vm660
    %v662 = vsel %vm661, 1, 0
    %v663 = vcvt.s32.f32 %v662
    %vm664 = vcmp.ge.f32.partialorder %v647, 0.0
    %vm665 = vcmp.le.f32.partialorder %v647, 15.0
    %vm666 = vmand %vm664, %vm665
    %v667 = vsel %vm666, 1, 0
    %v668 = vcvt.s32.f32 %v667
    %vm669 = vcmp.ge.f32.partialorder %v647, -1.0
    %vm670 = vcmp.le.f32.partialorder %v647, 14.0
    %vm671 = vmand %vm669, %vm670
    %v672 = vsel %vm671, 1, 0
    %v673 = vcvt.s32.f32 %v672
    %vm674 = vcmp.ge.f32.partialorder %v647, -2.0
    %vm675 = vcmp.le.f32.partialorder %v647, 13.0
    %vm676 = vmand %vm674, %vm675
    %v677 = vsel %vm676, 1, 0
    %v678 = vcvt.s32.f32 %v677
    %vm679 = vcmp.ge.f32.partialorder %v647, -3.0
    %vm680 = vcmp.le.f32.partialorder %v647, 12.0
    %vm681 = vmand %vm679, %vm680
    %v682 = vsel %vm681, 1, 0
    %v683 = vcvt.s32.f32 %v682
    %vm684 = vcmp.ge.f32.partialorder %v648, 3.0
    %vm685 = vcmp.le.f32.partialorder %v648, 18.0
    %vm686 = vmand %vm684, %vm685
    %v687 = vsel %vm686, 1, 0
    %v688 = vcvt.s32.f32 %v687
    %vm689 = vcmp.ge.f32.partialorder %v648, 2.0
    %vm690 = vcmp.le.f32.partialorder %v648, 17.0
    %vm691 = vmand %vm689, %vm690
    %v692 = vsel %vm691, 1, 0
    %v693 = vcvt.s32.f32 %v692
    %vm694 = vcmp.ge.f32.partialorder %v648, 1.0
    %vm695 = vcmp.le.f32.partialorder %v648, 16.0
    %vm696 = vmand %vm694, %vm695
    %v697 = vsel %vm696, 1, 0
    %v698 = vcvt.s32.f32 %v697
    %vm699 = vcmp.ge.f32.partialorder %v648, 0.0
    %vm700 = vcmp.le.f32.partialorder %v648, 15.0
    %vm701 = vmand %vm699, %vm700
    %v702 = vsel %vm701, 1, 0
    %v703 = vcvt.s32.f32 %v702
    %vm704 = vcmp.ge.f32.partialorder %v648, -1.0
    %vm705 = vcmp.le.f32.partialorder %v648, 14.0
    %vm706 = vmand %vm704, %vm705
    %v707 = vsel %vm706, 1, 0
    %v708 = vcvt.s32.f32 %v707
    %vm709 = vcmp.ge.f32.partialorder %v648, -2.0
    %vm710 = vcmp.le.f32.partialorder %v648, 13.0
    %vm711 = vmand %vm709, %vm710
    %v712 = vsel %vm711, 1, 0
    %v713 = vcvt.s32.f32 %v712
    %vm714 = vcmp.ge.f32.partialorder %v648, -3.0
    %vm715 = vcmp.le.f32.partialorder %v648, 12.0
    %vm716 = vmand %vm714, %vm715
    %v717 = vsel %vm716, 1, 0
    %v718 = vcvt.s32.f32 %v717
    %s719 = sld [smem:[#allocation6]]
    %s720 = sld [smem:[#allocation6 + $0x1]]
    %s721 = sld [smem:[#allocation6 + $0x2]]
    %s722 = sld [smem:[#allocation6 + $0x3]]
    %s723 = sld [smem:[#allocation6 + $0x4]]
    %s724 = sld [smem:[#allocation6 + $0x5]]
    %s725 = sld [smem:[#allocation6 + $0x6]]
    %s726 = sld [smem:[#allocation6 + $0x7]]
    %s727 = sld [smem:[#allocation6 + $0x8]]
    %s728 = sld [smem:[#allocation6 + $0x9]]
    %s729 = sld [smem:[#allocation6 + $0xa]]
    %s730 = sld [smem:[#allocation6 + $0xb]]
    %s731 = sld [smem:[#allocation6 + $0xc]]
    %s732 = sld [smem:[#allocation6 + $0xd]]
    %s733 = sld [smem:[#allocation6 + $0xe]]
    %s734 = sld [smem:[#allocation6 + $0xf]]
    %s735 = sld [smem:[#allocation6 + $0x10]]
    %s736 = sld [smem:[#allocation6 + $0x11]]
    %s737 = sld [smem:[#allocation6 + $0x12]]
    %s738 = sld [smem:[#allocation6 + $0x13]]
    %s739 = sld [smem:[#allocation6 + $0x14]]
    %s740 = sld [smem:[#allocation6 + $0x15]]
    %s741 = sld [smem:[#allocation6 + $0x16]]
    %s742 = sld [smem:[#allocation6 + $0x17]]
    %s743 = sld [smem:[#allocation6 + $0x18]]
    %s744 = sld [smem:[#allocation6 + $0x19]]
    %s745 = sld [smem:[#allocation6 + $0x1a]]
    %s746 = sld [smem:[#allocation6 + $0x1b]]
    %s747 = sld [smem:[#allocation6 + $0x1c]]
    %s748 = sld [smem:[#allocation6 + $0x1d]]
    %s749 = sld [smem:[#allocation6 + $0x1e]]
    %s750 = sld [smem:[#allocation6 + $0x1f]]
    %s751 = sld [smem:[#allocation6 + $0x20]]
    %s752 = sld [smem:[#allocation6 + $0x21]]
    %s753 = sld [smem:[#allocation6 + $0x22]]
    %s754 = sld [smem:[#allocation6 + $0x23]]
    %s755 = sld [smem:[#allocation6 + $0x24]]
    %s756 = sld [smem:[#allocation6 + $0x25]]
    %s757 = sld [smem:[#allocation6 + $0x26]]
    %s758 = sld [smem:[#allocation6 + $0x27]]
    %s759 = sld [smem:[#allocation6 + $0x28]]
    %s760 = sld [smem:[#allocation6 + $0x29]]
    %s761 = sld [smem:[#allocation6 + $0x2a]]
    %s762 = sld [smem:[#allocation6 + $0x2b]]
    %s763 = sld [smem:[#allocation6 + $0x2c]]
    %s764 = sld [smem:[#allocation6 + $0x2d]]
    %s765 = sld [smem:[#allocation6 + $0x2e]]
    %s766 = sld [smem:[#allocation6 + $0x2f]]
    %s767 = sld [smem:[#allocation6 + $0x30]]
    %s768 = sld [smem:[#allocation6 + $0x31]]
    %s769 = sld [smem:[#allocation6 + $0x32]]
    %s770 = sld [smem:[#allocation6 + $0x33]]
    %s771 = sld [smem:[#allocation6 + $0x34]]
    %s772 = sld [smem:[#allocation6 + $0x35]]
    %s773 = sld [smem:[#allocation6 + $0x36]]
    %s774 = sld [smem:[#allocation6 + $0x37]]
    %s775 = sld [smem:[#allocation6 + $0x38]]
    %s776 = sld [smem:[#allocation6 + $0x39]]
    %s777 = sld [smem:[#allocation6 + $0x3a]]
    %s778 = sld [smem:[#allocation6 + $0x3b]]
    %s779 = sld [smem:[#allocation6 + $0x3c]]
    %s780 = sld [smem:[#allocation6 + $0x3d]]
    %s781 = sld [smem:[#allocation6 + $0x3e]]
    %s782 = sld [smem:[#allocation6 + $0x3f]]
    %s783 = sld [smem:[#allocation6 + $0x40]]
    %s784 = sld [smem:[#allocation6 + $0x41]]
    %s785 = sld [smem:[#allocation6 + $0x42]]
    %s786 = sld [smem:[#allocation6 + $0x43]]
    %s787 = sld [smem:[#allocation6 + $0x44]]
    %s788 = sld [smem:[#allocation6 + $0x45]]
    %s789 = sld [smem:[#allocation6 + $0x46]]
    %s790 = sld [smem:[#allocation6 + $0x47]]
    %s791 = sld [smem:[#allocation6 + $0x48]]
    %s792 = sld [smem:[#allocation6 + $0x49]]
    %s793 = sld [smem:[#allocation6 + $0x4a]]
    %s794 = sld [smem:[#allocation6 + $0x4b]]
    %s795 = sld [smem:[#allocation6 + $0x4c]]
    %s796 = sld [smem:[#allocation6 + $0x4d]]
    %s797 = sld [smem:[#allocation6 + $0x4e]]
    %s798 = sld [smem:[#allocation6 + $0x4f]]
    %s799 = sld [smem:[#allocation6 + $0x50]]
    %s800 = sld [smem:[#allocation6 + $0x51]]
    %s801 = sld [smem:[#allocation6 + $0x52]]
    %s802 = sld [smem:[#allocation6 + $0x53]]
    %s803 = sld [smem:[#allocation6 + $0x54]]
    %s804 = sld [smem:[#allocation6 + $0x55]]
    %s805 = sld [smem:[#allocation6 + $0x56]]
    %s806 = sld [smem:[#allocation6 + $0x57]]
    %s807 = sld [smem:[#allocation6 + $0x58]]
    %s808 = sld [smem:[#allocation6 + $0x59]]
    %s809 = sld [smem:[#allocation6 + $0x5a]]
    %s810 = sld [smem:[#allocation6 + $0x5b]]
    %s811 = sld [smem:[#allocation6 + $0x5c]]
    %s812 = sld [smem:[#allocation6 + $0x5d]]
    %s813 = sld [smem:[#allocation6 + $0x5e]]
    %s814 = sld [smem:[#allocation6 + $0x5f]]
    %s815 = sld [smem:[#allocation6 + $0x60]]
    %s816 = sld [smem:[#allocation6 + $0x61]]
    %v821 = vsel %vm177, %v637, %v619
    %v822 = vsel %vm177, %v646, %v628
    %825 = vrot.lane.b32.xlu0 %v821, 51
    %v826 = vpop.permute.xlu0 %825
    %827 = vrot.lane.b32.xlu0 %v822, 51
    %v828 = vpop.permute.xlu0 %827
    %vm829 = vcmp.lt.s32.totalorder %v132, 51
    %v830 = vsel %vm829, %v826, %v828
    %v831 = vsel %vm829, %v828, %v826
    %832 = vrot.lane.b32.xlu0 %v555, 51
    %v833 = vpop.permute.xlu0 %832
    %834 = vrot.lane.b32.xlu0 %v556, 51
    %v835 = vpop.permute.xlu0 %834
    %v836 = vsel %vm829, %v833, %v835
    %v837 = vsel %vm829, %v835, %v833
    %v838 = vmul.f32 %v653, %v688
    %v839 = vstv %s719
    %v840 = vmul.f32 %v839, %v838
    %v842 = vlaneseq
    %v843 = vshrl.u32 %v842, 7
    %v844 = vsub.s32 0, %v843
    %v845 = vrot.slane %v840, %v844
    %v846 = vlaneseq
    %v847 = vshrl.u32 %v846, 7
    %v848 = vsub.s32 1, %v847
    %v849 = vrot.slane %v840, %v848
    %v852 = vmul.f32 %v845, %v831
    %v853 = vmul.f32 %v849, %v830
    %v854 = vstv %s768
    %v855 = vmul.f32 %v854, %v838
    %v857 = vlaneseq
    %v858 = vshrl.u32 %v857, 7
    %v859 = vsub.s32 0, %v858
    %v860 = vrot.slane %v855, %v859
    %v861 = vlaneseq
    %v862 = vshrl.u32 %v861, 7
    %v863 = vsub.s32 1, %v862
    %v864 = vrot.slane %v855, %v863
    %v867 = vmul.f32 %v860, %v837
    %v868 = vmul.f32 %v864, %v836
    %v869 = vadd.f32 %v852, %v867
    %v870 = vadd.f32 %v853, %v868
    %v871 = vadd.f32 %v869, 0.0
    %v872 = vadd.f32 %v870, 0.0
    %873 = vrot.lane.b32.xlu0 %v821, 50
    %v874 = vpop.permute.xlu0 %873
    %875 = vrot.lane.b32.xlu0 %v822, 50
    %v876 = vpop.permute.xlu0 %875
    %vm877 = vcmp.lt.s32.totalorder %v132, 50
    %v878 = vsel %vm877, %v874, %v876
    %v879 = vsel %vm877, %v876, %v874
    %880 = vrot.lane.b32.xlu0 %v555, 50
    %v881 = vpop.permute.xlu0 %880
    %882 = vrot.lane.b32.xlu0 %v556, 50
    %v883 = vpop.permute.xlu0 %882
    %v884 = vsel %vm877, %v881, %v883
    %v885 = vsel %vm877, %v883, %v881
    %v886 = vmul.f32 %v653, %v693
    %v887 = vstv %s720
    %v888 = vmul.f32 %v887, %v886
    %v890 = vlaneseq
    %v891 = vshrl.u32 %v890, 7
    %v892 = vsub.s32 0, %v891
    %v893 = vrot.slane %v888, %v892
    %v894 = vlaneseq
    %v895 = vshrl.u32 %v894, 7
    %v896 = vsub.s32 1, %v895
    %v897 = vrot.slane %v888, %v896
    %v900 = vmul.f32 %v893, %v879
    %v901 = vmul.f32 %v897, %v878
    %v902 = vstv %s769
    %v903 = vmul.f32 %v902, %v886
    %v905 = vlaneseq
    %v906 = vshrl.u32 %v905, 7
    %v907 = vsub.s32 0, %v906
    %v908 = vrot.slane %v903, %v907
    %v909 = vlaneseq
    %v910 = vshrl.u32 %v909, 7
    %v911 = vsub.s32 1, %v910
    %v912 = vrot.slane %v903, %v911
    %v915 = vmul.f32 %v908, %v885
    %v916 = vmul.f32 %v912, %v884
    %v917 = vadd.f32 %v900, %v915
    %v918 = vadd.f32 %v901, %v916
    %v919 = vadd.f32 %v917, 0.0
    %v920 = vadd.f32 %v918, 0.0
    %921 = vrot.lane.b32.xlu0 %v821, 49
    %v922 = vpop.permute.xlu0 %921
    %923 = vrot.lane.b32.xlu0 %v822, 49
    %v924 = vpop.permute.xlu0 %923
    %vm925 = vcmp.lt.s32.totalorder %v132, 49
    %v926 = vsel %vm925, %v922, %v924
    %v927 = vsel %vm925, %v924, %v922
    %928 = vrot.lane.b32.xlu0 %v555, 49
    %v929 = vpop.permute.xlu0 %928
    %930 = vrot.lane.b32.xlu0 %v556, 49
    %v931 = vpop.permute.xlu0 %930
    %v932 = vsel %vm925, %v929, %v931
    %v933 = vsel %vm925, %v931, %v929
    %v934 = vmul.f32 %v653, %v698
    %v935 = vstv %s721
    %v936 = vmul.f32 %v935, %v934
    %v938 = vlaneseq
    %v939 = vshrl.u32 %v938, 7
    %v940 = vsub.s32 0, %v939
    %v941 = vrot.slane %v936, %v940
    %v942 = vlaneseq
    %v943 = vshrl.u32 %v942, 7
    %v944 = vsub.s32 1, %v943
    %v945 = vrot.slane %v936, %v944
    %v948 = vmul.f32 %v941, %v927
    %v949 = vmul.f32 %v945, %v926
    %v950 = vstv %s770
    %v951 = vmul.f32 %v950, %v934
    %v953 = vlaneseq
    %v954 = vshrl.u32 %v953, 7
    %v955 = vsub.s32 0, %v954
    %v956 = vrot.slane %v951, %v955
    %v957 = vlaneseq
    %v958 = vshrl.u32 %v957, 7
    %v959 = vsub.s32 1, %v958
    %v960 = vrot.slane %v951, %v959
    %v963 = vmul.f32 %v956, %v933
    %v964 = vmul.f32 %v960, %v932
    %v965 = vadd.f32 %v948, %v963
    %v966 = vadd.f32 %v949, %v964
    %v967 = vadd.f32 %v965, 0.0
    %v968 = vadd.f32 %v966, 0.0
    %969 = vrot.lane.b32.xlu0 %v821, 48
    %v970 = vpop.permute.xlu0 %969
    %971 = vrot.lane.b32.xlu0 %v822, 48
    %v972 = vpop.permute.xlu0 %971
    %vm973 = vcmp.lt.s32.totalorder %v132, 48
    %v974 = vsel %vm973, %v970, %v972
    %v975 = vsel %vm973, %v972, %v970
    %976 = vrot.lane.b32.xlu0 %v555, 48
    %v977 = vpop.permute.xlu0 %976
    %978 = vrot.lane.b32.xlu0 %v556, 48
    %v979 = vpop.permute.xlu0 %978
    %v980 = vsel %vm973, %v977, %v979
    %v981 = vsel %vm973, %v979, %v977
    %v982 = vmul.f32 %v653, %v703
    %v983 = vstv %s722
    %v984 = vmul.f32 %v983, %v982
    %v986 = vlaneseq
    %v987 = vshrl.u32 %v986, 7
    %v988 = vsub.s32 0, %v987
    %v989 = vrot.slane %v984, %v988
    %v990 = vlaneseq
    %v991 = vshrl.u32 %v990, 7
    %v992 = vsub.s32 1, %v991
    %v993 = vrot.slane %v984, %v992
    %v996 = vmul.f32 %v989, %v975
    %v997 = vmul.f32 %v993, %v974
    %v998 = vstv %s771
    %v999 = vmul.f32 %v998, %v982
    %v1001 = vlaneseq
    %v1002 = vshrl.u32 %v1001, 7
    %v1003 = vsub.s32 0, %v1002
    %v1004 = vrot.slane %v999, %v1003
    %v1005 = vlaneseq
    %v1006 = vshrl.u32 %v1005, 7
    %v1007 = vsub.s32 1, %v1006
    %v1008 = vrot.slane %v999, %v1007
    %v1011 = vmul.f32 %v1004, %v981
    %v1012 = vmul.f32 %v1008, %v980
    %v1013 = vadd.f32 %v996, %v1011
    %v1014 = vadd.f32 %v997, %v1012
    %v1015 = vadd.f32 %v1013, 0.0
    %v1016 = vadd.f32 %v1014, 0.0
    %1017 = vrot.lane.b32.xlu0 %v821, 47
    %v1018 = vpop.permute.xlu0 %1017
    %1019 = vrot.lane.b32.xlu0 %v822, 47
    %v1020 = vpop.permute.xlu0 %1019
    %vm1021 = vcmp.lt.s32.totalorder %v132, 47
    %v1022 = vsel %vm1021, %v1018, %v1020
    %v1023 = vsel %vm1021, %v1020, %v1018
    %1024 = vrot.lane.b32.xlu0 %v555, 47
    %v1025 = vpop.permute.xlu0 %1024
    %1026 = vrot.lane.b32.xlu0 %v556, 47
    %v1027 = vpop.permute.xlu0 %1026
    %v1028 = vsel %vm1021, %v1025, %v1027
    %v1029 = vsel %vm1021, %v1027, %v1025
    %v1030 = vmul.f32 %v653, %v708
    %v1031 = vstv %s723
    %v1032 = vmul.f32 %v1031, %v1030
    %v1034 = vlaneseq
    %v1035 = vshrl.u32 %v1034, 7
    %v1036 = vsub.s32 0, %v1035
    %v1037 = vrot.slane %v1032, %v1036
    %v1038 = vlaneseq
    %v1039 = vshrl.u32 %v1038, 7
    %v1040 = vsub.s32 1, %v1039
    %v1041 = vrot.slane %v1032, %v1040
    %v1044 = vmul.f32 %v1037, %v1023
    %v1045 = vmul.f32 %v1041, %v1022
    %v1046 = vstv %s772
    %v1047 = vmul.f32 %v1046, %v1030
    %v1049 = vlaneseq
    %v1050 = vshrl.u32 %v1049, 7
    %v1051 = vsub.s32 0, %v1050
    %v1052 = vrot.slane %v1047, %v1051
    %v1053 = vlaneseq
    %v1054 = vshrl.u32 %v1053, 7
    %v1055 = vsub.s32 1, %v1054
    %v1056 = vrot.slane %v1047, %v1055
    %v1059 = vmul.f32 %v1052, %v1029
    %v1060 = vmul.f32 %v1056, %v1028
    %v1061 = vadd.f32 %v1044, %v1059
    %v1062 = vadd.f32 %v1045, %v1060
    %v1063 = vadd.f32 %v871, %v1061
    %v1064 = vadd.f32 %v872, %v1062
    %1065 = vrot.lane.b32.xlu0 %v821, 46
    %v1066 = vpop.permute.xlu0 %1065
    %1067 = vrot.lane.b32.xlu0 %v822, 46
    %v1068 = vpop.permute.xlu0 %1067
    %vm1069 = vcmp.lt.s32.totalorder %v132, 46
    %v1070 = vsel %vm1069, %v1066, %v1068
    %v1071 = vsel %vm1069, %v1068, %v1066
    %1072 = vrot.lane.b32.xlu0 %v555, 46
    %v1073 = vpop.permute.xlu0 %1072
    %1074 = vrot.lane.b32.xlu0 %v556, 46
    %v1075 = vpop.permute.xlu0 %1074
    %v1076 = vsel %vm1069, %v1073, %v1075
    %v1077 = vsel %vm1069, %v1075, %v1073
    %v1078 = vmul.f32 %v653, %v713
    %v1079 = vstv %s724
    %v1080 = vmul.f32 %v1079, %v1078
    %v1082 = vlaneseq
    %v1083 = vshrl.u32 %v1082, 7
    %v1084 = vsub.s32 0, %v1083
    %v1085 = vrot.slane %v1080, %v1084
    %v1086 = vlaneseq
    %v1087 = vshrl.u32 %v1086, 7
    %v1088 = vsub.s32 1, %v1087
    %v1089 = vrot.slane %v1080, %v1088
    %v1092 = vmul.f32 %v1085, %v1071
    %v1093 = vmul.f32 %v1089, %v1070
    %v1094 = vstv %s773
    %v1095 = vmul.f32 %v1094, %v1078
    %v1097 = vlaneseq
    %v1098 = vshrl.u32 %v1097, 7
    %v1099 = vsub.s32 0, %v1098
    %v1100 = vrot.slane %v1095, %v1099
    %v1101 = vlaneseq
    %v1102 = vshrl.u32 %v1101, 7
    %v1103 = vsub.s32 1, %v1102
    %v1104 = vrot.slane %v1095, %v1103
    %v1107 = vmul.f32 %v1100, %v1077
    %v1108 = vmul.f32 %v1104, %v1076
    %v1109 = vadd.f32 %v1092, %v1107
    %v1110 = vadd.f32 %v1093, %v1108
    %v1111 = vadd.f32 %v919, %v1109
    %v1112 = vadd.f32 %v920, %v1110
    %1113 = vrot.lane.b32.xlu0 %v821, 45
    %v1114 = vpop.permute.xlu0 %1113
    %1115 = vrot.lane.b32.xlu0 %v822, 45
    %v1116 = vpop.permute.xlu0 %1115
    %vm1117 = vcmp.lt.s32.totalorder %v132, 45
    %v1118 = vsel %vm1117, %v1114, %v1116
    %v1119 = vsel %vm1117, %v1116, %v1114
    %1120 = vrot.lane.b32.xlu0 %v555, 45
    %v1121 = vpop.permute.xlu0 %1120
    %1122 = vrot.lane.b32.xlu0 %v556, 45
    %v1123 = vpop.permute.xlu0 %1122
    %v1124 = vsel %vm1117, %v1121, %v1123
    %v1125 = vsel %vm1117, %v1123, %v1121
    %v1126 = vmul.f32 %v653, %v718
    %v1127 = vstv %s725
    %v1128 = vmul.f32 %v1127, %v1126
    %v1130 = vlaneseq
    %v1131 = vshrl.u32 %v1130, 7
    %v1132 = vsub.s32 0, %v1131
    %v1133 = vrot.slane %v1128, %v1132
    %v1134 = vlaneseq
    %v1135 = vshrl.u32 %v1134, 7
    %v1136 = vsub.s32 1, %v1135
    %v1137 = vrot.slane %v1128, %v1136
    %v1140 = vmul.f32 %v1133, %v1119
    %v1141 = vmul.f32 %v1137, %v1118
    %v1142 = vstv %s774
    %v1143 = vmul.f32 %v1142, %v1126
    %v1145 = vlaneseq
    %v1146 = vshrl.u32 %v1145, 7
    %v1147 = vsub.s32 0, %v1146
    %v1148 = vrot.slane %v1143, %v1147
    %v1149 = vlaneseq
    %v1150 = vshrl.u32 %v1149, 7
    %v1151 = vsub.s32 1, %v1150
    %v1152 = vrot.slane %v1143, %v1151
    %v1155 = vmul.f32 %v1148, %v1125
    %v1156 = vmul.f32 %v1152, %v1124
    %v1157 = vadd.f32 %v1140, %v1155
    %v1158 = vadd.f32 %v1141, %v1156
    %v1159 = vadd.f32 %v967, %v1157
    %v1160 = vadd.f32 %v968, %v1158
    %1161 = vrot.lane.b32.xlu0 %v821, 35
    %v1162 = vpop.permute.xlu0 %1161
    %1163 = vrot.lane.b32.xlu0 %v822, 35
    %v1164 = vpop.permute.xlu0 %1163
    %vm1165 = vcmp.lt.s32.totalorder %v132, 35
    %v1166 = vsel %vm1165, %v1162, %v1164
    %v1167 = vsel %vm1165, %v1164, %v1162
    %1168 = vrot.lane.b32.xlu0 %v555, 35
    %v1169 = vpop.permute.xlu0 %1168
    %1170 = vrot.lane.b32.xlu0 %v556, 35
    %v1171 = vpop.permute.xlu0 %1170
    %v1172 = vsel %vm1165, %v1169, %v1171
    %v1173 = vsel %vm1165, %v1171, %v1169
    %v1174 = vmul.f32 %v658, %v688
    %v1175 = vstv %s726
    %v1176 = vmul.f32 %v1175, %v1174
    %v1178 = vlaneseq
    %v1179 = vshrl.u32 %v1178, 7
    %v1180 = vsub.s32 0, %v1179
    %v1181 = vrot.slane %v1176, %v1180
    %v1182 = vlaneseq
    %v1183 = vshrl.u32 %v1182, 7
    %v1184 = vsub.s32 1, %v1183
    %v1185 = vrot.slane %v1176, %v1184
    %v1188 = vmul.f32 %v1181, %v1167
    %v1189 = vmul.f32 %v1185, %v1166
    %v1190 = vstv %s775
    %v1191 = vmul.f32 %v1190, %v1174
    %v1193 = vlaneseq
    %v1194 = vshrl.u32 %v1193, 7
    %v1195 = vsub.s32 0, %v1194
    %v1196 = vrot.slane %v1191, %v1195
    %v1197 = vlaneseq
    %v1198 = vshrl.u32 %v1197, 7
    %v1199 = vsub.s32 1, %v1198
    %v1200 = vrot.slane %v1191, %v1199
    %v1203 = vmul.f32 %v1196, %v1173
    %v1204 = vmul.f32 %v1200, %v1172
    %v1205 = vadd.f32 %v1188, %v1203
    %v1206 = vadd.f32 %v1189, %v1204
    %v1207 = vadd.f32 %v1015, %v1205
    %v1208 = vadd.f32 %v1016, %v1206
    %1209 = vrot.lane.b32.xlu0 %v821, 34
    %v1210 = vpop.permute.xlu0 %1209
    %1211 = vrot.lane.b32.xlu0 %v822, 34
    %v1212 = vpop.permute.xlu0 %1211
    %vm1213 = vcmp.lt.s32.totalorder %v132, 34
    %v1214 = vsel %vm1213, %v1210, %v1212
    %v1215 = vsel %vm1213, %v1212, %v1210
    %1216 = vrot.lane.b32.xlu0 %v555, 34
    %v1217 = vpop.permute.xlu0 %1216
    %1218 = vrot.lane.b32.xlu0 %v556, 34
    %v1219 = vpop.permute.xlu0 %1218
    %v1220 = vsel %vm1213, %v1217, %v1219
    %v1221 = vsel %vm1213, %v1219, %v1217
    %v1222 = vmul.f32 %v658, %v693
    %v1223 = vstv %s727
    %v1224 = vmul.f32 %v1223, %v1222
    %v1226 = vlaneseq
    %v1227 = vshrl.u32 %v1226, 7
    %v1228 = vsub.s32 0, %v1227
    %v1229 = vrot.slane %v1224, %v1228
    %v1230 = vlaneseq
    %v1231 = vshrl.u32 %v1230, 7
    %v1232 = vsub.s32 1, %v1231
    %v1233 = vrot.slane %v1224, %v1232
    %v1236 = vmul.f32 %v1229, %v1215
    %v1237 = vmul.f32 %v1233, %v1214
    %v1238 = vstv %s776
    %v1239 = vmul.f32 %v1238, %v1222
    %v1241 = vlaneseq
    %v1242 = vshrl.u32 %v1241, 7
    %v1243 = vsub.s32 0, %v1242
    %v1244 = vrot.slane %v1239, %v1243
    %v1245 = vlaneseq
    %v1246 = vshrl.u32 %v1245, 7
    %v1247 = vsub.s32 1, %v1246
    %v1248 = vrot.slane %v1239, %v1247
    %v1251 = vmul.f32 %v1244, %v1221
    %v1252 = vmul.f32 %v1248, %v1220
    %v1253 = vadd.f32 %v1236, %v1251
    %v1254 = vadd.f32 %v1237, %v1252
    %v1255 = vadd.f32 %v1063, %v1253
    %v1256 = vadd.f32 %v1064, %v1254
    %1257 = vrot.lane.b32.xlu0 %v821, 33
    %v1258 = vpop.permute.xlu0 %1257
    %1259 = vrot.lane.b32.xlu0 %v822, 33
    %v1260 = vpop.permute.xlu0 %1259
    %vm1261 = vcmp.lt.s32.totalorder %v132, 33
    %v1262 = vsel %vm1261, %v1258, %v1260
    %v1263 = vsel %vm1261, %v1260, %v1258
    %1264 = vrot.lane.b32.xlu0 %v555, 33
    %v1265 = vpop.permute.xlu0 %1264
    %1266 = vrot.lane.b32.xlu0 %v556, 33
    %v1267 = vpop.permute.xlu0 %1266
    %v1268 = vsel %vm1261, %v1265, %v1267
    %v1269 = vsel %vm1261, %v1267, %v1265
    %v1270 = vmul.f32 %v658, %v698
    %v1271 = vstv %s728
    %v1272 = vmul.f32 %v1271, %v1270
    %v1274 = vlaneseq
    %v1275 = vshrl.u32 %v1274, 7
    %v1276 = vsub.s32 0, %v1275
    %v1277 = vrot.slane %v1272, %v1276
    %v1278 = vlaneseq
    %v1279 = vshrl.u32 %v1278, 7
    %v1280 = vsub.s32 1, %v1279
    %v1281 = vrot.slane %v1272, %v1280
    %v1284 = vmul.f32 %v1277, %v1263
    %v1285 = vmul.f32 %v1281, %v1262
    %v1286 = vstv %s777
    %v1287 = vmul.f32 %v1286, %v1270
    %v1289 = vlaneseq
    %v1290 = vshrl.u32 %v1289, 7
    %v1291 = vsub.s32 0, %v1290
    %v1292 = vrot.slane %v1287, %v1291
    %v1293 = vlaneseq
    %v1294 = vshrl.u32 %v1293, 7
    %v1295 = vsub.s32 1, %v1294
    %v1296 = vrot.slane %v1287, %v1295
    %v1299 = vmul.f32 %v1292, %v1269
    %v1300 = vmul.f32 %v1296, %v1268
    %v1301 = vadd.f32 %v1284, %v1299
    %v1302 = vadd.f32 %v1285, %v1300
    %v1303 = vadd.f32 %v1111, %v1301
    %v1304 = vadd.f32 %v1112, %v1302
    %1305 = vrot.lane.b32.xlu0 %v821, 32
    %v1306 = vpop.permute.xlu0 %1305
    %1307 = vrot.lane.b32.xlu0 %v822, 32
    %v1308 = vpop.permute.xlu0 %1307
    %vm1309 = vcmp.lt.s32.totalorder %v132, 32
    %v1310 = vsel %vm1309, %v1306, %v1308
    %v1311 = vsel %vm1309, %v1308, %v1306
    %1312 = vrot.lane.b32.xlu0 %v555, 32
    %v1313 = vpop.permute.xlu0 %1312
    %1314 = vrot.lane.b32.xlu0 %v556, 32
    %v1315 = vpop.permute.xlu0 %1314
    %v1316 = vsel %vm1309, %v1313, %v1315
    %v1317 = vsel %vm1309, %v1315, %v1313
    %v1318 = vmul.f32 %v658, %v703
    %v1319 = vstv %s729
    %v1320 = vmul.f32 %v1319, %v1318
    %v1322 = vlaneseq
    %v1323 = vshrl.u32 %v1322, 7
    %v1324 = vsub.s32 0, %v1323
    %v1325 = vrot.slane %v1320, %v1324
    %v1326 = vlaneseq
    %v1327 = vshrl.u32 %v1326, 7
    %v1328 = vsub.s32 1, %v1327
    %v1329 = vrot.slane %v1320, %v1328
    %v1332 = vmul.f32 %v1325, %v1311
    %v1333 = vmul.f32 %v1329, %v1310
    %v1334 = vstv %s778
    %v1335 = vmul.f32 %v1334, %v1318
    %v1337 = vlaneseq
    %v1338 = vshrl.u32 %v1337, 7
    %v1339 = vsub.s32 0, %v1338
    %v1340 = vrot.slane %v1335, %v1339
    %v1341 = vlaneseq
    %v1342 = vshrl.u32 %v1341, 7
    %v1343 = vsub.s32 1, %v1342
    %v1344 = vrot.slane %v1335, %v1343
    %v1347 = vmul.f32 %v1340, %v1317
    %v1348 = vmul.f32 %v1344, %v1316
    %v1349 = vadd.f32 %v1332, %v1347
    %v1350 = vadd.f32 %v1333, %v1348
    %v1351 = vadd.f32 %v1159, %v1349
    %v1352 = vadd.f32 %v1160, %v1350
    %1353 = vrot.lane.b32.xlu0 %v821, 31
    %v1354 = vpop.permute.xlu0 %1353
    %1355 = vrot.lane.b32.xlu0 %v822, 31
    %v1356 = vpop.permute.xlu0 %1355
    %vm1357 = vcmp.lt.s32.totalorder %v132, 31
    %v1358 = vsel %vm1357, %v1354, %v1356
    %v1359 = vsel %vm1357, %v1356, %v1354
    %1360 = vrot.lane.b32.xlu0 %v555, 31
    %v1361 = vpop.permute.xlu0 %1360
    %1362 = vrot.lane.b32.xlu0 %v556, 31
    %v1363 = vpop.permute.xlu0 %1362
    %v1364 = vsel %vm1357, %v1361, %v1363
    %v1365 = vsel %vm1357, %v1363, %v1361
    %v1366 = vmul.f32 %v658, %v708
    %v1367 = vstv %s730
    %v1368 = vmul.f32 %v1367, %v1366
    %v1370 = vlaneseq
    %v1371 = vshrl.u32 %v1370, 7
    %v1372 = vsub.s32 0, %v1371
    %v1373 = vrot.slane %v1368, %v1372
    %v1374 = vlaneseq
    %v1375 = vshrl.u32 %v1374, 7
    %v1376 = vsub.s32 1, %v1375
    %v1377 = vrot.slane %v1368, %v1376
    %v1380 = vmul.f32 %v1373, %v1359
    %v1381 = vmul.f32 %v1377, %v1358
    %v1382 = vstv %s779
    %v1383 = vmul.f32 %v1382, %v1366
    %v1385 = vlaneseq
    %v1386 = vshrl.u32 %v1385, 7
    %v1387 = vsub.s32 0, %v1386
    %v1388 = vrot.slane %v1383, %v1387
    %v1389 = vlaneseq
    %v1390 = vshrl.u32 %v1389, 7
    %v1391 = vsub.s32 1, %v1390
    %v1392 = vrot.slane %v1383, %v1391
    %v1395 = vmul.f32 %v1388, %v1365
    %v1396 = vmul.f32 %v1392, %v1364
    %v1397 = vadd.f32 %v1380, %v1395
    %v1398 = vadd.f32 %v1381, %v1396
    %v1399 = vadd.f32 %v1207, %v1397
    %v1400 = vadd.f32 %v1208, %v1398
    %1401 = vrot.lane.b32.xlu0 %v821, 30
    %v1402 = vpop.permute.xlu0 %1401
    %1403 = vrot.lane.b32.xlu0 %v822, 30
    %v1404 = vpop.permute.xlu0 %1403
    %vm1405 = vcmp.lt.s32.totalorder %v132, 30
    %v1406 = vsel %vm1405, %v1402, %v1404
    %v1407 = vsel %vm1405, %v1404, %v1402
    %1408 = vrot.lane.b32.xlu0 %v555, 30
    %v1409 = vpop.permute.xlu0 %1408
    %1410 = vrot.lane.b32.xlu0 %v556, 30
    %v1411 = vpop.permute.xlu0 %1410
    %v1412 = vsel %vm1405, %v1409, %v1411
    %v1413 = vsel %vm1405, %v1411, %v1409
    %v1414 = vmul.f32 %v658, %v713
    %v1415 = vstv %s731
    %v1416 = vmul.f32 %v1415, %v1414
    %v1418 = vlaneseq
    %v1419 = vshrl.u32 %v1418, 7
    %v1420 = vsub.s32 0, %v1419
    %v1421 = vrot.slane %v1416, %v1420
    %v1422 = vlaneseq
    %v1423 = vshrl.u32 %v1422, 7
    %v1424 = vsub.s32 1, %v1423
    %v1425 = vrot.slane %v1416, %v1424
    %v1428 = vmul.f32 %v1421, %v1407
    %v1429 = vmul.f32 %v1425, %v1406
    %v1430 = vstv %s780
    %v1431 = vmul.f32 %v1430, %v1414
    %v1433 = vlaneseq
    %v1434 = vshrl.u32 %v1433, 7
    %v1435 = vsub.s32 0, %v1434
    %v1436 = vrot.slane %v1431, %v1435
    %v1437 = vlaneseq
    %v1438 = vshrl.u32 %v1437, 7
    %v1439 = vsub.s32 1, %v1438
    %v1440 = vrot.slane %v1431, %v1439
    %v1443 = vmul.f32 %v1436, %v1413
    %v1444 = vmul.f32 %v1440, %v1412
    %v1445 = vadd.f32 %v1428, %v1443
    %v1446 = vadd.f32 %v1429, %v1444
    %v1447 = vadd.f32 %v1255, %v1445
    %v1448 = vadd.f32 %v1256, %v1446
    %1449 = vrot.lane.b32.xlu0 %v821, 29
    %v1450 = vpop.permute.xlu0 %1449
    %1451 = vrot.lane.b32.xlu0 %v822, 29
    %v1452 = vpop.permute.xlu0 %1451
    %vm1453 = vcmp.lt.s32.totalorder %v132, 29
    %v1454 = vsel %vm1453, %v1450, %v1452
    %v1455 = vsel %vm1453, %v1452, %v1450
    %1456 = vrot.lane.b32.xlu0 %v555, 29
    %v1457 = vpop.permute.xlu0 %1456
    %1458 = vrot.lane.b32.xlu0 %v556, 29
    %v1459 = vpop.permute.xlu0 %1458
    %v1460 = vsel %vm1453, %v1457, %v1459
    %v1461 = vsel %vm1453, %v1459, %v1457
    %v1462 = vmul.f32 %v658, %v718
    %v1463 = vstv %s732
    %v1464 = vmul.f32 %v1463, %v1462
    %v1466 = vlaneseq
    %v1467 = vshrl.u32 %v1466, 7
    %v1468 = vsub.s32 0, %v1467
    %v1469 = vrot.slane %v1464, %v1468
    %v1470 = vlaneseq
    %v1471 = vshrl.u32 %v1470, 7
    %v1472 = vsub.s32 1, %v1471
    %v1473 = vrot.slane %v1464, %v1472
    %v1476 = vmul.f32 %v1469, %v1455
    %v1477 = vmul.f32 %v1473, %v1454
    %v1478 = vstv %s781
    %v1479 = vmul.f32 %v1478, %v1462
    %v1481 = vlaneseq
    %v1482 = vshrl.u32 %v1481, 7
    %v1483 = vsub.s32 0, %v1482
    %v1484 = vrot.slane %v1479, %v1483
    %v1485 = vlaneseq
    %v1486 = vshrl.u32 %v1485, 7
    %v1487 = vsub.s32 1, %v1486
    %v1488 = vrot.slane %v1479, %v1487
    %v1491 = vmul.f32 %v1484, %v1461
    %v1492 = vmul.f32 %v1488, %v1460
    %v1493 = vadd.f32 %v1476, %v1491
    %v1494 = vadd.f32 %v1477, %v1492
    %v1495 = vadd.f32 %v1303, %v1493
    %v1496 = vadd.f32 %v1304, %v1494
    %1497 = vrot.lane.b32.xlu0 %v821, 19
    %v1498 = vpop.permute.xlu0 %1497
    %1499 = vrot.lane.b32.xlu0 %v822, 19
    %v1500 = vpop.permute.xlu0 %1499
    %vm1501 = vcmp.lt.s32.totalorder %v132, 19
    %v1502 = vsel %vm1501, %v1498, %v1500
    %v1503 = vsel %vm1501, %v1500, %v1498
    %1504 = vrot.lane.b32.xlu0 %v555, 19
    %v1505 = vpop.permute.xlu0 %1504
    %1506 = vrot.lane.b32.xlu0 %v556, 19
    %v1507 = vpop.permute.xlu0 %1506
    %v1508 = vsel %vm1501, %v1505, %v1507
    %v1509 = vsel %vm1501, %v1507, %v1505
    %v1510 = vmul.f32 %v663, %v688
    %v1511 = vstv %s733
    %v1512 = vmul.f32 %v1511, %v1510
    %v1514 = vlaneseq
    %v1515 = vshrl.u32 %v1514, 7
    %v1516 = vsub.s32 0, %v1515
    %v1517 = vrot.slane %v1512, %v1516
    %v1518 = vlaneseq
    %v1519 = vshrl.u32 %v1518, 7
    %v1520 = vsub.s32 1, %v1519
    %v1521 = vrot.slane %v1512, %v1520
    %v1524 = vmul.f32 %v1517, %v1503
    %v1525 = vmul.f32 %v1521, %v1502
    %v1526 = vstv %s782
    %v1527 = vmul.f32 %v1526, %v1510
    %v1529 = vlaneseq
    %v1530 = vshrl.u32 %v1529, 7
    %v1531 = vsub.s32 0, %v1530
    %v1532 = vrot.slane %v1527, %v1531
    %v1533 = vlaneseq
    %v1534 = vshrl.u32 %v1533, 7
    %v1535 = vsub.s32 1, %v1534
    %v1536 = vrot.slane %v1527, %v1535
    %v1539 = vmul.f32 %v1532, %v1509
    %v1540 = vmul.f32 %v1536, %v1508
    %v1541 = vadd.f32 %v1524, %v1539
    %v1542 = vadd.f32 %v1525, %v1540
    %v1543 = vadd.f32 %v1351, %v1541
    %v1544 = vadd.f32 %v1352, %v1542
    %1545 = vrot.lane.b32.xlu0 %v821, 18
    %v1546 = vpop.permute.xlu0 %1545
    %1547 = vrot.lane.b32.xlu0 %v822, 18
    %v1548 = vpop.permute.xlu0 %1547
    %vm1549 = vcmp.lt.s32.totalorder %v132, 18
    %v1550 = vsel %vm1549, %v1546, %v1548
    %v1551 = vsel %vm1549, %v1548, %v1546
    %1552 = vrot.lane.b32.xlu0 %v555, 18
    %v1553 = vpop.permute.xlu0 %1552
    %1554 = vrot.lane.b32.xlu0 %v556, 18
    %v1555 = vpop.permute.xlu0 %1554
    %v1556 = vsel %vm1549, %v1553, %v1555
    %v1557 = vsel %vm1549, %v1555, %v1553
    %v1558 = vmul.f32 %v663, %v693
    %v1559 = vstv %s734
    %v1560 = vmul.f32 %v1559, %v1558
    %v1562 = vlaneseq
    %v1563 = vshrl.u32 %v1562, 7
    %v1564 = vsub.s32 0, %v1563
    %v1565 = vrot.slane %v1560, %v1564
    %v1566 = vlaneseq
    %v1567 = vshrl.u32 %v1566, 7
    %v1568 = vsub.s32 1, %v1567
    %v1569 = vrot.slane %v1560, %v1568
    %v1572 = vmul.f32 %v1565, %v1551
    %v1573 = vmul.f32 %v1569, %v1550
    %v1574 = vstv %s783
    %v1575 = vmul.f32 %v1574, %v1558
    %v1577 = vlaneseq
    %v1578 = vshrl.u32 %v1577, 7
    %v1579 = vsub.s32 0, %v1578
    %v1580 = vrot.slane %v1575, %v1579
    %v1581 = vlaneseq
    %v1582 = vshrl.u32 %v1581, 7
    %v1583 = vsub.s32 1, %v1582
    %v1584 = vrot.slane %v1575, %v1583
    %v1587 = vmul.f32 %v1580, %v1557
    %v1588 = vmul.f32 %v1584, %v1556
    %v1589 = vadd.f32 %v1572, %v1587
    %v1590 = vadd.f32 %v1573, %v1588
    %v1591 = vadd.f32 %v1399, %v1589
    %v1592 = vadd.f32 %v1400, %v1590
    %1593 = vrot.lane.b32.xlu0 %v821, 17
    %v1594 = vpop.permute.xlu0 %1593
    %1595 = vrot.lane.b32.xlu0 %v822, 17
    %v1596 = vpop.permute.xlu0 %1595
    %vm1597 = vcmp.lt.s32.totalorder %v132, 17
    %v1598 = vsel %vm1597, %v1594, %v1596
    %v1599 = vsel %vm1597, %v1596, %v1594
    %1600 = vrot.lane.b32.xlu0 %v555, 17
    %v1601 = vpop.permute.xlu0 %1600
    %1602 = vrot.lane.b32.xlu0 %v556, 17
    %v1603 = vpop.permute.xlu0 %1602
    %v1604 = vsel %vm1597, %v1601, %v1603
    %v1605 = vsel %vm1597, %v1603, %v1601
    %v1606 = vmul.f32 %v663, %v698
    %v1607 = vstv %s735
    %v1608 = vmul.f32 %v1607, %v1606
    %v1610 = vlaneseq
    %v1611 = vshrl.u32 %v1610, 7
    %v1612 = vsub.s32 0, %v1611
    %v1613 = vrot.slane %v1608, %v1612
    %v1614 = vlaneseq
    %v1615 = vshrl.u32 %v1614, 7
    %v1616 = vsub.s32 1, %v1615
    %v1617 = vrot.slane %v1608, %v1616
    %v1620 = vmul.f32 %v1613, %v1599
    %v1621 = vmul.f32 %v1617, %v1598
    %v1622 = vstv %s784
    %v1623 = vmul.f32 %v1622, %v1606
    %v1625 = vlaneseq
    %v1626 = vshrl.u32 %v1625, 7
    %v1627 = vsub.s32 0, %v1626
    %v1628 = vrot.slane %v1623, %v1627
    %v1629 = vlaneseq
    %v1630 = vshrl.u32 %v1629, 7
    %v1631 = vsub.s32 1, %v1630
    %v1632 = vrot.slane %v1623, %v1631
    %v1635 = vmul.f32 %v1628, %v1605
    %v1636 = vmul.f32 %v1632, %v1604
    %v1637 = vadd.f32 %v1620, %v1635
    %v1638 = vadd.f32 %v1621, %v1636
    %v1639 = vadd.f32 %v1447, %v1637
    %v1640 = vadd.f32 %v1448, %v1638
    %1641 = vrot.lane.b32.xlu0 %v821, 16
    %v1642 = vpop.permute.xlu0 %1641
    %1643 = vrot.lane.b32.xlu0 %v822, 16
    %v1644 = vpop.permute.xlu0 %1643
    %vm1645 = vcmp.lt.s32.totalorder %v132, 16
    %v1646 = vsel %vm1645, %v1642, %v1644
    %v1647 = vsel %vm1645, %v1644, %v1642
    %1648 = vrot.lane.b32.xlu0 %v555, 16
    %v1649 = vpop.permute.xlu0 %1648
    %1650 = vrot.lane.b32.xlu0 %v556, 16
    %v1651 = vpop.permute.xlu0 %1650
    %v1652 = vsel %vm1645, %v1649, %v1651
    %v1653 = vsel %vm1645, %v1651, %v1649
    %v1654 = vmul.f32 %v663, %v703
    %v1655 = vstv %s736
    %v1656 = vmul.f32 %v1655, %v1654
    %v1658 = vlaneseq
    %v1659 = vshrl.u32 %v1658, 7
    %v1660 = vsub.s32 0, %v1659
    %v1661 = vrot.slane %v1656, %v1660
    %v1662 = vlaneseq
    %v1663 = vshrl.u32 %v1662, 7
    %v1664 = vsub.s32 1, %v1663
    %v1665 = vrot.slane %v1656, %v1664
    %v1668 = vmul.f32 %v1661, %v1647
    %v1669 = vmul.f32 %v1665, %v1646
    %v1670 = vstv %s785
    %v1671 = vmul.f32 %v1670, %v1654
    %v1673 = vlaneseq
    %v1674 = vshrl.u32 %v1673, 7
    %v1675 = vsub.s32 0, %v1674
    %v1676 = vrot.slane %v1671, %v1675
    %v1677 = vlaneseq
    %v1678 = vshrl.u32 %v1677, 7
    %v1679 = vsub.s32 1, %v1678
    %v1680 = vrot.slane %v1671, %v1679
    %v1683 = vmul.f32 %v1676, %v1653
    %v1684 = vmul.f32 %v1680, %v1652
    %v1685 = vadd.f32 %v1668, %v1683
    %v1686 = vadd.f32 %v1669, %v1684
    %v1687 = vadd.f32 %v1495, %v1685
    %v1688 = vadd.f32 %v1496, %v1686
    %1689 = vrot.lane.b32.xlu0 %v821, 15
    %v1690 = vpop.permute.xlu0 %1689
    %1691 = vrot.lane.b32.xlu0 %v822, 15
    %v1692 = vpop.permute.xlu0 %1691
    %vm1693 = vcmp.lt.s32.totalorder %v132, 15
    %v1694 = vsel %vm1693, %v1690, %v1692
    %v1695 = vsel %vm1693, %v1692, %v1690
    %1696 = vrot.lane.b32.xlu0 %v555, 15
    %v1697 = vpop.permute.xlu0 %1696
    %1698 = vrot.lane.b32.xlu0 %v556, 15
    %v1699 = vpop.permute.xlu0 %1698
    %v1700 = vsel %vm1693, %v1697, %v1699
    %v1701 = vsel %vm1693, %v1699, %v1697
    %v1702 = vmul.f32 %v663, %v708
    %v1703 = vstv %s737
    %v1704 = vmul.f32 %v1703, %v1702
    %v1706 = vlaneseq
    %v1707 = vshrl.u32 %v1706, 7
    %v1708 = vsub.s32 0, %v1707
    %v1709 = vrot.slane %v1704, %v1708
    %v1710 = vlaneseq
    %v1711 = vshrl.u32 %v1710, 7
    %v1712 = vsub.s32 1, %v1711
    %v1713 = vrot.slane %v1704, %v1712
    %v1716 = vmul.f32 %v1709, %v1695
    %v1717 = vmul.f32 %v1713, %v1694
    %v1718 = vstv %s786
    %v1719 = vmul.f32 %v1718, %v1702
    %v1721 = vlaneseq
    %v1722 = vshrl.u32 %v1721, 7
    %v1723 = vsub.s32 0, %v1722
    %v1724 = vrot.slane %v1719, %v1723
    %v1725 = vlaneseq
    %v1726 = vshrl.u32 %v1725, 7
    %v1727 = vsub.s32 1, %v1726
    %v1728 = vrot.slane %v1719, %v1727
    %v1731 = vmul.f32 %v1724, %v1701
    %v1732 = vmul.f32 %v1728, %v1700
    %v1733 = vadd.f32 %v1716, %v1731
    %v1734 = vadd.f32 %v1717, %v1732
    %v1735 = vadd.f32 %v1543, %v1733
    %v1736 = vadd.f32 %v1544, %v1734
    %1737 = vrot.lane.b32.xlu0 %v821, 14
    %v1738 = vpop.permute.xlu0 %1737
    %1739 = vrot.lane.b32.xlu0 %v822, 14
    %v1740 = vpop.permute.xlu0 %1739
    %vm1741 = vcmp.lt.s32.totalorder %v132, 14
    %v1742 = vsel %vm1741, %v1738, %v1740
    %v1743 = vsel %vm1741, %v1740, %v1738
    %1744 = vrot.lane.b32.xlu0 %v555, 14
    %v1745 = vpop.permute.xlu0 %1744
    %1746 = vrot.lane.b32.xlu0 %v556, 14
    %v1747 = vpop.permute.xlu0 %1746
    %v1748 = vsel %vm1741, %v1745, %v1747
    %v1749 = vsel %vm1741, %v1747, %v1745
    %v1750 = vmul.f32 %v663, %v713
    %v1751 = vstv %s738
    %v1752 = vmul.f32 %v1751, %v1750
    %v1754 = vlaneseq
    %v1755 = vshrl.u32 %v1754, 7
    %v1756 = vsub.s32 0, %v1755
    %v1757 = vrot.slane %v1752, %v1756
    %v1758 = vlaneseq
    %v1759 = vshrl.u32 %v1758, 7
    %v1760 = vsub.s32 1, %v1759
    %v1761 = vrot.slane %v1752, %v1760
    %v1764 = vmul.f32 %v1757, %v1743
    %v1765 = vmul.f32 %v1761, %v1742
    %v1766 = vstv %s787
    %v1767 = vmul.f32 %v1766, %v1750
    %v1769 = vlaneseq
    %v1770 = vshrl.u32 %v1769, 7
    %v1771 = vsub.s32 0, %v1770
    %v1772 = vrot.slane %v1767, %v1771
    %v1773 = vlaneseq
    %v1774 = vshrl.u32 %v1773, 7
    %v1775 = vsub.s32 1, %v1774
    %v1776 = vrot.slane %v1767, %v1775
    %v1779 = vmul.f32 %v1772, %v1749
    %v1780 = vmul.f32 %v1776, %v1748
    %v1781 = vadd.f32 %v1764, %v1779
    %v1782 = vadd.f32 %v1765, %v1780
    %v1783 = vadd.f32 %v1591, %v1781
    %v1784 = vadd.f32 %v1592, %v1782
    %1785 = vrot.lane.b32.xlu0 %v821, 13
    %v1786 = vpop.permute.xlu0 %1785
    %1787 = vrot.lane.b32.xlu0 %v822, 13
    %v1788 = vpop.permute.xlu0 %1787
    %vm1789 = vcmp.lt.s32.totalorder %v132, 13
    %v1790 = vsel %vm1789, %v1786, %v1788
    %v1791 = vsel %vm1789, %v1788, %v1786
    %1792 = vrot.lane.b32.xlu0 %v555, 13
    %v1793 = vpop.permute.xlu0 %1792
    %1794 = vrot.lane.b32.xlu0 %v556, 13
    %v1795 = vpop.permute.xlu0 %1794
    %v1796 = vsel %vm1789, %v1793, %v1795
    %v1797 = vsel %vm1789, %v1795, %v1793
    %v1798 = vmul.f32 %v663, %v718
    %v1799 = vstv %s739
    %v1800 = vmul.f32 %v1799, %v1798
    %v1802 = vlaneseq
    %v1803 = vshrl.u32 %v1802, 7
    %v1804 = vsub.s32 0, %v1803
    %v1805 = vrot.slane %v1800, %v1804
    %v1806 = vlaneseq
    %v1807 = vshrl.u32 %v1806, 7
    %v1808 = vsub.s32 1, %v1807
    %v1809 = vrot.slane %v1800, %v1808
    %v1812 = vmul.f32 %v1805, %v1791
    %v1813 = vmul.f32 %v1809, %v1790
    %v1814 = vstv %s788
    %v1815 = vmul.f32 %v1814, %v1798
    %v1817 = vlaneseq
    %v1818 = vshrl.u32 %v1817, 7
    %v1819 = vsub.s32 0, %v1818
    %v1820 = vrot.slane %v1815, %v1819
    %v1821 = vlaneseq
    %v1822 = vshrl.u32 %v1821, 7
    %v1823 = vsub.s32 1, %v1822
    %v1824 = vrot.slane %v1815, %v1823
    %v1827 = vmul.f32 %v1820, %v1797
    %v1828 = vmul.f32 %v1824, %v1796
    %v1829 = vadd.f32 %v1812, %v1827
    %v1830 = vadd.f32 %v1813, %v1828
    %v1831 = vadd.f32 %v1639, %v1829
    %v1832 = vadd.f32 %v1640, %v1830
    %1833 = vrot.lane.b32.xlu0 %v821, 3
    %v1834 = vpop.permute.xlu0 %1833
    %1835 = vrot.lane.b32.xlu0 %v822, 3
    %v1836 = vpop.permute.xlu0 %1835
    %vm1837 = vcmp.lt.s32.totalorder %v132, 3
    %v1838 = vsel %vm1837, %v1834, %v1836
    %v1839 = vsel %vm1837, %v1836, %v1834
    %1840 = vrot.lane.b32.xlu0 %v555, 3
    %v1841 = vpop.permute.xlu0 %1840
    %1842 = vrot.lane.b32.xlu0 %v556, 3
    %v1843 = vpop.permute.xlu0 %1842
    %v1844 = vsel %vm1837, %v1841, %v1843
    %v1845 = vsel %vm1837, %v1843, %v1841
    %v1846 = vmul.f32 %v668, %v688
    %v1847 = vstv %s740
    %v1848 = vmul.f32 %v1847, %v1846
    %v1850 = vlaneseq
    %v1851 = vshrl.u32 %v1850, 7
    %v1852 = vsub.s32 0, %v1851
    %v1853 = vrot.slane %v1848, %v1852
    %v1854 = vlaneseq
    %v1855 = vshrl.u32 %v1854, 7
    %v1856 = vsub.s32 1, %v1855
    %v1857 = vrot.slane %v1848, %v1856
    %v1860 = vmul.f32 %v1853, %v1839
    %v1861 = vmul.f32 %v1857, %v1838
    %v1862 = vstv %s789
    %v1863 = vmul.f32 %v1862, %v1846
    %v1865 = vlaneseq
    %v1866 = vshrl.u32 %v1865, 7
    %v1867 = vsub.s32 0, %v1866
    %v1868 = vrot.slane %v1863, %v1867
    %v1869 = vlaneseq
    %v1870 = vshrl.u32 %v1869, 7
    %v1871 = vsub.s32 1, %v1870
    %v1872 = vrot.slane %v1863, %v1871
    %v1875 = vmul.f32 %v1868, %v1845
    %v1876 = vmul.f32 %v1872, %v1844
    %v1877 = vadd.f32 %v1860, %v1875
    %v1878 = vadd.f32 %v1861, %v1876
    %v1879 = vadd.f32 %v1687, %v1877
    %v1880 = vadd.f32 %v1688, %v1878
    %1881 = vrot.lane.b32.xlu0 %v821, 2
    %v1882 = vpop.permute.xlu0 %1881
    %1883 = vrot.lane.b32.xlu0 %v822, 2
    %v1884 = vpop.permute.xlu0 %1883
    %vm1885 = vcmp.lt.s32.totalorder %v132, 2
    %v1886 = vsel %vm1885, %v1882, %v1884
    %v1887 = vsel %vm1885, %v1884, %v1882
    %1888 = vrot.lane.b32.xlu0 %v555, 2
    %v1889 = vpop.permute.xlu0 %1888
    %1890 = vrot.lane.b32.xlu0 %v556, 2
    %v1891 = vpop.permute.xlu0 %1890
    %v1892 = vsel %vm1885, %v1889, %v1891
    %v1893 = vsel %vm1885, %v1891, %v1889
    %v1894 = vmul.f32 %v668, %v693
    %v1895 = vstv %s741
    %v1896 = vmul.f32 %v1895, %v1894
    %v1898 = vlaneseq
    %v1899 = vshrl.u32 %v1898, 7
    %v1900 = vsub.s32 0, %v1899
    %v1901 = vrot.slane %v1896, %v1900
    %v1902 = vlaneseq
    %v1903 = vshrl.u32 %v1902, 7
    %v1904 = vsub.s32 1, %v1903
    %v1905 = vrot.slane %v1896, %v1904
    %v1908 = vmul.f32 %v1901, %v1887
    %v1909 = vmul.f32 %v1905, %v1886
    %v1910 = vstv %s790
    %v1911 = vmul.f32 %v1910, %v1894
    %v1913 = vlaneseq
    %v1914 = vshrl.u32 %v1913, 7
    %v1915 = vsub.s32 0, %v1914
    %v1916 = vrot.slane %v1911, %v1915
    %v1917 = vlaneseq
    %v1918 = vshrl.u32 %v1917, 7
    %v1919 = vsub.s32 1, %v1918
    %v1920 = vrot.slane %v1911, %v1919
    %v1923 = vmul.f32 %v1916, %v1893
    %v1924 = vmul.f32 %v1920, %v1892
    %v1925 = vadd.f32 %v1908, %v1923
    %v1926 = vadd.f32 %v1909, %v1924
    %v1927 = vadd.f32 %v1735, %v1925
    %v1928 = vadd.f32 %v1736, %v1926
    %1929 = vrot.lane.b32.xlu0 %v821, 1
    %v1930 = vpop.permute.xlu0 %1929
    %1931 = vrot.lane.b32.xlu0 %v822, 1
    %v1932 = vpop.permute.xlu0 %1931
    %vm1933 = vcmp.lt.s32.totalorder %v132, 1
    %v1934 = vsel %vm1933, %v1930, %v1932
    %v1935 = vsel %vm1933, %v1932, %v1930
    %1936 = vrot.lane.b32.xlu0 %v555, 1
    %v1937 = vpop.permute.xlu0 %1936
    %1938 = vrot.lane.b32.xlu0 %v556, 1
    %v1939 = vpop.permute.xlu0 %1938
    %v1940 = vsel %vm1933, %v1937, %v1939
    %v1941 = vsel %vm1933, %v1939, %v1937
    %v1942 = vmul.f32 %v668, %v698
    %v1943 = vstv %s742
    %v1944 = vmul.f32 %v1943, %v1942
    %v1946 = vlaneseq
    %v1947 = vshrl.u32 %v1946, 7
    %v1948 = vsub.s32 0, %v1947
    %v1949 = vrot.slane %v1944, %v1948
    %v1950 = vlaneseq
    %v1951 = vshrl.u32 %v1950, 7
    %v1952 = vsub.s32 1, %v1951
    %v1953 = vrot.slane %v1944, %v1952
    %v1956 = vmul.f32 %v1949, %v1935
    %v1957 = vmul.f32 %v1953, %v1934
    %v1958 = vstv %s791
    %v1959 = vmul.f32 %v1958, %v1942
    %v1961 = vlaneseq
    %v1962 = vshrl.u32 %v1961, 7
    %v1963 = vsub.s32 0, %v1962
    %v1964 = vrot.slane %v1959, %v1963
    %v1965 = vlaneseq
    %v1966 = vshrl.u32 %v1965, 7
    %v1967 = vsub.s32 1, %v1966
    %v1968 = vrot.slane %v1959, %v1967
    %v1971 = vmul.f32 %v1964, %v1941
    %v1972 = vmul.f32 %v1968, %v1940
    %v1973 = vadd.f32 %v1956, %v1971
    %v1974 = vadd.f32 %v1957, %v1972
    %v1975 = vadd.f32 %v1783, %v1973
    %v1976 = vadd.f32 %v1784, %v1974
    %v1977 = vmul.f32 %v668, %v703
    %v1978 = vstv %s743
    %v1979 = vmul.f32 %v1978, %v1977
    %v1981 = vlaneseq
    %v1982 = vshrl.u32 %v1981, 7
    %v1983 = vsub.s32 0, %v1982
    %v1984 = vrot.slane %v1979, %v1983
    %v1985 = vlaneseq
    %v1986 = vshrl.u32 %v1985, 7
    %v1987 = vsub.s32 1, %v1986
    %v1988 = vrot.slane %v1979, %v1987
    %v1991 = vmul.f32 %v1984, %v821
    %v1992 = vmul.f32 %v1988, %v822
    %v1993 = vstv %s792
    %v1994 = vmul.f32 %v1993, %v1977
    %v1996 = vlaneseq
    %v1997 = vshrl.u32 %v1996, 7
    %v1998 = vsub.s32 0, %v1997
    %v1999 = vrot.slane %v1994, %v1998
    %v2000 = vlaneseq
    %v2001 = vshrl.u32 %v2000, 7
    %v2002 = vsub.s32 1, %v2001
    %v2003 = vrot.slane %v1994, %v2002
    %v2006 = vmul.f32 %v1999, %v555
    %v2007 = vmul.f32 %v2003, %v556
    %v2008 = vadd.f32 %v1991, %v2006
    %v2009 = vadd.f32 %v1992, %v2007
    %v2010 = vadd.f32 %v1831, %v2008
    %v2011 = vadd.f32 %v1832, %v2009
    %2012 = vrot.lane.b32.xlu0 %v821, 127
    %v2013 = vpop.permute.xlu0 %2012
    %2014 = vrot.lane.b32.xlu0 %v822, 127
    %v2015 = vpop.permute.xlu0 %2014
    %vm2016 = vcmp.lt.s32.totalorder %v132, 127
    %v2017 = vsel %vm2016, %v2013, %v2015
    %v2018 = vsel %vm2016, %v2015, %v2013
    %2019 = vrot.lane.b32.xlu0 %v555, 127
    %v2020 = vpop.permute.xlu0 %2019
    %2021 = vrot.lane.b32.xlu0 %v556, 127
    %v2022 = vpop.permute.xlu0 %2021
    %v2023 = vsel %vm2016, %v2020, %v2022
    %v2024 = vsel %vm2016, %v2022, %v2020
    %v2025 = vmul.f32 %v668, %v708
    %v2026 = vstv %s744
    %v2027 = vmul.f32 %v2026, %v2025
    %v2029 = vlaneseq
    %v2030 = vshrl.u32 %v2029, 7
    %v2031 = vsub.s32 0, %v2030
    %v2032 = vrot.slane %v2027, %v2031
    %v2033 = vlaneseq
    %v2034 = vshrl.u32 %v2033, 7
    %v2035 = vsub.s32 1, %v2034
    %v2036 = vrot.slane %v2027, %v2035
    %v2039 = vmul.f32 %v2032, %v2017
    %v2040 = vmul.f32 %v2036, %v2018
    %v2041 = vstv %s793
    %v2042 = vmul.f32 %v2041, %v2025
    %v2044 = vlaneseq
    %v2045 = vshrl.u32 %v2044, 7
    %v2046 = vsub.s32 0, %v2045
    %v2047 = vrot.slane %v2042, %v2046
    %v2048 = vlaneseq
    %v2049 = vshrl.u32 %v2048, 7
    %v2050 = vsub.s32 1, %v2049
    %v2051 = vrot.slane %v2042, %v2050
    %v2054 = vmul.f32 %v2047, %v2023
    %v2055 = vmul.f32 %v2051, %v2024
    %v2056 = vadd.f32 %v2039, %v2054
    %v2057 = vadd.f32 %v2040, %v2055
    %v2058 = vadd.f32 %v1879, %v2056
    %v2059 = vadd.f32 %v1880, %v2057
    %2060 = vrot.lane.b32.xlu0 %v821, 126
    %v2061 = vpop.permute.xlu0 %2060
    %2062 = vrot.lane.b32.xlu0 %v822, 126
    %v2063 = vpop.permute.xlu0 %2062
    %vm2064 = vcmp.lt.s32.totalorder %v132, 126
    %v2065 = vsel %vm2064, %v2061, %v2063
    %v2066 = vsel %vm2064, %v2063, %v2061
    %2067 = vrot.lane.b32.xlu0 %v555, 126
    %v2068 = vpop.permute.xlu0 %2067
    %2069 = vrot.lane.b32.xlu0 %v556, 126
    %v2070 = vpop.permute.xlu0 %2069
    %v2071 = vsel %vm2064, %v2068, %v2070
    %v2072 = vsel %vm2064, %v2070, %v2068
    %v2073 = vmul.f32 %v668, %v713
    %v2074 = vstv %s745
    %v2075 = vmul.f32 %v2074, %v2073
    %v2077 = vlaneseq
    %v2078 = vshrl.u32 %v2077, 7
    %v2079 = vsub.s32 0, %v2078
    %v2080 = vrot.slane %v2075, %v2079
    %v2081 = vlaneseq
    %v2082 = vshrl.u32 %v2081, 7
    %v2083 = vsub.s32 1, %v2082
    %v2084 = vrot.slane %v2075, %v2083
    %v2087 = vmul.f32 %v2080, %v2065
    %v2088 = vmul.f32 %v2084, %v2066
    %v2089 = vstv %s794
    %v2090 = vmul.f32 %v2089, %v2073
    %v2092 = vlaneseq
    %v2093 = vshrl.u32 %v2092, 7
    %v2094 = vsub.s32 0, %v2093
    %v2095 = vrot.slane %v2090, %v2094
    %v2096 = vlaneseq
    %v2097 = vshrl.u32 %v2096, 7
    %v2098 = vsub.s32 1, %v2097
    %v2099 = vrot.slane %v2090, %v2098
    %v2102 = vmul.f32 %v2095, %v2071
    %v2103 = vmul.f32 %v2099, %v2072
    %v2104 = vadd.f32 %v2087, %v2102
    %v2105 = vadd.f32 %v2088, %v2103
    %v2106 = vadd.f32 %v1927, %v2104
    %v2107 = vadd.f32 %v1928, %v2105
    %2108 = vrot.lane.b32.xlu0 %v821, 125
    %v2109 = vpop.permute.xlu0 %2108
    %2110 = vrot.lane.b32.xlu0 %v822, 125
    %v2111 = vpop.permute.xlu0 %2110
    %vm2112 = vcmp.lt.s32.totalorder %v132, 125
    %v2113 = vsel %vm2112, %v2109, %v2111
    %v2114 = vsel %vm2112, %v2111, %v2109
    %2115 = vrot.lane.b32.xlu0 %v555, 125
    %v2116 = vpop.permute.xlu0 %2115
    %2117 = vrot.lane.b32.xlu0 %v556, 125
    %v2118 = vpop.permute.xlu0 %2117
    %v2119 = vsel %vm2112, %v2116, %v2118
    %v2120 = vsel %vm2112, %v2118, %v2116
    %v2121 = vmul.f32 %v668, %v718
    %v2122 = vstv %s746
    %v2123 = vmul.f32 %v2122, %v2121
    %v2125 = vlaneseq
    %v2126 = vshrl.u32 %v2125, 7
    %v2127 = vsub.s32 0, %v2126
    %v2128 = vrot.slane %v2123, %v2127
    %v2129 = vlaneseq
    %v2130 = vshrl.u32 %v2129, 7
    %v2131 = vsub.s32 1, %v2130
    %v2132 = vrot.slane %v2123, %v2131
    %v2135 = vmul.f32 %v2128, %v2113
    %v2136 = vmul.f32 %v2132, %v2114
    %v2137 = vstv %s795
    %v2138 = vmul.f32 %v2137, %v2121
    %v2140 = vlaneseq
    %v2141 = vshrl.u32 %v2140, 7
    %v2142 = vsub.s32 0, %v2141
    %v2143 = vrot.slane %v2138, %v2142
    %v2144 = vlaneseq
    %v2145 = vshrl.u32 %v2144, 7
    %v2146 = vsub.s32 1, %v2145
    %v2147 = vrot.slane %v2138, %v2146
    %v2150 = vmul.f32 %v2143, %v2119
    %v2151 = vmul.f32 %v2147, %v2120
    %v2152 = vadd.f32 %v2135, %v2150
    %v2153 = vadd.f32 %v2136, %v2151
    %v2154 = vadd.f32 %v1975, %v2152
    %v2155 = vadd.f32 %v1976, %v2153
    %2156 = vrot.lane.b32.xlu0 %v821, 115
    %v2157 = vpop.permute.xlu0 %2156
    %2158 = vrot.lane.b32.xlu0 %v822, 115
    %v2159 = vpop.permute.xlu0 %2158
    %vm2160 = vcmp.lt.s32.totalorder %v132, 115
    %v2161 = vsel %vm2160, %v2157, %v2159
    %v2162 = vsel %vm2160, %v2159, %v2157
    %2163 = vrot.lane.b32.xlu0 %v555, 115
    %v2164 = vpop.permute.xlu0 %2163
    %2165 = vrot.lane.b32.xlu0 %v556, 115
    %v2166 = vpop.permute.xlu0 %2165
    %v2167 = vsel %vm2160, %v2164, %v2166
    %v2168 = vsel %vm2160, %v2166, %v2164
    %v2169 = vmul.f32 %v673, %v688
    %v2170 = vstv %s747
    %v2171 = vmul.f32 %v2170, %v2169
    %v2173 = vlaneseq
    %v2174 = vshrl.u32 %v2173, 7
    %v2175 = vsub.s32 0, %v2174
    %v2176 = vrot.slane %v2171, %v2175
    %v2177 = vlaneseq
    %v2178 = vshrl.u32 %v2177, 7
    %v2179 = vsub.s32 1, %v2178
    %v2180 = vrot.slane %v2171, %v2179
    %v2183 = vmul.f32 %v2176, %v2161
    %v2184 = vmul.f32 %v2180, %v2162
    %v2185 = vstv %s796
    %v2186 = vmul.f32 %v2185, %v2169
    %v2188 = vlaneseq
    %v2189 = vshrl.u32 %v2188, 7
    %v2190 = vsub.s32 0, %v2189
    %v2191 = vrot.slane %v2186, %v2190
    %v2192 = vlaneseq
    %v2193 = vshrl.u32 %v2192, 7
    %v2194 = vsub.s32 1, %v2193
    %v2195 = vrot.slane %v2186, %v2194
    %v2198 = vmul.f32 %v2191, %v2167
    %v2199 = vmul.f32 %v2195, %v2168
    %v2200 = vadd.f32 %v2183, %v2198
    %v2201 = vadd.f32 %v2184, %v2199
    %v2202 = vadd.f32 %v2010, %v2200
    %v2203 = vadd.f32 %v2011, %v2201
    %2204 = vrot.lane.b32.xlu0 %v821, 114
    %v2205 = vpop.permute.xlu0 %2204
    %2206 = vrot.lane.b32.xlu0 %v822, 114
    %v2207 = vpop.permute.xlu0 %2206
    %vm2208 = vcmp.lt.s32.totalorder %v132, 114
    %v2209 = vsel %vm2208, %v2205, %v2207
    %v2210 = vsel %vm2208, %v2207, %v2205
    %2211 = vrot.lane.b32.xlu0 %v555, 114
    %v2212 = vpop.permute.xlu0 %2211
    %2213 = vrot.lane.b32.xlu0 %v556, 114
    %v2214 = vpop.permute.xlu0 %2213
    %v2215 = vsel %vm2208, %v2212, %v2214
    %v2216 = vsel %vm2208, %v2214, %v2212
    %v2217 = vmul.f32 %v673, %v693
    %v2218 = vstv %s748
    %v2219 = vmul.f32 %v2218, %v2217
    %v2221 = vlaneseq
    %v2222 = vshrl.u32 %v2221, 7
    %v2223 = vsub.s32 0, %v2222
    %v2224 = vrot.slane %v2219, %v2223
    %v2225 = vlaneseq
    %v2226 = vshrl.u32 %v2225, 7
    %v2227 = vsub.s32 1, %v2226
    %v2228 = vrot.slane %v2219, %v2227
    %v2231 = vmul.f32 %v2224, %v2209
    %v2232 = vmul.f32 %v2228, %v2210
    %v2233 = vstv %s797
    %v2234 = vmul.f32 %v2233, %v2217
    %v2236 = vlaneseq
    %v2237 = vshrl.u32 %v2236, 7
    %v2238 = vsub.s32 0, %v2237
    %v2239 = vrot.slane %v2234, %v2238
    %v2240 = vlaneseq
    %v2241 = vshrl.u32 %v2240, 7
    %v2242 = vsub.s32 1, %v2241
    %v2243 = vrot.slane %v2234, %v2242
    %v2246 = vmul.f32 %v2239, %v2215
    %v2247 = vmul.f32 %v2243, %v2216
    %v2248 = vadd.f32 %v2231, %v2246
    %v2249 = vadd.f32 %v2232, %v2247
    %v2250 = vadd.f32 %v2058, %v2248
    %v2251 = vadd.f32 %v2059, %v2249
    %2252 = vrot.lane.b32.xlu0 %v821, 113
    %v2253 = vpop.permute.xlu0 %2252
    %2254 = vrot.lane.b32.xlu0 %v822, 113
    %v2255 = vpop.permute.xlu0 %2254
    %vm2256 = vcmp.lt.s32.totalorder %v132, 113
    %v2257 = vsel %vm2256, %v2253, %v2255
    %v2258 = vsel %vm2256, %v2255, %v2253
    %2259 = vrot.lane.b32.xlu0 %v555, 113
    %v2260 = vpop.permute.xlu0 %2259
    %2261 = vrot.lane.b32.xlu0 %v556, 113
    %v2262 = vpop.permute.xlu0 %2261
    %v2263 = vsel %vm2256, %v2260, %v2262
    %v2264 = vsel %vm2256, %v2262, %v2260
    %v2265 = vmul.f32 %v673, %v698
    %v2266 = vstv %s749
    %v2267 = vmul.f32 %v2266, %v2265
    %v2269 = vlaneseq
    %v2270 = vshrl.u32 %v2269, 7
    %v2271 = vsub.s32 0, %v2270
    %v2272 = vrot.slane %v2267, %v2271
    %v2273 = vlaneseq
    %v2274 = vshrl.u32 %v2273, 7
    %v2275 = vsub.s32 1, %v2274
    %v2276 = vrot.slane %v2267, %v2275
    %v2279 = vmul.f32 %v2272, %v2257
    %v2280 = vmul.f32 %v2276, %v2258
    %v2281 = vstv %s798
    %v2282 = vmul.f32 %v2281, %v2265
    %v2284 = vlaneseq
    %v2285 = vshrl.u32 %v2284, 7
    %v2286 = vsub.s32 0, %v2285
    %v2287 = vrot.slane %v2282, %v2286
    %v2288 = vlaneseq
    %v2289 = vshrl.u32 %v2288, 7
    %v2290 = vsub.s32 1, %v2289
    %v2291 = vrot.slane %v2282, %v2290
    %v2294 = vmul.f32 %v2287, %v2263
    %v2295 = vmul.f32 %v2291, %v2264
    %v2296 = vadd.f32 %v2279, %v2294
    %v2297 = vadd.f32 %v2280, %v2295
    %v2298 = vadd.f32 %v2106, %v2296
    %v2299 = vadd.f32 %v2107, %v2297
    %2300 = vrot.lane.b32.xlu0 %v821, 112
    %v2301 = vpop.permute.xlu0 %2300
    %2302 = vrot.lane.b32.xlu0 %v822, 112
    %v2303 = vpop.permute.xlu0 %2302
    %vm2304 = vcmp.lt.s32.totalorder %v132, 112
    %v2305 = vsel %vm2304, %v2301, %v2303
    %v2306 = vsel %vm2304, %v2303, %v2301
    %2307 = vrot.lane.b32.xlu0 %v555, 112
    %v2308 = vpop.permute.xlu0 %2307
    %2309 = vrot.lane.b32.xlu0 %v556, 112
    %v2310 = vpop.permute.xlu0 %2309
    %v2311 = vsel %vm2304, %v2308, %v2310
    %v2312 = vsel %vm2304, %v2310, %v2308
    %v2313 = vmul.f32 %v673, %v703
    %v2314 = vstv %s750
    %v2315 = vmul.f32 %v2314, %v2313
    %v2317 = vlaneseq
    %v2318 = vshrl.u32 %v2317, 7
    %v2319 = vsub.s32 0, %v2318
    %v2320 = vrot.slane %v2315, %v2319
    %v2321 = vlaneseq
    %v2322 = vshrl.u32 %v2321, 7
    %v2323 = vsub.s32 1, %v2322
    %v2324 = vrot.slane %v2315, %v2323
    %v2327 = vmul.f32 %v2320, %v2305
    %v2328 = vmul.f32 %v2324, %v2306
    %v2329 = vstv %s799
    %v2330 = vmul.f32 %v2329, %v2313
    %v2332 = vlaneseq
    %v2333 = vshrl.u32 %v2332, 7
    %v2334 = vsub.s32 0, %v2333
    %v2335 = vrot.slane %v2330, %v2334
    %v2336 = vlaneseq
    %v2337 = vshrl.u32 %v2336, 7
    %v2338 = vsub.s32 1, %v2337
    %v2339 = vrot.slane %v2330, %v2338
    %v2342 = vmul.f32 %v2335, %v2311
    %v2343 = vmul.f32 %v2339, %v2312
    %v2344 = vadd.f32 %v2327, %v2342
    %v2345 = vadd.f32 %v2328, %v2343
    %v2346 = vadd.f32 %v2154, %v2344
    %v2347 = vadd.f32 %v2155, %v2345
    %2348 = vrot.lane.b32.xlu0 %v821, 111
    %v2349 = vpop.permute.xlu0 %2348
    %2350 = vrot.lane.b32.xlu0 %v822, 111
    %v2351 = vpop.permute.xlu0 %2350
    %vm2352 = vcmp.lt.s32.totalorder %v132, 111
    %v2353 = vsel %vm2352, %v2349, %v2351
    %v2354 = vsel %vm2352, %v2351, %v2349
    %2355 = vrot.lane.b32.xlu0 %v555, 111
    %v2356 = vpop.permute.xlu0 %2355
    %2357 = vrot.lane.b32.xlu0 %v556, 111
    %v2358 = vpop.permute.xlu0 %2357
    %v2359 = vsel %vm2352, %v2356, %v2358
    %v2360 = vsel %vm2352, %v2358, %v2356
    %v2361 = vmul.f32 %v673, %v708
    %v2362 = vstv %s751
    %v2363 = vmul.f32 %v2362, %v2361
    %v2365 = vlaneseq
    %v2366 = vshrl.u32 %v2365, 7
    %v2367 = vsub.s32 0, %v2366
    %v2368 = vrot.slane %v2363, %v2367
    %v2369 = vlaneseq
    %v2370 = vshrl.u32 %v2369, 7
    %v2371 = vsub.s32 1, %v2370
    %v2372 = vrot.slane %v2363, %v2371
    %v2375 = vmul.f32 %v2368, %v2353
    %v2376 = vmul.f32 %v2372, %v2354
    %v2377 = vstv %s800
    %v2378 = vmul.f32 %v2377, %v2361
    %v2380 = vlaneseq
    %v2381 = vshrl.u32 %v2380, 7
    %v2382 = vsub.s32 0, %v2381
    %v2383 = vrot.slane %v2378, %v2382
    %v2384 = vlaneseq
    %v2385 = vshrl.u32 %v2384, 7
    %v2386 = vsub.s32 1, %v2385
    %v2387 = vrot.slane %v2378, %v2386
    %v2390 = vmul.f32 %v2383, %v2359
    %v2391 = vmul.f32 %v2387, %v2360
    %v2392 = vadd.f32 %v2375, %v2390
    %v2393 = vadd.f32 %v2376, %v2391
    %v2394 = vadd.f32 %v2202, %v2392
    %v2395 = vadd.f32 %v2203, %v2393
    %2396 = vrot.lane.b32.xlu0 %v821, 110
    %v2397 = vpop.permute.xlu0 %2396
    %2398 = vrot.lane.b32.xlu0 %v822, 110
    %v2399 = vpop.permute.xlu0 %2398
    %vm2400 = vcmp.lt.s32.totalorder %v132, 110
    %v2401 = vsel %vm2400, %v2397, %v2399
    %v2402 = vsel %vm2400, %v2399, %v2397
    %2403 = vrot.lane.b32.xlu0 %v555, 110
    %v2404 = vpop.permute.xlu0 %2403
    %2405 = vrot.lane.b32.xlu0 %v556, 110
    %v2406 = vpop.permute.xlu0 %2405
    %v2407 = vsel %vm2400, %v2404, %v2406
    %v2408 = vsel %vm2400, %v2406, %v2404
    %v2409 = vmul.f32 %v673, %v713
    %v2410 = vstv %s752
    %v2411 = vmul.f32 %v2410, %v2409
    %v2413 = vlaneseq
    %v2414 = vshrl.u32 %v2413, 7
    %v2415 = vsub.s32 0, %v2414
    %v2416 = vrot.slane %v2411, %v2415
    %v2417 = vlaneseq
    %v2418 = vshrl.u32 %v2417, 7
    %v2419 = vsub.s32 1, %v2418
    %v2420 = vrot.slane %v2411, %v2419
    %v2423 = vmul.f32 %v2416, %v2401
    %v2424 = vmul.f32 %v2420, %v2402
    %v2425 = vstv %s801
    %v2426 = vmul.f32 %v2425, %v2409
    %v2428 = vlaneseq
    %v2429 = vshrl.u32 %v2428, 7
    %v2430 = vsub.s32 0, %v2429
    %v2431 = vrot.slane %v2426, %v2430
    %v2432 = vlaneseq
    %v2433 = vshrl.u32 %v2432, 7
    %v2434 = vsub.s32 1, %v2433
    %v2435 = vrot.slane %v2426, %v2434
    %v2438 = vmul.f32 %v2431, %v2407
    %v2439 = vmul.f32 %v2435, %v2408
    %v2440 = vadd.f32 %v2423, %v2438
    %v2441 = vadd.f32 %v2424, %v2439
    %v2442 = vadd.f32 %v2250, %v2440
    %v2443 = vadd.f32 %v2251, %v2441
    %2444 = vrot.lane.b32.xlu0 %v821, 109
    %v2445 = vpop.permute.xlu0 %2444
    %2446 = vrot.lane.b32.xlu0 %v822, 109
    %v2447 = vpop.permute.xlu0 %2446
    %vm2448 = vcmp.lt.s32.totalorder %v132, 109
    %v2449 = vsel %vm2448, %v2445, %v2447
    %v2450 = vsel %vm2448, %v2447, %v2445
    %2451 = vrot.lane.b32.xlu0 %v555, 109
    %v2452 = vpop.permute.xlu0 %2451
    %2453 = vrot.lane.b32.xlu0 %v556, 109
    %v2454 = vpop.permute.xlu0 %2453
    %v2455 = vsel %vm2448, %v2452, %v2454
    %v2456 = vsel %vm2448, %v2454, %v2452
    %v2457 = vmul.f32 %v673, %v718
    %v2458 = vstv %s753
    %v2459 = vmul.f32 %v2458, %v2457
    %v2461 = vlaneseq
    %v2462 = vshrl.u32 %v2461, 7
    %v2463 = vsub.s32 0, %v2462
    %v2464 = vrot.slane %v2459, %v2463
    %v2465 = vlaneseq
    %v2466 = vshrl.u32 %v2465, 7
    %v2467 = vsub.s32 1, %v2466
    %v2468 = vrot.slane %v2459, %v2467
    %v2471 = vmul.f32 %v2464, %v2449
    %v2472 = vmul.f32 %v2468, %v2450
    %v2473 = vstv %s802
    %v2474 = vmul.f32 %v2473, %v2457
    %v2476 = vlaneseq
    %v2477 = vshrl.u32 %v2476, 7
    %v2478 = vsub.s32 0, %v2477
    %v2479 = vrot.slane %v2474, %v2478
    %v2480 = vlaneseq
    %v2481 = vshrl.u32 %v2480, 7
    %v2482 = vsub.s32 1, %v2481
    %v2483 = vrot.slane %v2474, %v2482
    %v2486 = vmul.f32 %v2479, %v2455
    %v2487 = vmul.f32 %v2483, %v2456
    %v2488 = vadd.f32 %v2471, %v2486
    %v2489 = vadd.f32 %v2472, %v2487
    %v2490 = vadd.f32 %v2298, %v2488
    %v2491 = vadd.f32 %v2299, %v2489
    %2492 = vrot.lane.b32.xlu0 %v821, 99
    %v2493 = vpop.permute.xlu0 %2492
    %2494 = vrot.lane.b32.xlu0 %v822, 99
    %v2495 = vpop.permute.xlu0 %2494
    %vm2496 = vcmp.lt.s32.totalorder %v132, 99
    %v2497 = vsel %vm2496, %v2493, %v2495
    %v2498 = vsel %vm2496, %v2495, %v2493
    %2499 = vrot.lane.b32.xlu0 %v555, 99
    %v2500 = vpop.permute.xlu0 %2499
    %2501 = vrot.lane.b32.xlu0 %v556, 99
    %v2502 = vpop.permute.xlu0 %2501
    %v2503 = vsel %vm2496, %v2500, %v2502
    %v2504 = vsel %vm2496, %v2502, %v2500
    %v2505 = vmul.f32 %v678, %v688
    %v2506 = vstv %s754
    %v2507 = vmul.f32 %v2506, %v2505
    %v2509 = vlaneseq
    %v2510 = vshrl.u32 %v2509, 7
    %v2511 = vsub.s32 0, %v2510
    %v2512 = vrot.slane %v2507, %v2511
    %v2513 = vlaneseq
    %v2514 = vshrl.u32 %v2513, 7
    %v2515 = vsub.s32 1, %v2514
    %v2516 = vrot.slane %v2507, %v2515
    %v2519 = vmul.f32 %v2512, %v2497
    %v2520 = vmul.f32 %v2516, %v2498
    %v2521 = vstv %s803
    %v2522 = vmul.f32 %v2521, %v2505
    %v2524 = vlaneseq
    %v2525 = vshrl.u32 %v2524, 7
    %v2526 = vsub.s32 0, %v2525
    %v2527 = vrot.slane %v2522, %v2526
    %v2528 = vlaneseq
    %v2529 = vshrl.u32 %v2528, 7
    %v2530 = vsub.s32 1, %v2529
    %v2531 = vrot.slane %v2522, %v2530
    %v2534 = vmul.f32 %v2527, %v2503
    %v2535 = vmul.f32 %v2531, %v2504
    %v2536 = vadd.f32 %v2519, %v2534
    %v2537 = vadd.f32 %v2520, %v2535
    %v2538 = vadd.f32 %v2346, %v2536
    %v2539 = vadd.f32 %v2347, %v2537
    %2540 = vrot.lane.b32.xlu0 %v821, 98
    %v2541 = vpop.permute.xlu0 %2540
    %2542 = vrot.lane.b32.xlu0 %v822, 98
    %v2543 = vpop.permute.xlu0 %2542
    %vm2544 = vcmp.lt.s32.totalorder %v132, 98
    %v2545 = vsel %vm2544, %v2541, %v2543
    %v2546 = vsel %vm2544, %v2543, %v2541
    %2547 = vrot.lane.b32.xlu0 %v555, 98
    %v2548 = vpop.permute.xlu0 %2547
    %2549 = vrot.lane.b32.xlu0 %v556, 98
    %v2550 = vpop.permute.xlu0 %2549
    %v2551 = vsel %vm2544, %v2548, %v2550
    %v2552 = vsel %vm2544, %v2550, %v2548
    %v2553 = vmul.f32 %v678, %v693
    %v2554 = vstv %s755
    %v2555 = vmul.f32 %v2554, %v2553
    %v2557 = vlaneseq
    %v2558 = vshrl.u32 %v2557, 7
    %v2559 = vsub.s32 0, %v2558
    %v2560 = vrot.slane %v2555, %v2559
    %v2561 = vlaneseq
    %v2562 = vshrl.u32 %v2561, 7
    %v2563 = vsub.s32 1, %v2562
    %v2564 = vrot.slane %v2555, %v2563
    %v2567 = vmul.f32 %v2560, %v2545
    %v2568 = vmul.f32 %v2564, %v2546
    %v2569 = vstv %s804
    %v2570 = vmul.f32 %v2569, %v2553
    %v2572 = vlaneseq
    %v2573 = vshrl.u32 %v2572, 7
    %v2574 = vsub.s32 0, %v2573
    %v2575 = vrot.slane %v2570, %v2574
    %v2576 = vlaneseq
    %v2577 = vshrl.u32 %v2576, 7
    %v2578 = vsub.s32 1, %v2577
    %v2579 = vrot.slane %v2570, %v2578
    %v2582 = vmul.f32 %v2575, %v2551
    %v2583 = vmul.f32 %v2579, %v2552
    %v2584 = vadd.f32 %v2567, %v2582
    %v2585 = vadd.f32 %v2568, %v2583
    %v2586 = vadd.f32 %v2394, %v2584
    %v2587 = vadd.f32 %v2395, %v2585
    %2588 = vrot.lane.b32.xlu0 %v821, 97
    %v2589 = vpop.permute.xlu0 %2588
    %2590 = vrot.lane.b32.xlu0 %v822, 97
    %v2591 = vpop.permute.xlu0 %2590
    %vm2592 = vcmp.lt.s32.totalorder %v132, 97
    %v2593 = vsel %vm2592, %v2589, %v2591
    %v2594 = vsel %vm2592, %v2591, %v2589
    %2595 = vrot.lane.b32.xlu0 %v555, 97
    %v2596 = vpop.permute.xlu0 %2595
    %2597 = vrot.lane.b32.xlu0 %v556, 97
    %v2598 = vpop.permute.xlu0 %2597
    %v2599 = vsel %vm2592, %v2596, %v2598
    %v2600 = vsel %vm2592, %v2598, %v2596
    %v2601 = vmul.f32 %v678, %v698
    %v2602 = vstv %s756
    %v2603 = vmul.f32 %v2602, %v2601
    %v2605 = vlaneseq
    %v2606 = vshrl.u32 %v2605, 7
    %v2607 = vsub.s32 0, %v2606
    %v2608 = vrot.slane %v2603, %v2607
    %v2609 = vlaneseq
    %v2610 = vshrl.u32 %v2609, 7
    %v2611 = vsub.s32 1, %v2610
    %v2612 = vrot.slane %v2603, %v2611
    %v2615 = vmul.f32 %v2608, %v2593
    %v2616 = vmul.f32 %v2612, %v2594
    %v2617 = vstv %s805
    %v2618 = vmul.f32 %v2617, %v2601
    %v2620 = vlaneseq
    %v2621 = vshrl.u32 %v2620, 7
    %v2622 = vsub.s32 0, %v2621
    %v2623 = vrot.slane %v2618, %v2622
    %v2624 = vlaneseq
    %v2625 = vshrl.u32 %v2624, 7
    %v2626 = vsub.s32 1, %v2625
    %v2627 = vrot.slane %v2618, %v2626
    %v2630 = vmul.f32 %v2623, %v2599
    %v2631 = vmul.f32 %v2627, %v2600
    %v2632 = vadd.f32 %v2615, %v2630
    %v2633 = vadd.f32 %v2616, %v2631
    %v2634 = vadd.f32 %v2442, %v2632
    %v2635 = vadd.f32 %v2443, %v2633
    %2636 = vrot.lane.b32.xlu0 %v821, 96
    %v2637 = vpop.permute.xlu0 %2636
    %2638 = vrot.lane.b32.xlu0 %v822, 96
    %v2639 = vpop.permute.xlu0 %2638
    %vm2640 = vcmp.lt.s32.totalorder %v132, 96
    %v2641 = vsel %vm2640, %v2637, %v2639
    %v2642 = vsel %vm2640, %v2639, %v2637
    %2643 = vrot.lane.b32.xlu0 %v555, 96
    %v2644 = vpop.permute.xlu0 %2643
    %2645 = vrot.lane.b32.xlu0 %v556, 96
    %v2646 = vpop.permute.xlu0 %2645
    %v2647 = vsel %vm2640, %v2644, %v2646
    %v2648 = vsel %vm2640, %v2646, %v2644
    %v2649 = vmul.f32 %v678, %v703
    %v2650 = vstv %s757
    %v2651 = vmul.f32 %v2650, %v2649
    %v2653 = vlaneseq
    %v2654 = vshrl.u32 %v2653, 7
    %v2655 = vsub.s32 0, %v2654
    %v2656 = vrot.slane %v2651, %v2655
    %v2657 = vlaneseq
    %v2658 = vshrl.u32 %v2657, 7
    %v2659 = vsub.s32 1, %v2658
    %v2660 = vrot.slane %v2651, %v2659
    %v2663 = vmul.f32 %v2656, %v2641
    %v2664 = vmul.f32 %v2660, %v2642
    %v2665 = vstv %s806
    %v2666 = vmul.f32 %v2665, %v2649
    %v2668 = vlaneseq
    %v2669 = vshrl.u32 %v2668, 7
    %v2670 = vsub.s32 0, %v2669
    %v2671 = vrot.slane %v2666, %v2670
    %v2672 = vlaneseq
    %v2673 = vshrl.u32 %v2672, 7
    %v2674 = vsub.s32 1, %v2673
    %v2675 = vrot.slane %v2666, %v2674
    %v2678 = vmul.f32 %v2671, %v2647
    %v2679 = vmul.f32 %v2675, %v2648
    %v2680 = vadd.f32 %v2663, %v2678
    %v2681 = vadd.f32 %v2664, %v2679
    %v2682 = vadd.f32 %v2490, %v2680
    %v2683 = vadd.f32 %v2491, %v2681
    %2684 = vrot.lane.b32.xlu0 %v821, 95
    %v2685 = vpop.permute.xlu0 %2684
    %2686 = vrot.lane.b32.xlu0 %v822, 95
    %v2687 = vpop.permute.xlu0 %2686
    %vm2688 = vcmp.lt.s32.totalorder %v132, 95
    %v2689 = vsel %vm2688, %v2685, %v2687
    %v2690 = vsel %vm2688, %v2687, %v2685
    %2691 = vrot.lane.b32.xlu0 %v555, 95
    %v2692 = vpop.permute.xlu0 %2691
    %2693 = vrot.lane.b32.xlu0 %v556, 95
    %v2694 = vpop.permute.xlu0 %2693
    %v2695 = vsel %vm2688, %v2692, %v2694
    %v2696 = vsel %vm2688, %v2694, %v2692
    %v2697 = vmul.f32 %v678, %v708
    %v2698 = vstv %s758
    %v2699 = vmul.f32 %v2698, %v2697
    %v2701 = vlaneseq
    %v2702 = vshrl.u32 %v2701, 7
    %v2703 = vsub.s32 0, %v2702
    %v2704 = vrot.slane %v2699, %v2703
    %v2705 = vlaneseq
    %v2706 = vshrl.u32 %v2705, 7
    %v2707 = vsub.s32 1, %v2706
    %v2708 = vrot.slane %v2699, %v2707
    %v2711 = vmul.f32 %v2704, %v2689
    %v2712 = vmul.f32 %v2708, %v2690
    %v2713 = vstv %s807
    %v2714 = vmul.f32 %v2713, %v2697
    %v2716 = vlaneseq
    %v2717 = vshrl.u32 %v2716, 7
    %v2718 = vsub.s32 0, %v2717
    %v2719 = vrot.slane %v2714, %v2718
    %v2720 = vlaneseq
    %v2721 = vshrl.u32 %v2720, 7
    %v2722 = vsub.s32 1, %v2721
    %v2723 = vrot.slane %v2714, %v2722
    %v2726 = vmul.f32 %v2719, %v2695
    %v2727 = vmul.f32 %v2723, %v2696
    %v2728 = vadd.f32 %v2711, %v2726
    %v2729 = vadd.f32 %v2712, %v2727
    %v2730 = vadd.f32 %v2538, %v2728
    %v2731 = vadd.f32 %v2539, %v2729
    %2732 = vrot.lane.b32.xlu0 %v821, 94
    %v2733 = vpop.permute.xlu0 %2732
    %2734 = vrot.lane.b32.xlu0 %v822, 94
    %v2735 = vpop.permute.xlu0 %2734
    %vm2736 = vcmp.lt.s32.totalorder %v132, 94
    %v2737 = vsel %vm2736, %v2733, %v2735
    %v2738 = vsel %vm2736, %v2735, %v2733
    %2739 = vrot.lane.b32.xlu0 %v555, 94
    %v2740 = vpop.permute.xlu0 %2739
    %2741 = vrot.lane.b32.xlu0 %v556, 94
    %v2742 = vpop.permute.xlu0 %2741
    %v2743 = vsel %vm2736, %v2740, %v2742
    %v2744 = vsel %vm2736, %v2742, %v2740
    %v2745 = vmul.f32 %v678, %v713
    %v2746 = vstv %s759
    %v2747 = vmul.f32 %v2746, %v2745
    %v2749 = vlaneseq
    %v2750 = vshrl.u32 %v2749, 7
    %v2751 = vsub.s32 0, %v2750
    %v2752 = vrot.slane %v2747, %v2751
    %v2753 = vlaneseq
    %v2754 = vshrl.u32 %v2753, 7
    %v2755 = vsub.s32 1, %v2754
    %v2756 = vrot.slane %v2747, %v2755
    %v2759 = vmul.f32 %v2752, %v2737
    %v2760 = vmul.f32 %v2756, %v2738
    %v2761 = vstv %s808
    %v2762 = vmul.f32 %v2761, %v2745
    %v2764 = vlaneseq
    %v2765 = vshrl.u32 %v2764, 7
    %v2766 = vsub.s32 0, %v2765
    %v2767 = vrot.slane %v2762, %v2766
    %v2768 = vlaneseq
    %v2769 = vshrl.u32 %v2768, 7
    %v2770 = vsub.s32 1, %v2769
    %v2771 = vrot.slane %v2762, %v2770
    %v2774 = vmul.f32 %v2767, %v2743
    %v2775 = vmul.f32 %v2771, %v2744
    %v2776 = vadd.f32 %v2759, %v2774
    %v2777 = vadd.f32 %v2760, %v2775
    %v2778 = vadd.f32 %v2586, %v2776
    %v2779 = vadd.f32 %v2587, %v2777
    %2780 = vrot.lane.b32.xlu0 %v821, 93
    %v2781 = vpop.permute.xlu0 %2780
    %2782 = vrot.lane.b32.xlu0 %v822, 93
    %v2783 = vpop.permute.xlu0 %2782
    %vm2784 = vcmp.lt.s32.totalorder %v132, 93
    %v2785 = vsel %vm2784, %v2781, %v2783
    %v2786 = vsel %vm2784, %v2783, %v2781
    %2787 = vrot.lane.b32.xlu0 %v555, 93
    %v2788 = vpop.permute.xlu0 %2787
    %2789 = vrot.lane.b32.xlu0 %v556, 93
    %v2790 = vpop.permute.xlu0 %2789
    %v2791 = vsel %vm2784, %v2788, %v2790
    %v2792 = vsel %vm2784, %v2790, %v2788
    %v2793 = vmul.f32 %v678, %v718
    %v2794 = vstv %s760
    %v2795 = vmul.f32 %v2794, %v2793
    %v2797 = vlaneseq
    %v2798 = vshrl.u32 %v2797, 7
    %v2799 = vsub.s32 0, %v2798
    %v2800 = vrot.slane %v2795, %v2799
    %v2801 = vlaneseq
    %v2802 = vshrl.u32 %v2801, 7
    %v2803 = vsub.s32 1, %v2802
    %v2804 = vrot.slane %v2795, %v2803
    %v2807 = vmul.f32 %v2800, %v2785
    %v2808 = vmul.f32 %v2804, %v2786
    %v2809 = vstv %s809
    %v2810 = vmul.f32 %v2809, %v2793
    %v2812 = vlaneseq
    %v2813 = vshrl.u32 %v2812, 7
    %v2814 = vsub.s32 0, %v2813
    %v2815 = vrot.slane %v2810, %v2814
    %v2816 = vlaneseq
    %v2817 = vshrl.u32 %v2816, 7
    %v2818 = vsub.s32 1, %v2817
    %v2819 = vrot.slane %v2810, %v2818
    %v2822 = vmul.f32 %v2815, %v2791
    %v2823 = vmul.f32 %v2819, %v2792
    %v2824 = vadd.f32 %v2807, %v2822
    %v2825 = vadd.f32 %v2808, %v2823
    %v2826 = vadd.f32 %v2634, %v2824
    %v2827 = vadd.f32 %v2635, %v2825
    %2828 = vrot.lane.b32.xlu0 %v821, 83
    %v2829 = vpop.permute.xlu0 %2828
    %2830 = vrot.lane.b32.xlu0 %v822, 83
    %v2831 = vpop.permute.xlu0 %2830
    %vm2832 = vcmp.lt.s32.totalorder %v132, 83
    %v2833 = vsel %vm2832, %v2829, %v2831
    %v2834 = vsel %vm2832, %v2831, %v2829
    %2835 = vrot.lane.b32.xlu0 %v555, 83
    %v2836 = vpop.permute.xlu0 %2835
    %2837 = vrot.lane.b32.xlu0 %v556, 83
    %v2838 = vpop.permute.xlu0 %2837
    %v2839 = vsel %vm2832, %v2836, %v2838
    %v2840 = vsel %vm2832, %v2838, %v2836
    %v2841 = vmul.f32 %v683, %v688
    %v2842 = vstv %s761
    %v2843 = vmul.f32 %v2842, %v2841
    %v2845 = vlaneseq
    %v2846 = vshrl.u32 %v2845, 7
    %v2847 = vsub.s32 0, %v2846
    %v2848 = vrot.slane %v2843, %v2847
    %v2849 = vlaneseq
    %v2850 = vshrl.u32 %v2849, 7
    %v2851 = vsub.s32 1, %v2850
    %v2852 = vrot.slane %v2843, %v2851
    %v2855 = vmul.f32 %v2848, %v2833
    %v2856 = vmul.f32 %v2852, %v2834
    %v2857 = vstv %s810
    %v2858 = vmul.f32 %v2857, %v2841
    %v2860 = vlaneseq
    %v2861 = vshrl.u32 %v2860, 7
    %v2862 = vsub.s32 0, %v2861
    %v2863 = vrot.slane %v2858, %v2862
    %v2864 = vlaneseq
    %v2865 = vshrl.u32 %v2864, 7
    %v2866 = vsub.s32 1, %v2865
    %v2867 = vrot.slane %v2858, %v2866
    %v2870 = vmul.f32 %v2863, %v2839
    %v2871 = vmul.f32 %v2867, %v2840
    %v2872 = vadd.f32 %v2855, %v2870
    %v2873 = vadd.f32 %v2856, %v2871
    %v2874 = vadd.f32 %v2682, %v2872
    %v2875 = vadd.f32 %v2683, %v2873
    %2876 = vrot.lane.b32.xlu0 %v821, 82
    %v2877 = vpop.permute.xlu0 %2876
    %2878 = vrot.lane.b32.xlu0 %v822, 82
    %v2879 = vpop.permute.xlu0 %2878
    %vm2880 = vcmp.lt.s32.totalorder %v132, 82
    %v2881 = vsel %vm2880, %v2877, %v2879
    %v2882 = vsel %vm2880, %v2879, %v2877
    %2883 = vrot.lane.b32.xlu0 %v555, 82
    %v2884 = vpop.permute.xlu0 %2883
    %2885 = vrot.lane.b32.xlu0 %v556, 82
    %v2886 = vpop.permute.xlu0 %2885
    %v2887 = vsel %vm2880, %v2884, %v2886
    %v2888 = vsel %vm2880, %v2886, %v2884
    %v2889 = vmul.f32 %v683, %v693
    %v2890 = vstv %s762
    %v2891 = vmul.f32 %v2890, %v2889
    %v2893 = vlaneseq
    %v2894 = vshrl.u32 %v2893, 7
    %v2895 = vsub.s32 0, %v2894
    %v2896 = vrot.slane %v2891, %v2895
    %v2897 = vlaneseq
    %v2898 = vshrl.u32 %v2897, 7
    %v2899 = vsub.s32 1, %v2898
    %v2900 = vrot.slane %v2891, %v2899
    %v2903 = vmul.f32 %v2896, %v2881
    %v2904 = vmul.f32 %v2900, %v2882
    %v2905 = vstv %s811
    %v2906 = vmul.f32 %v2905, %v2889
    %v2908 = vlaneseq
    %v2909 = vshrl.u32 %v2908, 7
    %v2910 = vsub.s32 0, %v2909
    %v2911 = vrot.slane %v2906, %v2910
    %v2912 = vlaneseq
    %v2913 = vshrl.u32 %v2912, 7
    %v2914 = vsub.s32 1, %v2913
    %v2915 = vrot.slane %v2906, %v2914
    %v2918 = vmul.f32 %v2911, %v2887
    %v2919 = vmul.f32 %v2915, %v2888
    %v2920 = vadd.f32 %v2903, %v2918
    %v2921 = vadd.f32 %v2904, %v2919
    %v2922 = vadd.f32 %v2730, %v2920
    %v2923 = vadd.f32 %v2731, %v2921
    %2924 = vrot.lane.b32.xlu0 %v821, 81
    %v2925 = vpop.permute.xlu0 %2924
    %2926 = vrot.lane.b32.xlu0 %v822, 81
    %v2927 = vpop.permute.xlu0 %2926
    %vm2928 = vcmp.lt.s32.totalorder %v132, 81
    %v2929 = vsel %vm2928, %v2925, %v2927
    %v2930 = vsel %vm2928, %v2927, %v2925
    %2931 = vrot.lane.b32.xlu0 %v555, 81
    %v2932 = vpop.permute.xlu0 %2931
    %2933 = vrot.lane.b32.xlu0 %v556, 81
    %v2934 = vpop.permute.xlu0 %2933
    %v2935 = vsel %vm2928, %v2932, %v2934
    %v2936 = vsel %vm2928, %v2934, %v2932
    %v2937 = vmul.f32 %v683, %v698
    %v2938 = vstv %s763
    %v2939 = vmul.f32 %v2938, %v2937
    %v2941 = vlaneseq
    %v2942 = vshrl.u32 %v2941, 7
    %v2943 = vsub.s32 0, %v2942
    %v2944 = vrot.slane %v2939, %v2943
    %v2945 = vlaneseq
    %v2946 = vshrl.u32 %v2945, 7
    %v2947 = vsub.s32 1, %v2946
    %v2948 = vrot.slane %v2939, %v2947
    %v2951 = vmul.f32 %v2944, %v2929
    %v2952 = vmul.f32 %v2948, %v2930
    %v2953 = vstv %s812
    %v2954 = vmul.f32 %v2953, %v2937
    %v2956 = vlaneseq
    %v2957 = vshrl.u32 %v2956, 7
    %v2958 = vsub.s32 0, %v2957
    %v2959 = vrot.slane %v2954, %v2958
    %v2960 = vlaneseq
    %v2961 = vshrl.u32 %v2960, 7
    %v2962 = vsub.s32 1, %v2961
    %v2963 = vrot.slane %v2954, %v2962
    %v2966 = vmul.f32 %v2959, %v2935
    %v2967 = vmul.f32 %v2963, %v2936
    %v2968 = vadd.f32 %v2951, %v2966
    %v2969 = vadd.f32 %v2952, %v2967
    %v2970 = vadd.f32 %v2778, %v2968
    %v2971 = vadd.f32 %v2779, %v2969
    %2972 = vrot.lane.b32.xlu0 %v821, 80
    %v2973 = vpop.permute.xlu0 %2972
    %2974 = vrot.lane.b32.xlu0 %v822, 80
    %v2975 = vpop.permute.xlu0 %2974
    %vm2976 = vcmp.lt.s32.totalorder %v132, 80
    %v2977 = vsel %vm2976, %v2973, %v2975
    %v2978 = vsel %vm2976, %v2975, %v2973
    %2979 = vrot.lane.b32.xlu0 %v555, 80
    %v2980 = vpop.permute.xlu0 %2979
    %2981 = vrot.lane.b32.xlu0 %v556, 80
    %v2982 = vpop.permute.xlu0 %2981
    %v2983 = vsel %vm2976, %v2980, %v2982
    %v2984 = vsel %vm2976, %v2982, %v2980
    %v2985 = vmul.f32 %v683, %v703
    %v2986 = vstv %s764
    %v2987 = vmul.f32 %v2986, %v2985
    %v2989 = vlaneseq
    %v2990 = vshrl.u32 %v2989, 7
    %v2991 = vsub.s32 0, %v2990
    %v2992 = vrot.slane %v2987, %v2991
    %v2993 = vlaneseq
    %v2994 = vshrl.u32 %v2993, 7
    %v2995 = vsub.s32 1, %v2994
    %v2996 = vrot.slane %v2987, %v2995
    %v2999 = vmul.f32 %v2992, %v2977
    %v3000 = vmul.f32 %v2996, %v2978
    %v3001 = vstv %s813
    %v3002 = vmul.f32 %v3001, %v2985
    %v3004 = vlaneseq
    %v3005 = vshrl.u32 %v3004, 7
    %v3006 = vsub.s32 0, %v3005
    %v3007 = vrot.slane %v3002, %v3006
    %v3008 = vlaneseq
    %v3009 = vshrl.u32 %v3008, 7
    %v3010 = vsub.s32 1, %v3009
    %v3011 = vrot.slane %v3002, %v3010
    %v3014 = vmul.f32 %v3007, %v2983
    %v3015 = vmul.f32 %v3011, %v2984
    %v3016 = vadd.f32 %v2999, %v3014
    %v3017 = vadd.f32 %v3000, %v3015
    %v3018 = vadd.f32 %v2826, %v3016
    %v3019 = vadd.f32 %v2827, %v3017
    %3020 = vrot.lane.b32.xlu0 %v821, 79
    %v3021 = vpop.permute.xlu0 %3020
    %3022 = vrot.lane.b32.xlu0 %v822, 79
    %v3023 = vpop.permute.xlu0 %3022
    %vm3024 = vcmp.lt.s32.totalorder %v132, 79
    %v3025 = vsel %vm3024, %v3021, %v3023
    %v3026 = vsel %vm3024, %v3023, %v3021
    %3027 = vrot.lane.b32.xlu0 %v555, 79
    %v3028 = vpop.permute.xlu0 %3027
    %3029 = vrot.lane.b32.xlu0 %v556, 79
    %v3030 = vpop.permute.xlu0 %3029
    %v3031 = vsel %vm3024, %v3028, %v3030
    %v3032 = vsel %vm3024, %v3030, %v3028
    %v3033 = vmul.f32 %v683, %v708
    %v3034 = vstv %s765
    %v3035 = vmul.f32 %v3034, %v3033
    %v3037 = vlaneseq
    %v3038 = vshrl.u32 %v3037, 7
    %v3039 = vsub.s32 0, %v3038
    %v3040 = vrot.slane %v3035, %v3039
    %v3041 = vlaneseq
    %v3042 = vshrl.u32 %v3041, 7
    %v3043 = vsub.s32 1, %v3042
    %v3044 = vrot.slane %v3035, %v3043
    %v3047 = vmul.f32 %v3040, %v3025
    %v3048 = vmul.f32 %v3044, %v3026
    %v3049 = vstv %s814
    %v3050 = vmul.f32 %v3049, %v3033
    %v3052 = vlaneseq
    %v3053 = vshrl.u32 %v3052, 7
    %v3054 = vsub.s32 0, %v3053
    %v3055 = vrot.slane %v3050, %v3054
    %v3056 = vlaneseq
    %v3057 = vshrl.u32 %v3056, 7
    %v3058 = vsub.s32 1, %v3057
    %v3059 = vrot.slane %v3050, %v3058
    %v3062 = vmul.f32 %v3055, %v3031
    %v3063 = vmul.f32 %v3059, %v3032
    %v3064 = vadd.f32 %v3047, %v3062
    %v3065 = vadd.f32 %v3048, %v3063
    %v3066 = vadd.f32 %v2874, %v3064
    %v3067 = vadd.f32 %v2875, %v3065
    %3068 = vrot.lane.b32.xlu0 %v821, 78
    %v3069 = vpop.permute.xlu0 %3068
    %3070 = vrot.lane.b32.xlu0 %v822, 78
    %v3071 = vpop.permute.xlu0 %3070
    %vm3072 = vcmp.lt.s32.totalorder %v132, 78
    %v3073 = vsel %vm3072, %v3069, %v3071
    %v3074 = vsel %vm3072, %v3071, %v3069
    %3075 = vrot.lane.b32.xlu0 %v555, 78
    %v3076 = vpop.permute.xlu0 %3075
    %3077 = vrot.lane.b32.xlu0 %v556, 78
    %v3078 = vpop.permute.xlu0 %3077
    %v3079 = vsel %vm3072, %v3076, %v3078
    %v3080 = vsel %vm3072, %v3078, %v3076
    %v3081 = vmul.f32 %v683, %v713
    %v3082 = vstv %s766
    %v3083 = vmul.f32 %v3082, %v3081
    %v3085 = vlaneseq
    %v3086 = vshrl.u32 %v3085, 7
    %v3087 = vsub.s32 0, %v3086
    %v3088 = vrot.slane %v3083, %v3087
    %v3089 = vlaneseq
    %v3090 = vshrl.u32 %v3089, 7
    %v3091 = vsub.s32 1, %v3090
    %v3092 = vrot.slane %v3083, %v3091
    %v3095 = vmul.f32 %v3088, %v3073
    %v3096 = vmul.f32 %v3092, %v3074
    %v3097 = vstv %s815
    %v3098 = vmul.f32 %v3097, %v3081
    %v3100 = vlaneseq
    %v3101 = vshrl.u32 %v3100, 7
    %v3102 = vsub.s32 0, %v3101
    %v3103 = vrot.slane %v3098, %v3102
    %v3104 = vlaneseq
    %v3105 = vshrl.u32 %v3104, 7
    %v3106 = vsub.s32 1, %v3105
    %v3107 = vrot.slane %v3098, %v3106
    %v3110 = vmul.f32 %v3103, %v3079
    %v3111 = vmul.f32 %v3107, %v3080
    %v3112 = vadd.f32 %v3095, %v3110
    %v3113 = vadd.f32 %v3096, %v3111
    %v3114 = vadd.f32 %v2922, %v3112
    %v3115 = vadd.f32 %v2923, %v3113
    %3116 = vrot.lane.b32.xlu0 %v821, 77
    %v3117 = vpop.permute.xlu0 %3116
    %3118 = vrot.lane.b32.xlu0 %v822, 77
    %v3119 = vpop.permute.xlu0 %3118
    %vm3120 = vcmp.lt.s32.totalorder %v132, 77
    %v3121 = vsel %vm3120, %v3117, %v3119
    %v3122 = vsel %vm3120, %v3119, %v3117
    %3123 = vrot.lane.b32.xlu0 %v555, 77
    %v3124 = vpop.permute.xlu0 %3123
    %3125 = vrot.lane.b32.xlu0 %v556, 77
    %v3126 = vpop.permute.xlu0 %3125
    %v3127 = vsel %vm3120, %v3124, %v3126
    %v3128 = vsel %vm3120, %v3126, %v3124
    %v3129 = vmul.f32 %v683, %v718
    %v3130 = vstv %s767
    %v3131 = vmul.f32 %v3130, %v3129
    %v3133 = vlaneseq
    %v3134 = vshrl.u32 %v3133, 7
    %v3135 = vsub.s32 0, %v3134
    %v3136 = vrot.slane %v3131, %v3135
    %v3137 = vlaneseq
    %v3138 = vshrl.u32 %v3137, 7
    %v3139 = vsub.s32 1, %v3138
    %v3140 = vrot.slane %v3131, %v3139
    %v3143 = vmul.f32 %v3136, %v3121
    %v3144 = vmul.f32 %v3140, %v3122
    %v3145 = vstv %s816
    %v3146 = vmul.f32 %v3145, %v3129
    %v3148 = vlaneseq
    %v3149 = vshrl.u32 %v3148, 7
    %v3150 = vsub.s32 0, %v3149
    %v3151 = vrot.slane %v3146, %v3150
    %v3152 = vlaneseq
    %v3153 = vshrl.u32 %v3152, 7
    %v3154 = vsub.s32 1, %v3153
    %v3155 = vrot.slane %v3146, %v3154
    %v3158 = vmul.f32 %v3151, %v3127
    %v3159 = vmul.f32 %v3155, %v3128
    %v3160 = vadd.f32 %v3143, %v3158
    %v3161 = vadd.f32 %v3144, %v3159
    %v3162 = vadd.f32 %v2970, %v3160
    %v3163 = vadd.f32 %v2971, %v3161
    %v3164 = vadd.f32 %v3162, %v3018
    %v3165 = vadd.f32 %v3163, %v3019
    %v3166 = vadd.f32 %v3164, %v3066
    %v3167 = vadd.f32 %v3165, %v3067
    %v3168 = vadd.f32 %v3166, %v3114
    %v3169 = vadd.f32 %v3167, %v3115
    %v3170 = vxor.u32 %v3168, 2147483648
    %v3171 = vxor.u32 %v3169, 2147483648
    %v3172 = vmul.f32 %v3170, 1.442695
    %v3173 = vpow.pop %v3172
    %v3174 = vmul.f32 %v3171, 1.442695
    %v3175 = vpow.pop %v3174
    %v3176 = vadd.f32 %v3173, 1.0
    %v3177 = vadd.f32 %v3175, 1.0
    %v3178 = vrcp.pop %v3176
    %v3179 = vmul.f32 1.0, %v3178
    %v3180 = vrcp.pop %v3177
    %v3181 = vmul.f32 1.0, %v3180
    %v3184 = vcombine.low %v3179, %v3181
    %v3186 = vunpack.c.l.s4 1966171168
    %v3187 = vunpack.c.0.s8 %v3186
    %v3188 = vlaneseq
    %v3189 = vshrl.u32 %v3188, 7
    %v3190 = vsub.s32 %v3187, %v3189
    %v3191 = vrot.slane %v3184, %v3190
    %v3192 = vcombine.high %v3191, %v3191
    %v3194 = vunpack.c.l.s4 1966171168
    %v3195 = vunpack.c.0.s8 %v3194
    %v3196 = vlaneseq
    %v3197 = vshrl.u32 %v3196, 7
    %v3198 = vsub.s32 %v3195, %v3197
    %v3199 = vrot.slane %v3191, %v3198
    %v3201 = vunpack.c.l.s4 1966171168
    %v3202 = vunpack.c.0.s8 %v3201
    %v3203 = vlaneseq
    %v3204 = vshrl.u32 %v3203, 7
    %v3205 = vsub.s32 %v3202, %v3204
    %v3206 = vrot.slane %v3192, %v3205
    %v3207 = vlaneseq
    %v3208 = vshrl.u32 %v3207, 7
    %v3209 = vsub.s32 0, %v3208
    %v3210 = vrot.slane %v3199, %v3209
    %v3211 = vlaneseq
    %v3212 = vshrl.u32 %v3211, 7
    %v3213 = vsub.s32 1, %v3212
    %v3214 = vrot.slane %v3199, %v3213
    %v3215 = vlaneseq
    %v3216 = vshrl.u32 %v3215, 7
    %v3217 = vsub.s32 0, %v3216
    %v3218 = vrot.slane %v3206, %v3217
    %v3219 = vlaneseq
    %v3220 = vshrl.u32 %v3219, 7
    %v3221 = vsub.s32 1, %v3220
    %v3222 = vrot.slane %v3206, %v3221
    %v3227 = vmul.f32 %v595, %v3210
    %v3228 = vmul.f32 %v596, %v3214
    %v3229 = vmul.f32 %v597, %v3210
    %v3230 = vmul.f32 %v598, %v3214
    %v3231 = vmul.f32 %v599, %v3210
    %v3232 = vmul.f32 %v600, %v3214
    %v3233 = vmul.f32 %v601, %v3210
    %v3234 = vmul.f32 %v602, %v3214
    %v3235 = vmul.f32 %v603, %v3218
    %v3236 = vmul.f32 %v604, %v3222
    %v3237 = vmul.f32 %v605, %v3218
    %v3238 = vmul.f32 %v606, %v3222
    %v3239 = vmul.f32 %v607, %v3218
    %v3240 = vmul.f32 %v608, %v3222
    %v3241 = vmul.f32 %v609, %v3218
    %v3242 = vmul.f32 %v610, %v3222
    %3243 = vst [vmem:[#allocation7] sm:$0xff] %v3227
    %3244 = vst [vmem:[#allocation7 + $0x8] sm:$0xff] %v3228
    %3245 = vst [vmem:[#allocation7 + $0x10] sm:$0xff] %v3229
    %3246 = vst [vmem:[#allocation7 + $0x18] sm:$0xff] %v3230
    %3247 = vst [vmem:[#allocation7 + $0x20] sm:$0xff] %v3231
    %3248 = vst [vmem:[#allocation7 + $0x28] sm:$0xff] %v3232
    %3249 = vst [vmem:[#allocation7 + $0x30] sm:$0xff] %v3233
    %3250 = vst [vmem:[#allocation7 + $0x38] sm:$0xff] %v3234
    %3251 = vst [vmem:[#allocation7 + $0x40] sm:$0xff] %v3235
    %3252 = vst [vmem:[#allocation7 + $0x48] sm:$0xff] %v3236
    %3253 = vst [vmem:[#allocation7 + $0x50] sm:$0xff] %v3237
    %3254 = vst [vmem:[#allocation7 + $0x58] sm:$0xff] %v3238
    %3255 = vst [vmem:[#allocation7 + $0x60] sm:$0xff] %v3239
    %3256 = vst [vmem:[#allocation7 + $0x68] sm:$0xff] %v3240
    %3257 = vst [vmem:[#allocation7 + $0x70] sm:$0xff] %v3241
    %3258 = vst [vmem:[#allocation7 + $0x78] sm:$0xff] %v3242
    // Predicated region
    $region34: #{tpu_custom_call.1} parent=1 // pred_check
      _
    $region35: #{tpu_custom_call.1} parent=1 // pred_check_branch
      %3260 = sbr.rel (0) target = $region37
    $region36: #{tpu_custom_call.1} parent=1 // pred_region
      %s3262 = ssub.s32 2048, 2048
      %3263 = vsyncadd [#allocation4], %s3262
      %s3264 = sshll.u32 [#allocation7], 4
      %s3265 = int_to_ptr.vmem [resolvable:$true] %s3264
      %3270 = dma.vmem_to_hbm [thread:$0]  %s3265, 2048, %s6, [#allocation4], 256, 256, 16
    $region37: #{tpu_custom_call.1} parent=1 // pred_fallthru
      _
    // Predicated region
    $region38: #{tpu_custom_call.1} parent=1 // pred_check
      _
    $region39: #{tpu_custom_call.1} parent=1 // pred_check_branch
      %3272 = sbr.rel (0) target = $region41
    $region40: #{tpu_custom_call.1} parent=1 // pred_region
      %3273 = dma.done [#allocation4], 2048
    $region41: #{tpu_custom_call.1} parent=1 // pred_fallthru
      _
    %3274 = vsyncpa [#allocation3], 1
    %3275 = vsyncpa [#allocation4], 1
    %3276 = vsyncpa [#allocation5], 1

</llo_original>
